<compile_context>
chip_gen: v6e
topology: v6e:2x2x1
jax: 0.10.0
libtpu: 0.0.40
codegen_flags: <defaults>
</compile_context>

<pallas_src>
import functools

import jax
import jax.numpy as jnp
from jax.experimental import pallas as pl
from jax.experimental.pallas import tpu as pltpu


def _round_up(n, m):
    return ((n + m - 1) // m) * m


def _sigmoid(x):
    # sigmoid via tanh: one EUP transcendental instead of exp + reciprocal.
    return 0.5 * jnp.tanh(0.5 * x) + 0.5


# -----------------------------------------------------------------------------
# VMEM budgeting (generation-aware) and tile selection.
# -----------------------------------------------------------------------------
@functools.lru_cache(maxsize=None)
def _vmem_cap_bytes():
    """~85% of physical VMEM (64 MiB on v7x, 128 MiB on v5e/v6e); conservative
    64 MiB fallback if the query is unavailable."""
    try:
        return int(0.85 * pltpu.get_tpu_info().vmem_capacity_bytes)
    except Exception:
        return 64 * 1024 * 1024


_WEIGHT_SINGLE_BUFFER_BYTES = 4 * 1024 * 1024


def _weight_buffer_count(d_in_p, h_p):
    """Single-buffer the grid-invariant weight blocks once they are big enough
    for double-buffering to cost real VMEM (constant index_map => a second
    buffer buys nothing)."""
    w_bytes = (d_in_p + h_p) * 4 * h_p * 2          # bf16
    return 1 if w_bytes >= _WEIGHT_SINGLE_BUFFER_BYTES else 2


def _vmem_estimate_bytes(t_block, b_block, d_in_p, h_p, weight_buffers):
    f32, bf16 = 4, 2
    x_blk = t_block * b_block * d_in_p * bf16            # input block (bf16)
    out_blk = t_block * b_block * h_p * bf16             # output block (bf16)
    xg = t_block * b_block * 4 * h_p * f32               # hoisted-gates scratch
    weights = (d_in_p + h_p) * 4 * h_p * bf16
    bias = 4 * h_p * f32
    state = 4 * b_block * h_p * f32                      # h0, c0, hn, cn
    return (2 * (x_blk + out_blk) + xg + weight_buffers * weights
            + 2 * bias + 2 * state)


def _vmem_limit_bytes(t_block, b_block, d_in_p, h_p, weight_buffers):
    est = _vmem_estimate_bytes(t_block, b_block, d_in_p, h_p, weight_buffers)
    return int(min(max(2 * est, 32 * 1024 * 1024), _vmem_cap_bytes()))


def _pick_t_block(T, b_block, d_in_p, h_p, weight_buffers, max_blk=64):
    """Largest divisor of T that is <= max_blk and whose tile footprint fits
    ~70% of the VMEM budget (keeps the grid exact)."""
    budget = 0.7 * _vmem_cap_bytes()
    best = 1
    for cand in range(1, min(T, max_blk) + 1):
        if T % cand == 0 and _vmem_estimate_bytes(
                cand, b_block, d_in_p, h_p, weight_buffers) <= budget:
            best = cand
    return best


# -----------------------------------------------------------------------------
# Kernel: one (batch-block, time-block) tile of one LSTM layer.
# -----------------------------------------------------------------------------
def _lstm_layer_kernel(x_ref, w_ih_ref, w_hh_ref, b_ref, h0_ref, c0_ref,
                       out_ref, hn_ref, cn_ref, xg_ref,
                       *, t_block, b_block, hidden_p):
    t_blk = pl.program_id(1)
    Hp = hidden_p

    # First time-block for this batch-block: seed the carry from h0/c0.
    # hn_ref/cn_ref are resident across the (arbitrary) time axis and act as
    # the recurrent carry; they are written back to HBM once per batch-block.
    @pl.when(t_blk == 0)
    def _():
        hn_ref[...] = h0_ref[...]
        cn_ref[...] = c0_ref[...]

    # --- Hoisted input projection (off the recurrent critical path) ---------
    # One MXU matmul with M = t_block * b_block instead of t_block tiny ones;
    # bias added once per grid step, not per timestep.
    x_blk = x_ref[...].reshape(t_block * b_block, x_ref.shape[-1])   # bf16
    xg_ref[...] = (jnp.dot(x_blk, w_ih_ref[...],
                           preferred_element_type=jnp.float32)
                   + b_ref[...])                                     # f32

    w_hh = w_hh_ref[...]                         # bf16, hoisted out of loop

    # --- Recurrence ----------------------------------------------------------
    def step(i, carry):
        h, c = carry                             # (b_block, Hp) f32
        row = pl.multiple_of(i * b_block, b_block)
        gates = (xg_ref[pl.ds(row, b_block), :]
                 + jnp.dot(h.astype(jnp.bfloat16), w_hh,
                           preferred_element_type=jnp.float32))      # f32

        # Gate slots are (i, f, o, g): the three sigmoid gates are one
        # contiguous, lane-aligned slice.
        sig = _sigmoid(gates[:, :3 * Hp])
        i_g = sig[:, 0 * Hp:1 * Hp]
        f_g = sig[:, 1 * Hp:2 * Hp]
        o_g = sig[:, 2 * Hp:3 * Hp]
        g_g = jnp.tanh(gates[:, 3 * Hp:4 * Hp])

        c_new = f_g * c + i_g * g_g
        h_new = o_g * jnp.tanh(c_new)

        out_ref[i] = h_new.astype(out_ref.dtype)  # bf16 sequence output
        return h_new, c_new

    h, c = jax.lax.fori_loop(0, t_block, step, (hn_ref[...], cn_ref[...]),
                             unroll=min(t_block, 8))
    hn_ref[...] = h
    cn_ref[...] = c


# -----------------------------------------------------------------------------
# One LSTM layer over the full (padded, time-major) sequence.
# -----------------------------------------------------------------------------
def lstm_layer_pallas(x_tbd, w_ih_p, w_hh_p, b_p, h0_p, c0_p, *,
                      t_block, b_block):
    T, Bp, Din_p = x_tbd.shape
    Hp = h0_p.shape[-1]
    nb = Bp // b_block
    nt = T // t_block

    weight_buffers = _weight_buffer_count(Din_p, Hp)
    weight_mode = pl.Buffered(1) if weight_buffers == 1 else None

    kernel = functools.partial(_lstm_layer_kernel, t_block=t_block,
                               b_block=b_block, hidden_p=Hp)

    out, hn, cn = pl.pallas_call(
        kernel,
        out_shape=(jax.ShapeDtypeStruct((T, Bp, Hp), jnp.bfloat16),
                   jax.ShapeDtypeStruct((Bp, Hp), jnp.float32),
                   jax.ShapeDtypeStruct((Bp, Hp), jnp.float32)),
        grid_spec=pltpu.PrefetchScalarGridSpec(
            num_scalar_prefetch=0,
            grid=(nb, nt),
            in_specs=[
                pl.BlockSpec((t_block, b_block, Din_p), lambda b, t: (t, b, 0)),
                pl.BlockSpec((Din_p, 4 * Hp), lambda b, t: (0, 0),
                             pipeline_mode=weight_mode),
                pl.BlockSpec((Hp, 4 * Hp), lambda b, t: (0, 0),
                             pipeline_mode=weight_mode),
                pl.BlockSpec((1, 4 * Hp), lambda b, t: (0, 0),
                             pipeline_mode=weight_mode),
                pl.BlockSpec((b_block, Hp), lambda b, t: (b, 0)),
                pl.BlockSpec((b_block, Hp), lambda b, t: (b, 0)),
            ],
            out_specs=[
                pl.BlockSpec((t_block, b_block, Hp), lambda b, t: (t, b, 0)),
                pl.BlockSpec((b_block, Hp), lambda b, t: (b, 0)),
                pl.BlockSpec((b_block, Hp), lambda b, t: (b, 0)),
            ],
            scratch_shapes=[
                pltpu.VMEM((t_block * b_block, 4 * Hp), jnp.float32),
            ]),
        compiler_params=pltpu.CompilerParams(
            dimension_semantics=("parallel", "arbitrary"),
            vmem_limit_bytes=_vmem_limit_bytes(t_block, b_block, Din_p, Hp,
                                               weight_buffers)),
    )(x_tbd, w_ih_p, w_hh_p, b_p, h0_p, c0_p)
    return out, hn, cn


# -----------------------------------------------------------------------------
# Parameter construction / padding.
# -----------------------------------------------------------------------------
def make_params(key, input_size, hidden_size, num_layers):
    """PyTorch-style LSTM params, uniform(-1/sqrt(H), 1/sqrt(H)); stored as
    transposed f32 matrices (d_in, 4H)/(H, 4H), PyTorch gate order (i, f, g, o)."""
    k = 1.0 / jnp.sqrt(jnp.float32(hidden_size))
    params = []
    for l in range(num_layers):
        d_in = input_size if l == 0 else hidden_size
        key, k1, k2, k3, k4 = jax.random.split(key, 5)
        w_ih_t = jax.random.uniform(k1, (d_in, 4 * hidden_size),
                                    jnp.float32, -k, k)
        w_hh_t = jax.random.uniform(k2, (hidden_size, 4 * hidden_size),
                                    jnp.float32, -k, k)
        b_ih = jax.random.uniform(k3, (4 * hidden_size,), jnp.float32, -k, k)
        b_hh = jax.random.uniform(k4, (4 * hidden_size,), jnp.float32, -k, k)
        b = (b_ih + b_hh).reshape(1, 4 * hidden_size)
        params.append((w_ih_t, w_hh_t, b))
    return tuple(params), key


# Kernel gate-slot order (i, f, o, g): the sigmoid gates are contiguous.
# PyTorch stores (i, f, g, o).
_SLOT_TO_TORCH_GATE = (0, 1, 3, 2)


def prepare_params(params, hidden_size):
    """Pad to lane-aligned per-gate slots (slot order i, f, o, g) and cast the
    matmul weights to bf16.  Padded rows/columns are zero, so padded hidden
    lanes stay exactly 0 through the recurrence (f=sigma(0)=0.5 times c=0,
    g=tanh(0)=0)."""
    H = hidden_size
    Hp = _round_up(H, 128)
    padded = []
    for (w_ih_t, w_hh_t, b) in params:
        d_in = w_ih_t.shape[0]
        d_in_p = _round_up(d_in, 128)
        w_ih_p = jnp.zeros((d_in_p, 4 * Hp), jnp.float32)
        w_hh_p = jnp.zeros((Hp, 4 * Hp), jnp.float32)
        b_p = jnp.zeros((1, 4 * Hp), jnp.float32)
        for slot, g in enumerate(_SLOT_TO_TORCH_GATE):
            w_ih_p = w_ih_p.at[:d_in, slot * Hp:slot * Hp + H].set(
                w_ih_t[:, g * H:(g + 1) * H])
            w_hh_p = w_hh_p.at[:H, slot * Hp:slot * Hp + H].set(
                w_hh_t[:, g * H:(g + 1) * H])
            b_p = b_p.at[:, slot * Hp:slot * Hp + H].set(
                b[:, g * H:(g + 1) * H])
        padded.append((w_ih_p.astype(jnp.bfloat16),
                       w_hh_p.astype(jnp.bfloat16),
                       b_p))
    return tuple(padded)


# -----------------------------------------------------------------------------
# Forward pass (mirrors RNN.forward: returns (out, (h_n, c_n))).
# -----------------------------------------------------------------------------
@jax.jit
def rnn_forward(x_btd, padded_params, h0_all, c0_all):
    """x_btd: (B, T, input_size) batch_first; h0/c0: (L, B, H) random init."""
    B, T, Din = x_btd.shape
    _, _, H = h0_all.shape
    Hp = padded_params[0][1].shape[0]          # w_hh_p: (Hp, 4*Hp)
    Din_p0 = padded_params[0][0].shape[0]      # w_ih_p layer 0: (Din_p, 4*Hp)

    # Batch padded to a multiple of 16 (bf16 sublane packing of activations);
    # b_block capped at 128 (fills an MXU M pass, avoids up-to-2x padding
    # waste for awkward batch sizes).
    Bp = _round_up(B, 16)
    if Bp > 128:
        b_block = 128
        Bp = _round_up(Bp, 128)
    else:
        b_block = Bp

    d_in_worst = max(Din_p0, Hp)
    weight_buffers = _weight_buffer_count(d_in_worst, Hp)
    t_block = _pick_t_block(T, b_block, d_in_worst, Hp, weight_buffers)

    # Time-major, zero-padded, bf16 activations; transposed once here (and
    # once at the end), never per layer.
    x = jnp.transpose(x_btd, (1, 0, 2)).astype(jnp.bfloat16)
    x = jnp.zeros((T, Bp, Din_p0), jnp.bfloat16).at[:, :B, :Din].set(x)

    hns, cns = [], []
    for l, (w_ih_p, w_hh_p, b_p) in enumerate(padded_params):
        h0 = jnp.zeros((Bp, Hp), jnp.float32).at[:B, :H].set(h0_all[l])
        c0 = jnp.zeros((Bp, Hp), jnp.float32).at[:B, :H].set(c0_all[l])
        x, hn, cn = lstm_layer_pallas(x, w_ih_p, w_hh_p, b_p, h0, c0,
                                      t_block=t_block, b_block=b_block)
        hns.append(hn)
        cns.append(cn)

    out = jnp.transpose(x, (1, 0, 2))[:B, :, :H].astype(jnp.float32)
    h_n = jnp.stack(hns)[:, :B, :H]
    c_n = jnp.stack(cns)[:, :B, :H]
    return out, (h_n, c_n)


# -----------------------------------------------------------------------------
# Pure-JAX reference with identical numerics (bf16 matmul inputs & inter-layer
# activations, f32 accumulation/carries, tanh-form sigmoid).
# -----------------------------------------------------------------------------
def _reference_lstm(x_btd, params, h0_all, c0_all):
    x = jnp.transpose(x_btd, (1, 0, 2)).astype(jnp.bfloat16)
    H = h0_all.shape[-1]
    hns, cns = [], []
    for l, (w_ih_t, w_hh_t, b) in enumerate(params):
        w_ih_b = w_ih_t.astype(jnp.bfloat16)
        w_hh_b = w_hh_t.astype(jnp.bfloat16)
        h, c = h0_all[l], c0_all[l]
        outs = []
        for t in range(x.shape[0]):
            xg = jnp.dot(x[t], w_ih_b, preferred_element_type=jnp.float32) + b
            gates = xg + jnp.dot(h.astype(jnp.bfloat16), w_hh_b,
                                 preferred_element_type=jnp.float32)
            i = _sigmoid(gates[:, 0 * H:1 * H])
            f = _sigmoid(gates[:, 1 * H:2 * H])
            g = jnp.tanh(gates[:, 2 * H:3 * H])
            o = _sigmoid(gates[:, 3 * H:4 * H])
            c = f * c + i * g
            h = o * jnp.tanh(c)
            outs.append(h.astype(jnp.bfloat16))     # inter-layer bf16
        x = jnp.stack(outs)
        hns.append(h)
        cns.append(c)
    return (jnp.transpose(x, (1, 0, 2)).astype(jnp.float32),
            (jnp.stack(hns), jnp.stack(cns)))


if __name__ == "__main__":
    input_size, hidden_size, num_layers = 16, 32, 2
    batch, seq = 2, 8

    key = jax.random.PRNGKey(0)
    key, kx, kh, kc = jax.random.split(key, 4)
    x = jax.random.normal(kx, (batch, seq, input_size), jnp.float32)
    # initHidden: torch.rand -> uniform[0, 1)
    h0 = jax.random.uniform(kh, (num_layers, batch, hidden_size), jnp.float32)
    c0 = jax.random.uniform(kc, (num_layers, batch, hidden_size), jnp.float32)
    params, _ = make_params(key, input_size, hidden_size, num_layers)
    padded_params = prepare_params(params, hidden_size)

    out, (h_n, c_n) = rnn_forward(x, padded_params, h0, c0)
    jax.block_until_ready((out, h_n, c_n))

    # Sanity check vs pure-JAX reference of the same numerics.
    ref_out, (ref_h, ref_c) = _reference_lstm(x, params, h0, c0)
    assert out.shape == (batch, seq, hidden_size)
    assert h_n.shape == (num_layers, batch, hidden_size)
    assert c_n.shape == (num_layers, batch, hidden_size)
    assert jnp.allclose(out, ref_out, atol=2e-2, rtol=2e-2)
    assert jnp.allclose(h_n, ref_h, atol=2e-3, rtol=2e-3)
    assert jnp.allclose(c_n, ref_c, atol=2e-3, rtol=2e-3)

    print("KERNEL_OK")
</pallas_src>

<mosaic_0001>
module attributes {stable_mosaic.version = 11 : i64} {
  func.func @_lstm_layer_kernel(%arg0: i32, %arg1: i32, %arg2: memref<8x16x128xbf16, #tpu.memory_space<vmem>>, %arg3: memref<128x512xbf16, #tpu.memory_space<vmem>>, %arg4: memref<128x512xbf16, #tpu.memory_space<vmem>>, %arg5: memref<1x512xf32, #tpu.memory_space<vmem>>, %arg6: memref<16x128xf32, #tpu.memory_space<vmem>>, %arg7: memref<16x128xf32, #tpu.memory_space<vmem>>, %arg8: memref<8x16x128xbf16, #tpu.memory_space<vmem>>, %arg9: memref<16x128xf32, #tpu.memory_space<vmem>>, %arg10: memref<16x128xf32, #tpu.memory_space<vmem>>, %arg11: memref<128x512xf32, #tpu.memory_space<vmem>>) attributes {dimension_semantics = [#tpu.dimension_semantics<parallel>, #tpu.dimension_semantics<arbitrary>], iteration_bounds = array<i64: 1, 1>, scalar_prefetch = 0 : i64, scratch_operands = 1 : i64, tpu.core_type = #tpu.core_type<tc>, window_params = [{transform_indices = @transform_0, window_bounds = array<i64: 8, 16, 128>}, {pipeline_mode = #tpu.pipeline_mode<synchronous>, transform_indices = @transform_1, window_bounds = array<i64: 128, 512>}, {pipeline_mode = #tpu.pipeline_mode<synchronous>, transform_indices = @transform_2, window_bounds = array<i64: 128, 512>}, {pipeline_mode = #tpu.pipeline_mode<synchronous>, transform_indices = @transform_3, window_bounds = array<i64: 1, 512>}, {transform_indices = @transform_4, window_bounds = array<i64: 16, 128>}, {transform_indices = @transform_5, window_bounds = array<i64: 16, 128>}, {transform_indices = @transform_6, window_bounds = array<i64: 8, 16, 128>}, {transform_indices = @transform_7, window_bounds = array<i64: 16, 128>}, {transform_indices = @transform_8, window_bounds = array<i64: 16, 128>}]} {
    %c0_i32 = arith.constant 0 : i32
    %0 = arith.cmpi eq, %arg1, %c0_i32 : i32
    %1 = arith.extui %0 : i1 to i32
    %c0_i32_0 = arith.constant 0 : i32
    %2 = arith.cmpi ne, %1, %c0_i32_0 : i32
    scf.if %2 {
      %c0_83 = arith.constant 0 : index
      %c0_84 = arith.constant 0 : index
      %256 = vector.load %arg6[%c0_83, %c0_84] : memref<16x128xf32, #tpu.memory_space<vmem>>, vector<16x128xf32>
      %c0_85 = arith.constant 0 : index
      %c0_86 = arith.constant 0 : index
      %257 = vector.load %arg9[%c0_85, %c0_86] : memref<16x128xf32, #tpu.memory_space<vmem>>, vector<16x128xf32>
      tpu.vector_store %arg9[%c0_85, %c0_86], %256 {strides = array<i32>} : memref<16x128xf32, #tpu.memory_space<vmem>>, vector<16x128xf32>,
      %c0_87 = arith.constant 0 : index
      %c0_88 = arith.constant 0 : index
      %258 = vector.load %arg7[%c0_87, %c0_88] : memref<16x128xf32, #tpu.memory_space<vmem>>, vector<16x128xf32>
      %c0_89 = arith.constant 0 : index
      %c0_90 = arith.constant 0 : index
      %259 = vector.load %arg10[%c0_89, %c0_90] : memref<16x128xf32, #tpu.memory_space<vmem>>, vector<16x128xf32>
      tpu.vector_store %arg10[%c0_89, %c0_90], %258 {strides = array<i32>} : memref<16x128xf32, #tpu.memory_space<vmem>>, vector<16x128xf32>,
    } else {
    }
    %c0 = arith.constant 0 : index
    %c0_1 = arith.constant 0 : index
    %c0_2 = arith.constant 0 : index
    %3 = vector.load %arg2[%c0, %c0_1, %c0_2] : memref<8x16x128xbf16, #tpu.memory_space<vmem>>, vector<8x16x128xbf16>
    %4 = vector.shape_cast %3 : vector<8x16x128xbf16> to vector<128x128xbf16>
    %c0_3 = arith.constant 0 : index
    %c0_4 = arith.constant 0 : index
    %5 = vector.load %arg3[%c0_3, %c0_4] : memref<128x512xbf16, #tpu.memory_space<vmem>>, vector<128x512xbf16>
    %cst = arith.constant dense<0.000000e+00> : vector<128x512xf32>
    %6 = tpu.matmul %4, %5, %cst {dimension_numbers = #tpu.dot_dimension_numbers<[1], [0], [0], [1], [0, 0, 1, 1], [], []>} : vector<128x128xbf16>, vector<128x512xbf16>, vector<128x512xf32> -> vector<128x512xf32>
    %c0_5 = arith.constant 0 : index
    %c0_6 = arith.constant 0 : index
    %7 = vector.load %arg5[%c0_5, %c0_6] : memref<1x512xf32, #tpu.memory_space<vmem>>, vector<1x512xf32>
    %8 = vector.broadcast %7 : vector<1x512xf32> to vector<128x512xf32>
    %9 = arith.addf %6, %8 : vector<128x512xf32>
    %c0_7 = arith.constant 0 : index
    %c0_8 = arith.constant 0 : index
    %10 = vector.load %arg11[%c0_7, %c0_8] : memref<128x512xf32, #tpu.memory_space<vmem>>, vector<128x512xf32>
    tpu.vector_store %arg11[%c0_7, %c0_8], %9 {strides = array<i32>} : memref<128x512xf32, #tpu.memory_space<vmem>>, vector<128x512xf32>,
    %c0_9 = arith.constant 0 : index
    %c0_10 = arith.constant 0 : index
    %11 = vector.load %arg4[%c0_9, %c0_10] : memref<128x512xbf16, #tpu.memory_space<vmem>>, vector<128x512xbf16>
    %c0_11 = arith.constant 0 : index
    %c0_12 = arith.constant 0 : index
    %12 = vector.load %arg9[%c0_11, %c0_12] : memref<16x128xf32, #tpu.memory_space<vmem>>, vector<16x128xf32>
    %c0_13 = arith.constant 0 : index
    %c0_14 = arith.constant 0 : index
    %13 = vector.load %arg10[%c0_13, %c0_14] : memref<16x128xf32, #tpu.memory_space<vmem>>, vector<16x128xf32>
    %c0_i32_15 = arith.constant 0 : i32
    %c16_i32 = arith.constant 16 : i32
    %14 = arith.muli %c0_i32_15, %c16_i32 : i32
    %15 = tpu.assume_multiple %14, 16 : i32
    %16 = arith.index_cast %15 : i32 to index
    %c0_16 = arith.constant 0 : index
    %17 = vector.load %arg11[%16, %c0_16] : memref<128x512xf32, #tpu.memory_space<vmem>>, vector<16x512xf32>
    %18 = arith.truncf %12 : vector<16x128xf32> to vector<16x128xbf16>
    %cst_17 = arith.constant dense<0.000000e+00> : vector<16x512xf32>
    %19 = tpu.matmul %18, %11, %cst_17 {dimension_numbers = #tpu.dot_dimension_numbers<[1], [0], [0], [1], [0, 0, 1, 1], [], []>} : vector<16x128xbf16>, vector<128x512xbf16>, vector<16x512xf32> -> vector<16x512xf32>
    %20 = arith.addf %17, %19 : vector<16x512xf32>
    %21 = vector.extract_strided_slice %20 {offsets = [0, 0], sizes = [16, 384], strides = [1, 1]} : vector<16x512xf32> to vector<16x384xf32>
    %cst_18 = arith.constant 5.000000e-01 : f32
    %22 = vector.broadcast %cst_18 : f32 to vector<16x384xf32>
    %23 = arith.mulf %22, %21 : vector<16x384xf32>
    %24 = math.tanh %23 : vector<16x384xf32>
    %cst_19 = arith.constant 5.000000e-01 : f32
    %25 = vector.broadcast %cst_19 : f32 to vector<16x384xf32>
    %26 = arith.mulf %25, %24 : vector<16x384xf32>
    %cst_20 = arith.constant 5.000000e-01 : f32
    %27 = vector.broadcast %cst_20 : f32 to vector<16x384xf32>
    %28 = arith.addf %26, %27 : vector<16x384xf32>
    %29 = vector.extract_strided_slice %28 {offsets = [0, 0], sizes = [16, 128], strides = [1, 1]} : vector<16x384xf32> to vector<16x128xf32>
    %30 = vector.extract_strided_slice %28 {offsets = [0, 128], sizes = [16, 128], strides = [1, 1]} : vector<16x384xf32> to vector<16x128xf32>
    %31 = vector.extract_strided_slice %28 {offsets = [0, 256], sizes = [16, 128], strides = [1, 1]} : vector<16x384xf32> to vector<16x128xf32>
    %32 = vector.extract_strided_slice %20 {offsets = [0, 384], sizes = [16, 128], strides = [1, 1]} : vector<16x512xf32> to vector<16x128xf32>
    %33 = math.tanh %32 : vector<16x128xf32>
    %34 = arith.mulf %30, %13 : vector<16x128xf32>
    %35 = arith.mulf %29, %33 : vector<16x128xf32>
    %36 = arith.addf %34, %35 : vector<16x128xf32>
    %37 = math.tanh %36 : vector<16x128xf32>
    %38 = arith.mulf %31, %37 : vector<16x128xf32>
    %39 = arith.truncf %38 : vector<16x128xf32> to vector<16x128xbf16>
    %40 = arith.index_cast %c0_i32_15 : i32 to index
    %c0_21 = arith.constant 0 : index
    %c0_22 = arith.constant 0 : index
    %41 = vector.load %arg8[%40, %c0_21, %c0_22] : memref<8x16x128xbf16, #tpu.memory_space<vmem>>, vector<1x16x128xbf16>
    %42 = vector.shape_cast %41 : vector<1x16x128xbf16> to vector<16x128xbf16>
    %43 = vector.shape_cast %39 : vector<16x128xbf16> to vector<1x16x128xbf16>
    tpu.vector_store %arg8[%40, %c0_21, %c0_22], %43 {strides = array<i32>} : memref<8x16x128xbf16, #tpu.memory_space<vmem>>, vector<1x16x128xbf16>,
    %c1_i32 = arith.constant 1 : i32
    %c16_i32_23 = arith.constant 16 : i32
    %44 = arith.muli %c1_i32, %c16_i32_23 : i32
    %45 = tpu.assume_multiple %44, 16 : i32
    %46 = arith.index_cast %45 : i32 to index
    %c0_24 = arith.constant 0 : index
    %47 = vector.load %arg11[%46, %c0_24] : memref<128x512xf32, #tpu.memory_space<vmem>>, vector<16x512xf32>
    %48 = arith.truncf %38 : vector<16x128xf32> to vector<16x128xbf16>
    %cst_25 = arith.constant dense<0.000000e+00> : vector<16x512xf32>
    %49 = tpu.matmul %48, %11, %cst_25 {dimension_numbers = #tpu.dot_dimension_numbers<[1], [0], [0], [1], [0, 0, 1, 1], [], []>} : vector<16x128xbf16>, vector<128x512xbf16>, vector<16x512xf32> -> vector<16x512xf32>
    %50 = arith.addf %47, %49 : vector<16x512xf32>
    %51 = vector.extract_strided_slice %50 {offsets = [0, 0], sizes = [16, 384], strides = [1, 1]} : vector<16x512xf32> to vector<16x384xf32>
    %cst_26 = arith.constant 5.000000e-01 : f32
    %52 = vector.broadcast %cst_26 : f32 to vector<16x384xf32>
    %53 = arith.mulf %52, %51 : vector<16x384xf32>
    %54 = math.tanh %53 : vector<16x384xf32>
    %cst_27 = arith.constant 5.000000e-01 : f32
    %55 = vector.broadcast %cst_27 : f32 to vector<16x384xf32>
    %56 = arith.mulf %55, %54 : vector<16x384xf32>
    %cst_28 = arith.constant 5.000000e-01 : f32
    %57 = vector.broadcast %cst_28 : f32 to vector<16x384xf32>
    %58 = arith.addf %56, %57 : vector<16x384xf32>
    %59 = vector.extract_strided_slice %58 {offsets = [0, 0], sizes = [16, 128], strides = [1, 1]} : vector<16x384xf32> to vector<16x128xf32>
    %60 = vector.extract_strided_slice %58 {offsets = [0, 128], sizes = [16, 128], strides = [1, 1]} : vector<16x384xf32> to vector<16x128xf32>
    %61 = vector.extract_strided_slice %58 {offsets = [0, 256], sizes = [16, 128], strides = [1, 1]} : vector<16x384xf32> to vector<16x128xf32>
    %62 = vector.extract_strided_slice %50 {offsets = [0, 384], sizes = [16, 128], strides = [1, 1]} : vector<16x512xf32> to vector<16x128xf32>
    %63 = math.tanh %62 : vector<16x128xf32>
    %64 = arith.mulf %60, %36 : vector<16x128xf32>
    %65 = arith.mulf %59, %63 : vector<16x128xf32>
    %66 = arith.addf %64, %65 : vector<16x128xf32>
    %67 = math.tanh %66 : vector<16x128xf32>
    %68 = arith.mulf %61, %67 : vector<16x128xf32>
    %69 = arith.truncf %68 : vector<16x128xf32> to vector<16x128xbf16>
    %70 = arith.index_cast %c1_i32 : i32 to index
    %c0_29 = arith.constant 0 : index
    %c0_30 = arith.constant 0 : index
    %71 = vector.load %arg8[%70, %c0_29, %c0_30] : memref<8x16x128xbf16, #tpu.memory_space<vmem>>, vector<1x16x128xbf16>
    %72 = vector.shape_cast %71 : vector<1x16x128xbf16> to vector<16x128xbf16>
    %73 = vector.shape_cast %69 : vector<16x128xbf16> to vector<1x16x128xbf16>
    tpu.vector_store %arg8[%70, %c0_29, %c0_30], %73 {strides = array<i32>} : memref<8x16x128xbf16, #tpu.memory_space<vmem>>, vector<1x16x128xbf16>,
    %c2_i32 = arith.constant 2 : i32
    %c16_i32_31 = arith.constant 16 : i32
    %74 = arith.muli %c2_i32, %c16_i32_31 : i32
    %75 = tpu.assume_multiple %74, 16 : i32
    %76 = arith.index_cast %75 : i32 to index
    %c0_32 = arith.constant 0 : index
    %77 = vector.load %arg11[%76, %c0_32] : memref<128x512xf32, #tpu.memory_space<vmem>>, vector<16x512xf32>
    %78 = arith.truncf %68 : vector<16x128xf32> to vector<16x128xbf16>
    %cst_33 = arith.constant dense<0.000000e+00> : vector<16x512xf32>
    %79 = tpu.matmul %78, %11, %cst_33 {dimension_numbers = #tpu.dot_dimension_numbers<[1], [0], [0], [1], [0, 0, 1, 1], [], []>} : vector<16x128xbf16>, vector<128x512xbf16>, vector<16x512xf32> -> vector<16x512xf32>
    %80 = arith.addf %77, %79 : vector<16x512xf32>
    %81 = vector.extract_strided_slice %80 {offsets = [0, 0], sizes = [16, 384], strides = [1, 1]} : vector<16x512xf32> to vector<16x384xf32>
    %cst_34 = arith.constant 5.000000e-01 : f32
    %82 = vector.broadcast %cst_34 : f32 to vector<16x384xf32>
    %83 = arith.mulf %82, %81 : vector<16x384xf32>
    %84 = math.tanh %83 : vector<16x384xf32>
    %cst_35 = arith.constant 5.000000e-01 : f32
    %85 = vector.broadcast %cst_35 : f32 to vector<16x384xf32>
    %86 = arith.mulf %85, %84 : vector<16x384xf32>
    %cst_36 = arith.constant 5.000000e-01 : f32
    %87 = vector.broadcast %cst_36 : f32 to vector<16x384xf32>
    %88 = arith.addf %86, %87 : vector<16x384xf32>
    %89 = vector.extract_strided_slice %88 {offsets = [0, 0], sizes = [16, 128], strides = [1, 1]} : vector<16x384xf32> to vector<16x128xf32>
    %90 = vector.extract_strided_slice %88 {offsets = [0, 128], sizes = [16, 128], strides = [1, 1]} : vector<16x384xf32> to vector<16x128xf32>
    %91 = vector.extract_strided_slice %88 {offsets = [0, 256], sizes = [16, 128], strides = [1, 1]} : vector<16x384xf32> to vector<16x128xf32>
    %92 = vector.extract_strided_slice %80 {offsets = [0, 384], sizes = [16, 128], strides = [1, 1]} : vector<16x512xf32> to vector<16x128xf32>
    %93 = math.tanh %92 : vector<16x128xf32>
    %94 = arith.mulf %90, %66 : vector<16x128xf32>
    %95 = arith.mulf %89, %93 : vector<16x128xf32>
    %96 = arith.addf %94, %95 : vector<16x128xf32>
    %97 = math.tanh %96 : vector<16x128xf32>
    %98 = arith.mulf %91, %97 : vector<16x128xf32>
    %99 = arith.truncf %98 : vector<16x128xf32> to vector<16x128xbf16>
    %100 = arith.index_cast %c2_i32 : i32 to index
    %c0_37 = arith.constant 0 : index
    %c0_38 = arith.constant 0 : index
    %101 = vector.load %arg8[%100, %c0_37, %c0_38] : memref<8x16x128xbf16, #tpu.memory_space<vmem>>, vector<1x16x128xbf16>
    %102 = vector.shape_cast %101 : vector<1x16x128xbf16> to vector<16x128xbf16>
    %103 = vector.shape_cast %99 : vector<16x128xbf16> to vector<1x16x128xbf16>
    tpu.vector_store %arg8[%100, %c0_37, %c0_38], %103 {strides = array<i32>} : memref<8x16x128xbf16, #tpu.memory_space<vmem>>, vector<1x16x128xbf16>,
    %c3_i32 = arith.constant 3 : i32
    %c16_i32_39 = arith.constant 16 : i32
    %104 = arith.muli %c3_i32, %c16_i32_39 : i32
    %105 = tpu.assume_multiple %104, 16 : i32
    %106 = arith.index_cast %105 : i32 to index
    %c0_40 = arith.constant 0 : index
    %107 = vector.load %arg11[%106, %c0_40] : memref<128x512xf32, #tpu.memory_space<vmem>>, vector<16x512xf32>
    %108 = arith.truncf %98 : vector<16x128xf32> to vector<16x128xbf16>
    %cst_41 = arith.constant dense<0.000000e+00> : vector<16x512xf32>
    %109 = tpu.matmul %108, %11, %cst_41 {dimension_numbers = #tpu.dot_dimension_numbers<[1], [0], [0], [1], [0, 0, 1, 1], [], []>} : vector<16x128xbf16>, vector<128x512xbf16>, vector<16x512xf32> -> vector<16x512xf32>
    %110 = arith.addf %107, %109 : vector<16x512xf32>
    %111 = vector.extract_strided_slice %110 {offsets = [0, 0], sizes = [16, 384], strides = [1, 1]} : vector<16x512xf32> to vector<16x384xf32>
    %cst_42 = arith.constant 5.000000e-01 : f32
    %112 = vector.broadcast %cst_42 : f32 to vector<16x384xf32>
    %113 = arith.mulf %112, %111 : vector<16x384xf32>
    %114 = math.tanh %113 : vector<16x384xf32>
    %cst_43 = arith.constant 5.000000e-01 : f32
    %115 = vector.broadcast %cst_43 : f32 to vector<16x384xf32>
    %116 = arith.mulf %115, %114 : vector<16x384xf32>
    %cst_44 = arith.constant 5.000000e-01 : f32
    %117 = vector.broadcast %cst_44 : f32 to vector<16x384xf32>
    %118 = arith.addf %116, %117 : vector<16x384xf32>
    %119 = vector.extract_strided_slice %118 {offsets = [0, 0], sizes = [16, 128], strides = [1, 1]} : vector<16x384xf32> to vector<16x128xf32>
    %120 = vector.extract_strided_slice %118 {offsets = [0, 128], sizes = [16, 128], strides = [1, 1]} : vector<16x384xf32> to vector<16x128xf32>
    %121 = vector.extract_strided_slice %118 {offsets = [0, 256], sizes = [16, 128], strides = [1, 1]} : vector<16x384xf32> to vector<16x128xf32>
    %122 = vector.extract_strided_slice %110 {offsets = [0, 384], sizes = [16, 128], strides = [1, 1]} : vector<16x512xf32> to vector<16x128xf32>
    %123 = math.tanh %122 : vector<16x128xf32>
    %124 = arith.mulf %120, %96 : vector<16x128xf32>
    %125 = arith.mulf %119, %123 : vector<16x128xf32>
    %126 = arith.addf %124, %125 : vector<16x128xf32>
    %127 = math.tanh %126 : vector<16x128xf32>
    %128 = arith.mulf %121, %127 : vector<16x128xf32>
    %129 = arith.truncf %128 : vector<16x128xf32> to vector<16x128xbf16>
    %130 = arith.index_cast %c3_i32 : i32 to index
    %c0_45 = arith.constant 0 : index
    %c0_46 = arith.constant 0 : index
    %131 = vector.load %arg8[%130, %c0_45, %c0_46] : memref<8x16x128xbf16, #tpu.memory_space<vmem>>, vector<1x16x128xbf16>
    %132 = vector.shape_cast %131 : vector<1x16x128xbf16> to vector<16x128xbf16>
    %133 = vector.shape_cast %129 : vector<16x128xbf16> to vector<1x16x128xbf16>
    tpu.vector_store %arg8[%130, %c0_45, %c0_46], %133 {strides = array<i32>} : memref<8x16x128xbf16, #tpu.memory_space<vmem>>, vector<1x16x128xbf16>,
    %c4_i32 = arith.constant 4 : i32
    %c16_i32_47 = arith.constant 16 : i32
    %134 = arith.muli %c4_i32, %c16_i32_47 : i32
    %135 = tpu.assume_multiple %134, 16 : i32
    %136 = arith.index_cast %135 : i32 to index
    %c0_48 = arith.constant 0 : index
    %137 = vector.load %arg11[%136, %c0_48] : memref<128x512xf32, #tpu.memory_space<vmem>>, vector<16x512xf32>
    %138 = arith.truncf %128 : vector<16x128xf32> to vector<16x128xbf16>
    %cst_49 = arith.constant dense<0.000000e+00> : vector<16x512xf32>
    %139 = tpu.matmul %138, %11, %cst_49 {dimension_numbers = #tpu.dot_dimension_numbers<[1], [0], [0], [1], [0, 0, 1, 1], [], []>} : vector<16x128xbf16>, vector<128x512xbf16>, vector<16x512xf32> -> vector<16x512xf32>
    %140 = arith.addf %137, %139 : vector<16x512xf32>
    %141 = vector.extract_strided_slice %140 {offsets = [0, 0], sizes = [16, 384], strides = [1, 1]} : vector<16x512xf32> to vector<16x384xf32>
    %cst_50 = arith.constant 5.000000e-01 : f32
    %142 = vector.broadcast %cst_50 : f32 to vector<16x384xf32>
    %143 = arith.mulf %142, %141 : vector<16x384xf32>
    %144 = math.tanh %143 : vector<16x384xf32>
    %cst_51 = arith.constant 5.000000e-01 : f32
    %145 = vector.broadcast %cst_51 : f32 to vector<16x384xf32>
    %146 = arith.mulf %145, %144 : vector<16x384xf32>
    %cst_52 = arith.constant 5.000000e-01 : f32
    %147 = vector.broadcast %cst_52 : f32 to vector<16x384xf32>
    %148 = arith.addf %146, %147 : vector<16x384xf32>
    %149 = vector.extract_strided_slice %148 {offsets = [0, 0], sizes = [16, 128], strides = [1, 1]} : vector<16x384xf32> to vector<16x128xf32>
    %150 = vector.extract_strided_slice %148 {offsets = [0, 128], sizes = [16, 128], strides = [1, 1]} : vector<16x384xf32> to vector<16x128xf32>
    %151 = vector.extract_strided_slice %148 {offsets = [0, 256], sizes = [16, 128], strides = [1, 1]} : vector<16x384xf32> to vector<16x128xf32>
    %152 = vector.extract_strided_slice %140 {offsets = [0, 384], sizes = [16, 128], strides = [1, 1]} : vector<16x512xf32> to vector<16x128xf32>
    %153 = math.tanh %152 : vector<16x128xf32>
    %154 = arith.mulf %150, %126 : vector<16x128xf32>
    %155 = arith.mulf %149, %153 : vector<16x128xf32>
    %156 = arith.addf %154, %155 : vector<16x128xf32>
    %157 = math.tanh %156 : vector<16x128xf32>
    %158 = arith.mulf %151, %157 : vector<16x128xf32>
    %159 = arith.truncf %158 : vector<16x128xf32> to vector<16x128xbf16>
    %160 = arith.index_cast %c4_i32 : i32 to index
    %c0_53 = arith.constant 0 : index
    %c0_54 = arith.constant 0 : index
    %161 = vector.load %arg8[%160, %c0_53, %c0_54] : memref<8x16x128xbf16, #tpu.memory_space<vmem>>, vector<1x16x128xbf16>
    %162 = vector.shape_cast %161 : vector<1x16x128xbf16> to vector<16x128xbf16>
    %163 = vector.shape_cast %159 : vector<16x128xbf16> to vector<1x16x128xbf16>
    tpu.vector_store %arg8[%160, %c0_53, %c0_54], %163 {strides = array<i32>} : memref<8x16x128xbf16, #tpu.memory_space<vmem>>, vector<1x16x128xbf16>,
    %c5_i32 = arith.constant 5 : i32
    %c16_i32_55 = arith.constant 16 : i32
    %164 = arith.muli %c5_i32, %c16_i32_55 : i32
    %165 = tpu.assume_multiple %164, 16 : i32
    %166 = arith.index_cast %165 : i32 to index
    %c0_56 = arith.constant 0 : index
    %167 = vector.load %arg11[%166, %c0_56] : memref<128x512xf32, #tpu.memory_space<vmem>>, vector<16x512xf32>
    %168 = arith.truncf %158 : vector<16x128xf32> to vector<16x128xbf16>
    %cst_57 = arith.constant dense<0.000000e+00> : vector<16x512xf32>
    %169 = tpu.matmul %168, %11, %cst_57 {dimension_numbers = #tpu.dot_dimension_numbers<[1], [0], [0], [1], [0, 0, 1, 1], [], []>} : vector<16x128xbf16>, vector<128x512xbf16>, vector<16x512xf32> -> vector<16x512xf32>
    %170 = arith.addf %167, %169 : vector<16x512xf32>
    %171 = vector.extract_strided_slice %170 {offsets = [0, 0], sizes = [16, 384], strides = [1, 1]} : vector<16x512xf32> to vector<16x384xf32>
    %cst_58 = arith.constant 5.000000e-01 : f32
    %172 = vector.broadcast %cst_58 : f32 to vector<16x384xf32>
    %173 = arith.mulf %172, %171 : vector<16x384xf32>
    %174 = math.tanh %173 : vector<16x384xf32>
    %cst_59 = arith.constant 5.000000e-01 : f32
    %175 = vector.broadcast %cst_59 : f32 to vector<16x384xf32>
    %176 = arith.mulf %175, %174 : vector<16x384xf32>
    %cst_60 = arith.constant 5.000000e-01 : f32
    %177 = vector.broadcast %cst_60 : f32 to vector<16x384xf32>
    %178 = arith.addf %176, %177 : vector<16x384xf32>
    %179 = vector.extract_strided_slice %178 {offsets = [0, 0], sizes = [16, 128], strides = [1, 1]} : vector<16x384xf32> to vector<16x128xf32>
    %180 = vector.extract_strided_slice %178 {offsets = [0, 128], sizes = [16, 128], strides = [1, 1]} : vector<16x384xf32> to vector<16x128xf32>
    %181 = vector.extract_strided_slice %178 {offsets = [0, 256], sizes = [16, 128], strides = [1, 1]} : vector<16x384xf32> to vector<16x128xf32>
    %182 = vector.extract_strided_slice %170 {offsets = [0, 384], sizes = [16, 128], strides = [1, 1]} : vector<16x512xf32> to vector<16x128xf32>
    %183 = math.tanh %182 : vector<16x128xf32>
    %184 = arith.mulf %180, %156 : vector<16x128xf32>
    %185 = arith.mulf %179, %183 : vector<16x128xf32>
    %186 = arith.addf %184, %185 : vector<16x128xf32>
    %187 = math.tanh %186 : vector<16x128xf32>
    %188 = arith.mulf %181, %187 : vector<16x128xf32>
    %189 = arith.truncf %188 : vector<16x128xf32> to vector<16x128xbf16>
    %190 = arith.index_cast %c5_i32 : i32 to index
    %c0_61 = arith.constant 0 : index
    %c0_62 = arith.constant 0 : index
    %191 = vector.load %arg8[%190, %c0_61, %c0_62] : memref<8x16x128xbf16, #tpu.memory_space<vmem>>, vector<1x16x128xbf16>
    %192 = vector.shape_cast %191 : vector<1x16x128xbf16> to vector<16x128xbf16>
    %193 = vector.shape_cast %189 : vector<16x128xbf16> to vector<1x16x128xbf16>
    tpu.vector_store %arg8[%190, %c0_61, %c0_62], %193 {strides = array<i32>} : memref<8x16x128xbf16, #tpu.memory_space<vmem>>, vector<1x16x128xbf16>,
    %c6_i32 = arith.constant 6 : i32
    %c16_i32_63 = arith.constant 16 : i32
    %194 = arith.muli %c6_i32, %c16_i32_63 : i32
    %195 = tpu.assume_multiple %194, 16 : i32
    %196 = arith.index_cast %195 : i32 to index
    %c0_64 = arith.constant 0 : index
    %197 = vector.load %arg11[%196, %c0_64] : memref<128x512xf32, #tpu.memory_space<vmem>>, vector<16x512xf32>
    %198 = arith.truncf %188 : vector<16x128xf32> to vector<16x128xbf16>
    %cst_65 = arith.constant dense<0.000000e+00> : vector<16x512xf32>
    %199 = tpu.matmul %198, %11, %cst_65 {dimension_numbers = #tpu.dot_dimension_numbers<[1], [0], [0], [1], [0, 0, 1, 1], [], []>} : vector<16x128xbf16>, vector<128x512xbf16>, vector<16x512xf32> -> vector<16x512xf32>
    %200 = arith.addf %197, %199 : vector<16x512xf32>
    %201 = vector.extract_strided_slice %200 {offsets = [0, 0], sizes = [16, 384], strides = [1, 1]} : vector<16x512xf32> to vector<16x384xf32>
    %cst_66 = arith.constant 5.000000e-01 : f32
    %202 = vector.broadcast %cst_66 : f32 to vector<16x384xf32>
    %203 = arith.mulf %202, %201 : vector<16x384xf32>
    %204 = math.tanh %203 : vector<16x384xf32>
    %cst_67 = arith.constant 5.000000e-01 : f32
    %205 = vector.broadcast %cst_67 : f32 to vector<16x384xf32>
    %206 = arith.mulf %205, %204 : vector<16x384xf32>
    %cst_68 = arith.constant 5.000000e-01 : f32
    %207 = vector.broadcast %cst_68 : f32 to vector<16x384xf32>
    %208 = arith.addf %206, %207 : vector<16x384xf32>
    %209 = vector.extract_strided_slice %208 {offsets = [0, 0], sizes = [16, 128], strides = [1, 1]} : vector<16x384xf32> to vector<16x128xf32>
    %210 = vector.extract_strided_slice %208 {offsets = [0, 128], sizes = [16, 128], strides = [1, 1]} : vector<16x384xf32> to vector<16x128xf32>
    %211 = vector.extract_strided_slice %208 {offsets = [0, 256], sizes = [16, 128], strides = [1, 1]} : vector<16x384xf32> to vector<16x128xf32>
    %212 = vector.extract_strided_slice %200 {offsets = [0, 384], sizes = [16, 128], strides = [1, 1]} : vector<16x512xf32> to vector<16x128xf32>
    %213 = math.tanh %212 : vector<16x128xf32>
    %214 = arith.mulf %210, %186 : vector<16x128xf32>
    %215 = arith.mulf %209, %213 : vector<16x128xf32>
    %216 = arith.addf %214, %215 : vector<16x128xf32>
    %217 = math.tanh %216 : vector<16x128xf32>
    %218 = arith.mulf %211, %217 : vector<16x128xf32>
    %219 = arith.truncf %218 : vector<16x128xf32> to vector<16x128xbf16>
    %220 = arith.index_cast %c6_i32 : i32 to index
    %c0_69 = arith.constant 0 : index
    %c0_70 = arith.constant 0 : index
    %221 = vector.load %arg8[%220, %c0_69, %c0_70] : memref<8x16x128xbf16, #tpu.memory_space<vmem>>, vector<1x16x128xbf16>
    %222 = vector.shape_cast %221 : vector<1x16x128xbf16> to vector<16x128xbf16>
    %223 = vector.shape_cast %219 : vector<16x128xbf16> to vector<1x16x128xbf16>
    tpu.vector_store %arg8[%220, %c0_69, %c0_70], %223 {strides = array<i32>} : memref<8x16x128xbf16, #tpu.memory_space<vmem>>, vector<1x16x128xbf16>,
    %c7_i32 = arith.constant 7 : i32
    %c16_i32_71 = arith.constant 16 : i32
    %224 = arith.muli %c7_i32, %c16_i32_71 : i32
    %225 = tpu.assume_multiple %224, 16 : i32
    %226 = arith.index_cast %225 : i32 to index
    %c0_72 = arith.constant 0 : index
    %227 = vector.load %arg11[%226, %c0_72] : memref<128x512xf32, #tpu.memory_space<vmem>>, vector<16x512xf32>
    %228 = arith.truncf %218 : vector<16x128xf32> to vector<16x128xbf16>
    %cst_73 = arith.constant dense<0.000000e+00> : vector<16x512xf32>
    %229 = tpu.matmul %228, %11, %cst_73 {dimension_numbers = #tpu.dot_dimension_numbers<[1], [0], [0], [1], [0, 0, 1, 1], [], []>} : vector<16x128xbf16>, vector<128x512xbf16>, vector<16x512xf32> -> vector<16x512xf32>
    %230 = arith.addf %227, %229 : vector<16x512xf32>
    %231 = vector.extract_strided_slice %230 {offsets = [0, 0], sizes = [16, 384], strides = [1, 1]} : vector<16x512xf32> to vector<16x384xf32>
    %cst_74 = arith.constant 5.000000e-01 : f32
    %232 = vector.broadcast %cst_74 : f32 to vector<16x384xf32>
    %233 = arith.mulf %232, %231 : vector<16x384xf32>
    %234 = math.tanh %233 : vector<16x384xf32>
    %cst_75 = arith.constant 5.000000e-01 : f32
    %235 = vector.broadcast %cst_75 : f32 to vector<16x384xf32>
    %236 = arith.mulf %235, %234 : vector<16x384xf32>
    %cst_76 = arith.constant 5.000000e-01 : f32
    %237 = vector.broadcast %cst_76 : f32 to vector<16x384xf32>
    %238 = arith.addf %236, %237 : vector<16x384xf32>
    %239 = vector.extract_strided_slice %238 {offsets = [0, 0], sizes = [16, 128], strides = [1, 1]} : vector<16x384xf32> to vector<16x128xf32>
    %240 = vector.extract_strided_slice %238 {offsets = [0, 128], sizes = [16, 128], strides = [1, 1]} : vector<16x384xf32> to vector<16x128xf32>
    %241 = vector.extract_strided_slice %238 {offsets = [0, 256], sizes = [16, 128], strides = [1, 1]} : vector<16x384xf32> to vector<16x128xf32>
    %242 = vector.extract_strided_slice %230 {offsets = [0, 384], sizes = [16, 128], strides = [1, 1]} : vector<16x512xf32> to vector<16x128xf32>
    %243 = math.tanh %242 : vector<16x128xf32>
    %244 = arith.mulf %240, %216 : vector<16x128xf32>
    %245 = arith.mulf %239, %243 : vector<16x128xf32>
    %246 = arith.addf %244, %245 : vector<16x128xf32>
    %247 = math.tanh %246 : vector<16x128xf32>
    %248 = arith.mulf %241, %247 : vector<16x128xf32>
    %249 = arith.truncf %248 : vector<16x128xf32> to vector<16x128xbf16>
    %250 = arith.index_cast %c7_i32 : i32 to index
    %c0_77 = arith.constant 0 : index
    %c0_78 = arith.constant 0 : index
    %251 = vector.load %arg8[%250, %c0_77, %c0_78] : memref<8x16x128xbf16, #tpu.memory_space<vmem>>, vector<1x16x128xbf16>
    %252 = vector.shape_cast %251 : vector<1x16x128xbf16> to vector<16x128xbf16>
    %253 = vector.shape_cast %249 : vector<16x128xbf16> to vector<1x16x128xbf16>
    tpu.vector_store %arg8[%250, %c0_77, %c0_78], %253 {strides = array<i32>} : memref<8x16x128xbf16, #tpu.memory_space<vmem>>, vector<1x16x128xbf16>,
    %c8_i32 = arith.constant 8 : i32
    %c0_79 = arith.constant 0 : index
    %c0_80 = arith.constant 0 : index
    %254 = vector.load %arg9[%c0_79, %c0_80] : memref<16x128xf32, #tpu.memory_space<vmem>>, vector<16x128xf32>
    tpu.vector_store %arg9[%c0_79, %c0_80], %248 {strides = array<i32>} : memref<16x128xf32, #tpu.memory_space<vmem>>, vector<16x128xf32>,
    %c0_81 = arith.constant 0 : index
    %c0_82 = arith.constant 0 : index
    %255 = vector.load %arg10[%c0_81, %c0_82] : memref<16x128xf32, #tpu.memory_space<vmem>>, vector<16x128xf32>
    tpu.vector_store %arg10[%c0_81, %c0_82], %246 {strides = array<i32>} : memref<16x128xf32, #tpu.memory_space<vmem>>, vector<16x128xf32>,
    return
  }
  func.func @transform_0(%arg0: i32, %arg1: i32) -> (i32, i32, i32) {
    %c0_i32 = arith.constant 0 : i32
    %c0_i32_0 = arith.constant 0 : i32
    return %arg1, %arg0, %c0_i32 : i32, i32, i32
  }
  func.func @transform_1(%arg0: i32, %arg1: i32) -> (i32, i32) {
    %c0_i32 = arith.constant 0 : i32
    %c0_i32_0 = arith.constant 0 : i32
    %c0_i32_1 = arith.constant 0 : i32
    return %c0_i32, %c0_i32_0 : i32, i32
  }
  func.func @transform_2(%arg0: i32, %arg1: i32) -> (i32, i32) {
    %c0_i32 = arith.constant 0 : i32
    %c0_i32_0 = arith.constant 0 : i32
    %c0_i32_1 = arith.constant 0 : i32
    return %c0_i32, %c0_i32_0 : i32, i32
  }
  func.func @transform_3(%arg0: i32, %arg1: i32) -> (i32, i32) {
    %c0_i32 = arith.constant 0 : i32
    %c0_i32_0 = arith.constant 0 : i32
    %c0_i32_1 = arith.constant 0 : i32
    return %c0_i32, %c0_i32_0 : i32, i32
  }
  func.func @transform_4(%arg0: i32, %arg1: i32) -> (i32, i32) {
    %c0_i32 = arith.constant 0 : i32
    %c0_i32_0 = arith.constant 0 : i32
    return %arg0, %c0_i32 : i32, i32
  }
  func.func @transform_5(%arg0: i32, %arg1: i32) -> (i32, i32) {
    %c0_i32 = arith.constant 0 : i32
    %c0_i32_0 = arith.constant 0 : i32
    return %arg0, %c0_i32 : i32, i32
  }
  func.func @transform_6(%arg0: i32, %arg1: i32) -> (i32, i32, i32) {
    %c0_i32 = arith.constant 0 : i32
    %c0_i32_0 = arith.constant 0 : i32
    return %arg1, %arg0, %c0_i32 : i32, i32, i32
  }
  func.func @transform_7(%arg0: i32, %arg1: i32) -> (i32, i32) {
    %c0_i32 = arith.constant 0 : i32
    %c0_i32_0 = arith.constant 0 : i32
    return %arg0, %c0_i32 : i32, i32
  }
  func.func @transform_8(%arg0: i32, %arg1: i32) -> (i32, i32) {
    %c0_i32 = arith.constant 0 : i32
    %c0_i32_0 = arith.constant 0 : i32
    return %arg0, %c0_i32 : i32, i32
  }
}

module attributes {stable_mosaic.version = 11 : i64} {
  func.func @_lstm_layer_kernel(%arg0: i32, %arg1: i32, %arg2: memref<8x16x128xbf16, #tpu.memory_space<vmem>>, %arg3: memref<128x512xbf16, #tpu.memory_space<vmem>>, %arg4: memref<128x512xbf16, #tpu.memory_space<vmem>>, %arg5: memref<1x512xf32, #tpu.memory_space<vmem>>, %arg6: memref<16x128xf32, #tpu.memory_space<vmem>>, %arg7: memref<16x128xf32, #tpu.memory_space<vmem>>, %arg8: memref<8x16x128xbf16, #tpu.memory_space<vmem>>, %arg9: memref<16x128xf32, #tpu.memory_space<vmem>>, %arg10: memref<16x128xf32, #tpu.memory_space<vmem>>, %arg11: memref<128x512xf32, #tpu.memory_space<vmem>>) attributes {dimension_semantics = [#tpu.dimension_semantics<parallel>, #tpu.dimension_semantics<arbitrary>], iteration_bounds = array<i64: 1, 1>, scalar_prefetch = 0 : i64, scratch_operands = 1 : i64, tpu.core_type = #tpu.core_type<tc>, window_params = [{transform_indices = @transform_0, window_bounds = array<i64: 8, 16, 128>}, {pipeline_mode = #tpu.pipeline_mode<synchronous>, transform_indices = @transform_1, window_bounds = array<i64: 128, 512>}, {pipeline_mode = #tpu.pipeline_mode<synchronous>, transform_indices = @transform_2, window_bounds = array<i64: 128, 512>}, {pipeline_mode = #tpu.pipeline_mode<synchronous>, transform_indices = @transform_3, window_bounds = array<i64: 1, 512>}, {transform_indices = @transform_4, window_bounds = array<i64: 16, 128>}, {transform_indices = @transform_5, window_bounds = array<i64: 16, 128>}, {transform_indices = @transform_6, window_bounds = array<i64: 8, 16, 128>}, {transform_indices = @transform_7, window_bounds = array<i64: 16, 128>}, {transform_indices = @transform_8, window_bounds = array<i64: 16, 128>}]} {
    %c0_i32 = arith.constant 0 : i32
    %0 = arith.cmpi eq, %arg1, %c0_i32 : i32
    %1 = arith.extui %0 : i1 to i32
    %c0_i32_0 = arith.constant 0 : i32
    %2 = arith.cmpi ne, %1, %c0_i32_0 : i32
    scf.if %2 {
      %c0_83 = arith.constant 0 : index
      %c0_84 = arith.constant 0 : index
      %256 = vector.load %arg6[%c0_83, %c0_84] : memref<16x128xf32, #tpu.memory_space<vmem>>, vector<16x128xf32>
      %c0_85 = arith.constant 0 : index
      %c0_86 = arith.constant 0 : index
      %257 = vector.load %arg9[%c0_85, %c0_86] : memref<16x128xf32, #tpu.memory_space<vmem>>, vector<16x128xf32>
      tpu.vector_store %arg9[%c0_85, %c0_86], %256 {strides = array<i32>} : memref<16x128xf32, #tpu.memory_space<vmem>>, vector<16x128xf32>,
      %c0_87 = arith.constant 0 : index
      %c0_88 = arith.constant 0 : index
      %258 = vector.load %arg7[%c0_87, %c0_88] : memref<16x128xf32, #tpu.memory_space<vmem>>, vector<16x128xf32>
      %c0_89 = arith.constant 0 : index
      %c0_90 = arith.constant 0 : index
      %259 = vector.load %arg10[%c0_89, %c0_90] : memref<16x128xf32, #tpu.memory_space<vmem>>, vector<16x128xf32>
      tpu.vector_store %arg10[%c0_89, %c0_90], %258 {strides = array<i32>} : memref<16x128xf32, #tpu.memory_space<vmem>>, vector<16x128xf32>,
    } else {
    }
    %c0 = arith.constant 0 : index
    %c0_1 = arith.constant 0 : index
    %c0_2 = arith.constant 0 : index
    %3 = vector.load %arg2[%c0, %c0_1, %c0_2] : memref<8x16x128xbf16, #tpu.memory_space<vmem>>, vector<8x16x128xbf16>
    %4 = vector.shape_cast %3 : vector<8x16x128xbf16> to vector<128x128xbf16>
    %c0_3 = arith.constant 0 : index
    %c0_4 = arith.constant 0 : index
    %5 = vector.load %arg3[%c0_3, %c0_4] : memref<128x512xbf16, #tpu.memory_space<vmem>>, vector<128x512xbf16>
    %cst = arith.constant dense<0.000000e+00> : vector<128x512xf32>
    %6 = tpu.matmul %4, %5, %cst {dimension_numbers = #tpu.dot_dimension_numbers<[1], [0], [0], [1], [0, 0, 1, 1], [], []>} : vector<128x128xbf16>, vector<128x512xbf16>, vector<128x512xf32> -> vector<128x512xf32>
    %c0_5 = arith.constant 0 : index
    %c0_6 = arith.constant 0 : index
    %7 = vector.load %arg5[%c0_5, %c0_6] : memref<1x512xf32, #tpu.memory_space<vmem>>, vector<1x512xf32>
    %8 = vector.broadcast %7 : vector<1x512xf32> to vector<128x512xf32>
    %9 = arith.addf %6, %8 : vector<128x512xf32>
    %c0_7 = arith.constant 0 : index
    %c0_8 = arith.constant 0 : index
    %10 = vector.load %arg11[%c0_7, %c0_8] : memref<128x512xf32, #tpu.memory_space<vmem>>, vector<128x512xf32>
    tpu.vector_store %arg11[%c0_7, %c0_8], %9 {strides = array<i32>} : memref<128x512xf32, #tpu.memory_space<vmem>>, vector<128x512xf32>,
    %c0_9 = arith.constant 0 : index
    %c0_10 = arith.constant 0 : index
    %11 = vector.load %arg4[%c0_9, %c0_10] : memref<128x512xbf16, #tpu.memory_space<vmem>>, vector<128x512xbf16>
    %c0_11 = arith.constant 0 : index
    %c0_12 = arith.constant 0 : index
    %12 = vector.load %arg9[%c0_11, %c0_12] : memref<16x128xf32, #tpu.memory_space<vmem>>, vector<16x128xf32>
    %c0_13 = arith.constant 0 : index
    %c0_14 = arith.constant 0 : index
    %13 = vector.load %arg10[%c0_13, %c0_14] : memref<16x128xf32, #tpu.memory_space<vmem>>, vector<16x128xf32>
    %c0_i32_15 = arith.constant 0 : i32
    %c16_i32 = arith.constant 16 : i32
    %14 = arith.muli %c0_i32_15, %c16_i32 : i32
    %15 = tpu.assume_multiple %14, 16 : i32
    %16 = arith.index_cast %15 : i32 to index
    %c0_16 = arith.constant 0 : index
    %17 = vector.load %arg11[%16, %c0_16] : memref<128x512xf32, #tpu.memory_space<vmem>>, vector<16x512xf32>
    %18 = arith.truncf %12 : vector<16x128xf32> to vector<16x128xbf16>
    %cst_17 = arith.constant dense<0.000000e+00> : vector<16x512xf32>
    %19 = tpu.matmul %18, %11, %cst_17 {dimension_numbers = #tpu.dot_dimension_numbers<[1], [0], [0], [1], [0, 0, 1, 1], [], []>} : vector<16x128xbf16>, vector<128x512xbf16>, vector<16x512xf32> -> vector<16x512xf32>
    %20 = arith.addf %17, %19 : vector<16x512xf32>
    %21 = vector.extract_strided_slice %20 {offsets = [0, 0], sizes = [16, 384], strides = [1, 1]} : vector<16x512xf32> to vector<16x384xf32>
    %cst_18 = arith.constant 5.000000e-01 : f32
    %22 = vector.broadcast %cst_18 : f32 to vector<16x384xf32>
    %23 = arith.mulf %22, %21 : vector<16x384xf32>
    %24 = math.tanh %23 : vector<16x384xf32>
    %cst_19 = arith.constant 5.000000e-01 : f32
    %25 = vector.broadcast %cst_19 : f32 to vector<16x384xf32>
    %26 = arith.mulf %25, %24 : vector<16x384xf32>
    %cst_20 = arith.constant 5.000000e-01 : f32
    %27 = vector.broadcast %cst_20 : f32 to vector<16x384xf32>
    %28 = arith.addf %26, %27 : vector<16x384xf32>
    %29 = vector.extract_strided_slice %28 {offsets = [0, 0], sizes = [16, 128], strides = [1, 1]} : vector<16x384xf32> to vector<16x128xf32>
    %30 = vector.extract_strided_slice %28 {offsets = [0, 128], sizes = [16, 128], strides = [1, 1]} : vector<16x384xf32> to vector<16x128xf32>
    %31 = vector.extract_strided_slice %28 {offsets = [0, 256], sizes = [16, 128], strides = [1, 1]} : vector<16x384xf32> to vector<16x128xf32>
    %32 = vector.extract_strided_slice %20 {offsets = [0, 384], sizes = [16, 128], strides = [1, 1]} : vector<16x512xf32> to vector<16x128xf32>
    %33 = math.tanh %32 : vector<16x128xf32>
    %34 = arith.mulf %30, %13 : vector<16x128xf32>
    %35 = arith.mulf %29, %33 : vector<16x128xf32>
    %36 = arith.addf %34, %35 : vector<16x128xf32>
    %37 = math.tanh %36 : vector<16x128xf32>
    %38 = arith.mulf %31, %37 : vector<16x128xf32>
    %39 = arith.truncf %38 : vector<16x128xf32> to vector<16x128xbf16>
    %40 = arith.index_cast %c0_i32_15 : i32 to index
    %c0_21 = arith.constant 0 : index
    %c0_22 = arith.constant 0 : index
    %41 = vector.load %arg8[%40, %c0_21, %c0_22] : memref<8x16x128xbf16, #tpu.memory_space<vmem>>, vector<1x16x128xbf16>
    %42 = vector.shape_cast %41 : vector<1x16x128xbf16> to vector<16x128xbf16>
    %43 = vector.shape_cast %39 : vector<16x128xbf16> to vector<1x16x128xbf16>
    tpu.vector_store %arg8[%40, %c0_21, %c0_22], %43 {strides = array<i32>} : memref<8x16x128xbf16, #tpu.memory_space<vmem>>, vector<1x16x128xbf16>,
    %c1_i32 = arith.constant 1 : i32
    %c16_i32_23 = arith.constant 16 : i32
    %44 = arith.muli %c1_i32, %c16_i32_23 : i32
    %45 = tpu.assume_multiple %44, 16 : i32
    %46 = arith.index_cast %45 : i32 to index
    %c0_24 = arith.constant 0 : index
    %47 = vector.load %arg11[%46, %c0_24] : memref<128x512xf32, #tpu.memory_space<vmem>>, vector<16x512xf32>
    %48 = arith.truncf %38 : vector<16x128xf32> to vector<16x128xbf16>
    %cst_25 = arith.constant dense<0.000000e+00> : vector<16x512xf32>
    %49 = tpu.matmul %48, %11, %cst_25 {dimension_numbers = #tpu.dot_dimension_numbers<[1], [0], [0], [1], [0, 0, 1, 1], [], []>} : vector<16x128xbf16>, vector<128x512xbf16>, vector<16x512xf32> -> vector<16x512xf32>
    %50 = arith.addf %47, %49 : vector<16x512xf32>
    %51 = vector.extract_strided_slice %50 {offsets = [0, 0], sizes = [16, 384], strides = [1, 1]} : vector<16x512xf32> to vector<16x384xf32>
    %cst_26 = arith.constant 5.000000e-01 : f32
    %52 = vector.broadcast %cst_26 : f32 to vector<16x384xf32>
    %53 = arith.mulf %52, %51 : vector<16x384xf32>
    %54 = math.tanh %53 : vector<16x384xf32>
    %cst_27 = arith.constant 5.000000e-01 : f32
    %55 = vector.broadcast %cst_27 : f32 to vector<16x384xf32>
    %56 = arith.mulf %55, %54 : vector<16x384xf32>
    %cst_28 = arith.constant 5.000000e-01 : f32
    %57 = vector.broadcast %cst_28 : f32 to vector<16x384xf32>
    %58 = arith.addf %56, %57 : vector<16x384xf32>
    %59 = vector.extract_strided_slice %58 {offsets = [0, 0], sizes = [16, 128], strides = [1, 1]} : vector<16x384xf32> to vector<16x128xf32>
    %60 = vector.extract_strided_slice %58 {offsets = [0, 128], sizes = [16, 128], strides = [1, 1]} : vector<16x384xf32> to vector<16x128xf32>
    %61 = vector.extract_strided_slice %58 {offsets = [0, 256], sizes = [16, 128], strides = [1, 1]} : vector<16x384xf32> to vector<16x128xf32>
    %62 = vector.extract_strided_slice %50 {offsets = [0, 384], sizes = [16, 128], strides = [1, 1]} : vector<16x512xf32> to vector<16x128xf32>
    %63 = math.tanh %62 : vector<16x128xf32>
    %64 = arith.mulf %60, %36 : vector<16x128xf32>
    %65 = arith.mulf %59, %63 : vector<16x128xf32>
    %66 = arith.addf %64, %65 : vector<16x128xf32>
    %67 = math.tanh %66 : vector<16x128xf32>
    %68 = arith.mulf %61, %67 : vector<16x128xf32>
    %69 = arith.truncf %68 : vector<16x128xf32> to vector<16x128xbf16>
    %70 = arith.index_cast %c1_i32 : i32 to index
    %c0_29 = arith.constant 0 : index
    %c0_30 = arith.constant 0 : index
    %71 = vector.load %arg8[%70, %c0_29, %c0_30] : memref<8x16x128xbf16, #tpu.memory_space<vmem>>, vector<1x16x128xbf16>
    %72 = vector.shape_cast %71 : vector<1x16x128xbf16> to vector<16x128xbf16>
    %73 = vector.shape_cast %69 : vector<16x128xbf16> to vector<1x16x128xbf16>
    tpu.vector_store %arg8[%70, %c0_29, %c0_30], %73 {strides = array<i32>} : memref<8x16x128xbf16, #tpu.memory_space<vmem>>, vector<1x16x128xbf16>,
    %c2_i32 = arith.constant 2 : i32
    %c16_i32_31 = arith.constant 16 : i32
    %74 = arith.muli %c2_i32, %c16_i32_31 : i32
    %75 = tpu.assume_multiple %74, 16 : i32
    %76 = arith.index_cast %75 : i32 to index
    %c0_32 = arith.constant 0 : index
    %77 = vector.load %arg11[%76, %c0_32] : memref<128x512xf32, #tpu.memory_space<vmem>>, vector<16x512xf32>
    %78 = arith.truncf %68 : vector<16x128xf32> to vector<16x128xbf16>
    %cst_33 = arith.constant dense<0.000000e+00> : vector<16x512xf32>
    %79 = tpu.matmul %78, %11, %cst_33 {dimension_numbers = #tpu.dot_dimension_numbers<[1], [0], [0], [1], [0, 0, 1, 1], [], []>} : vector<16x128xbf16>, vector<128x512xbf16>, vector<16x512xf32> -> vector<16x512xf32>
    %80 = arith.addf %77, %79 : vector<16x512xf32>
    %81 = vector.extract_strided_slice %80 {offsets = [0, 0], sizes = [16, 384], strides = [1, 1]} : vector<16x512xf32> to vector<16x384xf32>
    %cst_34 = arith.constant 5.000000e-01 : f32
    %82 = vector.broadcast %cst_34 : f32 to vector<16x384xf32>
    %83 = arith.mulf %82, %81 : vector<16x384xf32>
    %84 = math.tanh %83 : vector<16x384xf32>
    %cst_35 = arith.constant 5.000000e-01 : f32
    %85 = vector.broadcast %cst_35 : f32 to vector<16x384xf32>
    %86 = arith.mulf %85, %84 : vector<16x384xf32>
    %cst_36 = arith.constant 5.000000e-01 : f32
    %87 = vector.broadcast %cst_36 : f32 to vector<16x384xf32>
    %88 = arith.addf %86, %87 : vector<16x384xf32>
    %89 = vector.extract_strided_slice %88 {offsets = [0, 0], sizes = [16, 128], strides = [1, 1]} : vector<16x384xf32> to vector<16x128xf32>
    %90 = vector.extract_strided_slice %88 {offsets = [0, 128], sizes = [16, 128], strides = [1, 1]} : vector<16x384xf32> to vector<16x128xf32>
    %91 = vector.extract_strided_slice %88 {offsets = [0, 256], sizes = [16, 128], strides = [1, 1]} : vector<16x384xf32> to vector<16x128xf32>
    %92 = vector.extract_strided_slice %80 {offsets = [0, 384], sizes = [16, 128], strides = [1, 1]} : vector<16x512xf32> to vector<16x128xf32>
    %93 = math.tanh %92 : vector<16x128xf32>
    %94 = arith.mulf %90, %66 : vector<16x128xf32>
    %95 = arith.mulf %89, %93 : vector<16x128xf32>
    %96 = arith.addf %94, %95 : vector<16x128xf32>
    %97 = math.tanh %96 : vector<16x128xf32>
    %98 = arith.mulf %91, %97 : vector<16x128xf32>
    %99 = arith.truncf %98 : vector<16x128xf32> to vector<16x128xbf16>
    %100 = arith.index_cast %c2_i32 : i32 to index
    %c0_37 = arith.constant 0 : index
    %c0_38 = arith.constant 0 : index
    %101 = vector.load %arg8[%100, %c0_37, %c0_38] : memref<8x16x128xbf16, #tpu.memory_space<vmem>>, vector<1x16x128xbf16>
    %102 = vector.shape_cast %101 : vector<1x16x128xbf16> to vector<16x128xbf16>
    %103 = vector.shape_cast %99 : vector<16x128xbf16> to vector<1x16x128xbf16>
    tpu.vector_store %arg8[%100, %c0_37, %c0_38], %103 {strides = array<i32>} : memref<8x16x128xbf16, #tpu.memory_space<vmem>>, vector<1x16x128xbf16>,
    %c3_i32 = arith.constant 3 : i32
    %c16_i32_39 = arith.constant 16 : i32
    %104 = arith.muli %c3_i32, %c16_i32_39 : i32
    %105 = tpu.assume_multiple %104, 16 : i32
    %106 = arith.index_cast %105 : i32 to index
    %c0_40 = arith.constant 0 : index
    %107 = vector.load %arg11[%106, %c0_40] : memref<128x512xf32, #tpu.memory_space<vmem>>, vector<16x512xf32>
    %108 = arith.truncf %98 : vector<16x128xf32> to vector<16x128xbf16>
    %cst_41 = arith.constant dense<0.000000e+00> : vector<16x512xf32>
    %109 = tpu.matmul %108, %11, %cst_41 {dimension_numbers = #tpu.dot_dimension_numbers<[1], [0], [0], [1], [0, 0, 1, 1], [], []>} : vector<16x128xbf16>, vector<128x512xbf16>, vector<16x512xf32> -> vector<16x512xf32>
    %110 = arith.addf %107, %109 : vector<16x512xf32>
    %111 = vector.extract_strided_slice %110 {offsets = [0, 0], sizes = [16, 384], strides = [1, 1]} : vector<16x512xf32> to vector<16x384xf32>
    %cst_42 = arith.constant 5.000000e-01 : f32
    %112 = vector.broadcast %cst_42 : f32 to vector<16x384xf32>
    %113 = arith.mulf %112, %111 : vector<16x384xf32>
    %114 = math.tanh %113 : vector<16x384xf32>
    %cst_43 = arith.constant 5.000000e-01 : f32
    %115 = vector.broadcast %cst_43 : f32 to vector<16x384xf32>
    %116 = arith.mulf %115, %114 : vector<16x384xf32>
    %cst_44 = arith.constant 5.000000e-01 : f32
    %117 = vector.broadcast %cst_44 : f32 to vector<16x384xf32>
    %118 = arith.addf %116, %117 : vector<16x384xf32>
    %119 = vector.extract_strided_slice %118 {offsets = [0, 0], sizes = [16, 128], strides = [1, 1]} : vector<16x384xf32> to vector<16x128xf32>
    %120 = vector.extract_strided_slice %118 {offsets = [0, 128], sizes = [16, 128], strides = [1, 1]} : vector<16x384xf32> to vector<16x128xf32>
    %121 = vector.extract_strided_slice %118 {offsets = [0, 256], sizes = [16, 128], strides = [1, 1]} : vector<16x384xf32> to vector<16x128xf32>
    %122 = vector.extract_strided_slice %110 {offsets = [0, 384], sizes = [16, 128], strides = [1, 1]} : vector<16x512xf32> to vector<16x128xf32>
    %123 = math.tanh %122 : vector<16x128xf32>
    %124 = arith.mulf %120, %96 : vector<16x128xf32>
    %125 = arith.mulf %119, %123 : vector<16x128xf32>
    %126 = arith.addf %124, %125 : vector<16x128xf32>
    %127 = math.tanh %126 : vector<16x128xf32>
    %128 = arith.mulf %121, %127 : vector<16x128xf32>
    %129 = arith.truncf %128 : vector<16x128xf32> to vector<16x128xbf16>
    %130 = arith.index_cast %c3_i32 : i32 to index
    %c0_45 = arith.constant 0 : index
    %c0_46 = arith.constant 0 : index
    %131 = vector.load %arg8[%130, %c0_45, %c0_46] : memref<8x16x128xbf16, #tpu.memory_space<vmem>>, vector<1x16x128xbf16>
    %132 = vector.shape_cast %131 : vector<1x16x128xbf16> to vector<16x128xbf16>
    %133 = vector.shape_cast %129 : vector<16x128xbf16> to vector<1x16x128xbf16>
    tpu.vector_store %arg8[%130, %c0_45, %c0_46], %133 {strides = array<i32>} : memref<8x16x128xbf16, #tpu.memory_space<vmem>>, vector<1x16x128xbf16>,
    %c4_i32 = arith.constant 4 : i32
    %c16_i32_47 = arith.constant 16 : i32
    %134 = arith.muli %c4_i32, %c16_i32_47 : i32
    %135 = tpu.assume_multiple %134, 16 : i32
    %136 = arith.index_cast %135 : i32 to index
    %c0_48 = arith.constant 0 : index
    %137 = vector.load %arg11[%136, %c0_48] : memref<128x512xf32, #tpu.memory_space<vmem>>, vector<16x512xf32>
    %138 = arith.truncf %128 : vector<16x128xf32> to vector<16x128xbf16>
    %cst_49 = arith.constant dense<0.000000e+00> : vector<16x512xf32>
    %139 = tpu.matmul %138, %11, %cst_49 {dimension_numbers = #tpu.dot_dimension_numbers<[1], [0], [0], [1], [0, 0, 1, 1], [], []>} : vector<16x128xbf16>, vector<128x512xbf16>, vector<16x512xf32> -> vector<16x512xf32>
    %140 = arith.addf %137, %139 : vector<16x512xf32>
    %141 = vector.extract_strided_slice %140 {offsets = [0, 0], sizes = [16, 384], strides = [1, 1]} : vector<16x512xf32> to vector<16x384xf32>
    %cst_50 = arith.constant 5.000000e-01 : f32
    %142 = vector.broadcast %cst_50 : f32 to vector<16x384xf32>
    %143 = arith.mulf %142, %141 : vector<16x384xf32>
    %144 = math.tanh %143 : vector<16x384xf32>
    %cst_51 = arith.constant 5.000000e-01 : f32
    %145 = vector.broadcast %cst_51 : f32 to vector<16x384xf32>
    %146 = arith.mulf %145, %144 : vector<16x384xf32>
    %cst_52 = arith.constant 5.000000e-01 : f32
    %147 = vector.broadcast %cst_52 : f32 to vector<16x384xf32>
    %148 = arith.addf %146, %147 : vector<16x384xf32>
    %149 = vector.extract_strided_slice %148 {offsets = [0, 0], sizes = [16, 128], strides = [1, 1]} : vector<16x384xf32> to vector<16x128xf32>
    %150 = vector.extract_strided_slice %148 {offsets = [0, 128], sizes = [16, 128], strides = [1, 1]} : vector<16x384xf32> to vector<16x128xf32>
    %151 = vector.extract_strided_slice %148 {offsets = [0, 256], sizes = [16, 128], strides = [1, 1]} : vector<16x384xf32> to vector<16x128xf32>
    %152 = vector.extract_strided_slice %140 {offsets = [0, 384], sizes = [16, 128], strides = [1, 1]} : vector<16x512xf32> to vector<16x128xf32>
    %153 = math.tanh %152 : vector<16x128xf32>
    %154 = arith.mulf %150, %126 : vector<16x128xf32>
    %155 = arith.mulf %149, %153 : vector<16x128xf32>
    %156 = arith.addf %154, %155 : vector<16x128xf32>
    %157 = math.tanh %156 : vector<16x128xf32>
    %158 = arith.mulf %151, %157 : vector<16x128xf32>
    %159 = arith.truncf %158 : vector<16x128xf32> to vector<16x128xbf16>
    %160 = arith.index_cast %c4_i32 : i32 to index
    %c0_53 = arith.constant 0 : index
    %c0_54 = arith.constant 0 : index
    %161 = vector.load %arg8[%160, %c0_53, %c0_54] : memref<8x16x128xbf16, #tpu.memory_space<vmem>>, vector<1x16x128xbf16>
    %162 = vector.shape_cast %161 : vector<1x16x128xbf16> to vector<16x128xbf16>
    %163 = vector.shape_cast %159 : vector<16x128xbf16> to vector<1x16x128xbf16>
    tpu.vector_store %arg8[%160, %c0_53, %c0_54], %163 {strides = array<i32>} : memref<8x16x128xbf16, #tpu.memory_space<vmem>>, vector<1x16x128xbf16>,
    %c5_i32 = arith.constant 5 : i32
    %c16_i32_55 = arith.constant 16 : i32
    %164 = arith.muli %c5_i32, %c16_i32_55 : i32
    %165 = tpu.assume_multiple %164, 16 : i32
    %166 = arith.index_cast %165 : i32 to index
    %c0_56 = arith.constant 0 : index
    %167 = vector.load %arg11[%166, %c0_56] : memref<128x512xf32, #tpu.memory_space<vmem>>, vector<16x512xf32>
    %168 = arith.truncf %158 : vector<16x128xf32> to vector<16x128xbf16>
    %cst_57 = arith.constant dense<0.000000e+00> : vector<16x512xf32>
    %169 = tpu.matmul %168, %11, %cst_57 {dimension_numbers = #tpu.dot_dimension_numbers<[1], [0], [0], [1], [0, 0, 1, 1], [], []>} : vector<16x128xbf16>, vector<128x512xbf16>, vector<16x512xf32> -> vector<16x512xf32>
    %170 = arith.addf %167, %169 : vector<16x512xf32>
    %171 = vector.extract_strided_slice %170 {offsets = [0, 0], sizes = [16, 384], strides = [1, 1]} : vector<16x512xf32> to vector<16x384xf32>
    %cst_58 = arith.constant 5.000000e-01 : f32
    %172 = vector.broadcast %cst_58 : f32 to vector<16x384xf32>
    %173 = arith.mulf %172, %171 : vector<16x384xf32>
    %174 = math.tanh %173 : vector<16x384xf32>
    %cst_59 = arith.constant 5.000000e-01 : f32
    %175 = vector.broadcast %cst_59 : f32 to vector<16x384xf32>
    %176 = arith.mulf %175, %174 : vector<16x384xf32>
    %cst_60 = arith.constant 5.000000e-01 : f32
    %177 = vector.broadcast %cst_60 : f32 to vector<16x384xf32>
    %178 = arith.addf %176, %177 : vector<16x384xf32>
    %179 = vector.extract_strided_slice %178 {offsets = [0, 0], sizes = [16, 128], strides = [1, 1]} : vector<16x384xf32> to vector<16x128xf32>
    %180 = vector.extract_strided_slice %178 {offsets = [0, 128], sizes = [16, 128], strides = [1, 1]} : vector<16x384xf32> to vector<16x128xf32>
    %181 = vector.extract_strided_slice %178 {offsets = [0, 256], sizes = [16, 128], strides = [1, 1]} : vector<16x384xf32> to vector<16x128xf32>
    %182 = vector.extract_strided_slice %170 {offsets = [0, 384], sizes = [16, 128], strides = [1, 1]} : vector<16x512xf32> to vector<16x128xf32>
    %183 = math.tanh %182 : vector<16x128xf32>
    %184 = arith.mulf %180, %156 : vector<16x128xf32>
    %185 = arith.mulf %179, %183 : vector<16x128xf32>
    %186 = arith.addf %184, %185 : vector<16x128xf32>
    %187 = math.tanh %186 : vector<16x128xf32>
    %188 = arith.mulf %181, %187 : vector<16x128xf32>
    %189 = arith.truncf %188 : vector<16x128xf32> to vector<16x128xbf16>
    %190 = arith.index_cast %c5_i32 : i32 to index
    %c0_61 = arith.constant 0 : index
    %c0_62 = arith.constant 0 : index
    %191 = vector.load %arg8[%190, %c0_61, %c0_62] : memref<8x16x128xbf16, #tpu.memory_space<vmem>>, vector<1x16x128xbf16>
    %192 = vector.shape_cast %191 : vector<1x16x128xbf16> to vector<16x128xbf16>
    %193 = vector.shape_cast %189 : vector<16x128xbf16> to vector<1x16x128xbf16>
    tpu.vector_store %arg8[%190, %c0_61, %c0_62], %193 {strides = array<i32>} : memref<8x16x128xbf16, #tpu.memory_space<vmem>>, vector<1x16x128xbf16>,
    %c6_i32 = arith.constant 6 : i32
    %c16_i32_63 = arith.constant 16 : i32
    %194 = arith.muli %c6_i32, %c16_i32_63 : i32
    %195 = tpu.assume_multiple %194, 16 : i32
    %196 = arith.index_cast %195 : i32 to index
    %c0_64 = arith.constant 0 : index
    %197 = vector.load %arg11[%196, %c0_64] : memref<128x512xf32, #tpu.memory_space<vmem>>, vector<16x512xf32>
    %198 = arith.truncf %188 : vector<16x128xf32> to vector<16x128xbf16>
    %cst_65 = arith.constant dense<0.000000e+00> : vector<16x512xf32>
    %199 = tpu.matmul %198, %11, %cst_65 {dimension_numbers = #tpu.dot_dimension_numbers<[1], [0], [0], [1], [0, 0, 1, 1], [], []>} : vector<16x128xbf16>, vector<128x512xbf16>, vector<16x512xf32> -> vector<16x512xf32>
    %200 = arith.addf %197, %199 : vector<16x512xf32>
    %201 = vector.extract_strided_slice %200 {offsets = [0, 0], sizes = [16, 384], strides = [1, 1]} : vector<16x512xf32> to vector<16x384xf32>
    %cst_66 = arith.constant 5.000000e-01 : f32
    %202 = vector.broadcast %cst_66 : f32 to vector<16x384xf32>
    %203 = arith.mulf %202, %201 : vector<16x384xf32>
    %204 = math.tanh %203 : vector<16x384xf32>
    %cst_67 = arith.constant 5.000000e-01 : f32
    %205 = vector.broadcast %cst_67 : f32 to vector<16x384xf32>
    %206 = arith.mulf %205, %204 : vector<16x384xf32>
    %cst_68 = arith.constant 5.000000e-01 : f32
    %207 = vector.broadcast %cst_68 : f32 to vector<16x384xf32>
    %208 = arith.addf %206, %207 : vector<16x384xf32>
    %209 = vector.extract_strided_slice %208 {offsets = [0, 0], sizes = [16, 128], strides = [1, 1]} : vector<16x384xf32> to vector<16x128xf32>
    %210 = vector.extract_strided_slice %208 {offsets = [0, 128], sizes = [16, 128], strides = [1, 1]} : vector<16x384xf32> to vector<16x128xf32>
    %211 = vector.extract_strided_slice %208 {offsets = [0, 256], sizes = [16, 128], strides = [1, 1]} : vector<16x384xf32> to vector<16x128xf32>
    %212 = vector.extract_strided_slice %200 {offsets = [0, 384], sizes = [16, 128], strides = [1, 1]} : vector<16x512xf32> to vector<16x128xf32>
    %213 = math.tanh %212 : vector<16x128xf32>
    %214 = arith.mulf %210, %186 : vector<16x128xf32>
    %215 = arith.mulf %209, %213 : vector<16x128xf32>
    %216 = arith.addf %214, %215 : vector<16x128xf32>
    %217 = math.tanh %216 : vector<16x128xf32>
    %218 = arith.mulf %211, %217 : vector<16x128xf32>
    %219 = arith.truncf %218 : vector<16x128xf32> to vector<16x128xbf16>
    %220 = arith.index_cast %c6_i32 : i32 to index
    %c0_69 = arith.constant 0 : index
    %c0_70 = arith.constant 0 : index
    %221 = vector.load %arg8[%220, %c0_69, %c0_70] : memref<8x16x128xbf16, #tpu.memory_space<vmem>>, vector<1x16x128xbf16>
    %222 = vector.shape_cast %221 : vector<1x16x128xbf16> to vector<16x128xbf16>
    %223 = vector.shape_cast %219 : vector<16x128xbf16> to vector<1x16x128xbf16>
    tpu.vector_store %arg8[%220, %c0_69, %c0_70], %223 {strides = array<i32>} : memref<8x16x128xbf16, #tpu.memory_space<vmem>>, vector<1x16x128xbf16>,
    %c7_i32 = arith.constant 7 : i32
    %c16_i32_71 = arith.constant 16 : i32
    %224 = arith.muli %c7_i32, %c16_i32_71 : i32
    %225 = tpu.assume_multiple %224, 16 : i32
    %226 = arith.index_cast %225 : i32 to index
    %c0_72 = arith.constant 0 : index
    %227 = vector.load %arg11[%226, %c0_72] : memref<128x512xf32, #tpu.memory_space<vmem>>, vector<16x512xf32>
    %228 = arith.truncf %218 : vector<16x128xf32> to vector<16x128xbf16>
    %cst_73 = arith.constant dense<0.000000e+00> : vector<16x512xf32>
    %229 = tpu.matmul %228, %11, %cst_73 {dimension_numbers = #tpu.dot_dimension_numbers<[1], [0], [0], [1], [0, 0, 1, 1], [], []>} : vector<16x128xbf16>, vector<128x512xbf16>, vector<16x512xf32> -> vector<16x512xf32>
    %230 = arith.addf %227, %229 : vector<16x512xf32>
    %231 = vector.extract_strided_slice %230 {offsets = [0, 0], sizes = [16, 384], strides = [1, 1]} : vector<16x512xf32> to vector<16x384xf32>
    %cst_74 = arith.constant 5.000000e-01 : f32
    %232 = vector.broadcast %cst_74 : f32 to vector<16x384xf32>
    %233 = arith.mulf %232, %231 : vector<16x384xf32>
    %234 = math.tanh %233 : vector<16x384xf32>
    %cst_75 = arith.constant 5.000000e-01 : f32
    %235 = vector.broadcast %cst_75 : f32 to vector<16x384xf32>
    %236 = arith.mulf %235, %234 : vector<16x384xf32>
    %cst_76 = arith.constant 5.000000e-01 : f32
    %237 = vector.broadcast %cst_76 : f32 to vector<16x384xf32>
    %238 = arith.addf %236, %237 : vector<16x384xf32>
    %239 = vector.extract_strided_slice %238 {offsets = [0, 0], sizes = [16, 128], strides = [1, 1]} : vector<16x384xf32> to vector<16x128xf32>
    %240 = vector.extract_strided_slice %238 {offsets = [0, 128], sizes = [16, 128], strides = [1, 1]} : vector<16x384xf32> to vector<16x128xf32>
    %241 = vector.extract_strided_slice %238 {offsets = [0, 256], sizes = [16, 128], strides = [1, 1]} : vector<16x384xf32> to vector<16x128xf32>
    %242 = vector.extract_strided_slice %230 {offsets = [0, 384], sizes = [16, 128], strides = [1, 1]} : vector<16x512xf32> to vector<16x128xf32>
    %243 = math.tanh %242 : vector<16x128xf32>
    %244 = arith.mulf %240, %216 : vector<16x128xf32>
    %245 = arith.mulf %239, %243 : vector<16x128xf32>
    %246 = arith.addf %244, %245 : vector<16x128xf32>
    %247 = math.tanh %246 : vector<16x128xf32>
    %248 = arith.mulf %241, %247 : vector<16x128xf32>
    %249 = arith.truncf %248 : vector<16x128xf32> to vector<16x128xbf16>
    %250 = arith.index_cast %c7_i32 : i32 to index
    %c0_77 = arith.constant 0 : index
    %c0_78 = arith.constant 0 : index
    %251 = vector.load %arg8[%250, %c0_77, %c0_78] : memref<8x16x128xbf16, #tpu.memory_space<vmem>>, vector<1x16x128xbf16>
    %252 = vector.shape_cast %251 : vector<1x16x128xbf16> to vector<16x128xbf16>
    %253 = vector.shape_cast %249 : vector<16x128xbf16> to vector<1x16x128xbf16>
    tpu.vector_store %arg8[%250, %c0_77, %c0_78], %253 {strides = array<i32>} : memref<8x16x128xbf16, #tpu.memory_space<vmem>>, vector<1x16x128xbf16>,
    %c8_i32 = arith.constant 8 : i32
    %c0_79 = arith.constant 0 : index
    %c0_80 = arith.constant 0 : index
    %254 = vector.load %arg9[%c0_79, %c0_80] : memref<16x128xf32, #tpu.memory_space<vmem>>, vector<16x128xf32>
    tpu.vector_store %arg9[%c0_79, %c0_80], %248 {strides = array<i32>} : memref<16x128xf32, #tpu.memory_space<vmem>>, vector<16x128xf32>,
    %c0_81 = arith.constant 0 : index
    %c0_82 = arith.constant 0 : index
    %255 = vector.load %arg10[%c0_81, %c0_82] : memref<16x128xf32, #tpu.memory_space<vmem>>, vector<16x128xf32>
    tpu.vector_store %arg10[%c0_81, %c0_82], %246 {strides = array<i32>} : memref<16x128xf32, #tpu.memory_space<vmem>>, vector<16x128xf32>,
    return
  }
  func.func @transform_0(%arg0: i32, %arg1: i32) -> (i32, i32, i32) {
    %c0_i32 = arith.constant 0 : i32
    %c0_i32_0 = arith.constant 0 : i32
    return %arg1, %arg0, %c0_i32 : i32, i32, i32
  }
  func.func @transform_1(%arg0: i32, %arg1: i32) -> (i32, i32) {
    %c0_i32 = arith.constant 0 : i32
    %c0_i32_0 = arith.constant 0 : i32
    %c0_i32_1 = arith.constant 0 : i32
    return %c0_i32, %c0_i32_0 : i32, i32
  }
  func.func @transform_2(%arg0: i32, %arg1: i32) -> (i32, i32) {
    %c0_i32 = arith.constant 0 : i32
    %c0_i32_0 = arith.constant 0 : i32
    %c0_i32_1 = arith.constant 0 : i32
    return %c0_i32, %c0_i32_0 : i32, i32
  }
  func.func @transform_3(%arg0: i32, %arg1: i32) -> (i32, i32) {
    %c0_i32 = arith.constant 0 : i32
    %c0_i32_0 = arith.constant 0 : i32
    %c0_i32_1 = arith.constant 0 : i32
    return %c0_i32, %c0_i32_0 : i32, i32
  }
  func.func @transform_4(%arg0: i32, %arg1: i32) -> (i32, i32) {
    %c0_i32 = arith.constant 0 : i32
    %c0_i32_0 = arith.constant 0 : i32
    return %arg0, %c0_i32 : i32, i32
  }
  func.func @transform_5(%arg0: i32, %arg1: i32) -> (i32, i32) {
    %c0_i32 = arith.constant 0 : i32
    %c0_i32_0 = arith.constant 0 : i32
    return %arg0, %c0_i32 : i32, i32
  }
  func.func @transform_6(%arg0: i32, %arg1: i32) -> (i32, i32, i32) {
    %c0_i32 = arith.constant 0 : i32
    %c0_i32_0 = arith.constant 0 : i32
    return %arg1, %arg0, %c0_i32 : i32, i32, i32
  }
  func.func @transform_7(%arg0: i32, %arg1: i32) -> (i32, i32) {
    %c0_i32 = arith.constant 0 : i32
    %c0_i32_0 = arith.constant 0 : i32
    return %arg0, %c0_i32 : i32, i32
  }
  func.func @transform_8(%arg0: i32, %arg1: i32) -> (i32, i32) {
    %c0_i32 = arith.constant 0 : i32
    %c0_i32_0 = arith.constant 0 : i32
    return %arg0, %c0_i32 : i32, i32
  }
}

</mosaic_0001>

<llo_original>
// kernel: rnn_forward.2
$region0: #{rnn_forward.2}
  #allocation0 [shape = 'u32[]', space=smem, size = 0x4, offset = 0x4, fixed_abs, tag = 'smem constant byte address 0x4 - core index']
  #allocation1 [shape = 'u32[144,128]{1,0:T(1,128)}', space=vmem, size = 0x12000, scoped, tag = 'internal scratch']
  #allocation2 [shape = 'f32[128,512]{1,0:T(8,128)}', space=vmem, size = 0x40000, scoped, tag = 'scratch operand']
  %s0 = inlined_call_operand.vmem [shape: bf16[8,16,128], index: 0, kind: input, shape index: {}]
  %s1 = inlined_call_operand.hbm [shape: bf16[128,512], index: 1, kind: input, shape index: {}]
  %s2 = inlined_call_operand.hbm [shape: bf16[128,512], index: 2, kind: input, shape index: {}]
  %s3 = inlined_call_operand.vmem [shape: f32[1,512], index: 3, kind: input, shape index: {}]
  %s4 = inlined_call_operand.vmem [shape: f32[16,128], index: 4, kind: input, shape index: {}]
  %s5 = inlined_call_operand.vmem [shape: f32[16,128], index: 5, kind: input, shape index: {}]
  %s6 = inlined_call_operand.vmem [shape: bf16[8,16,128], index: 6, kind: output, shape index: {0}]
  %s7 = inlined_call_operand.vmem [shape: f32[16,128], index: 7, kind: output, shape index: {1}]
  %s8 = inlined_call_operand.vmem [shape: f32[16,128], index: 8, kind: output, shape index: {2}]
  %9 = xla_tuple %s6, %s7, %s8
  %s10 = sld [smem:[#allocation0]]
  $region62: #{rnn_forward.2} parent=0
    _
  %s12 = ssub.s32 1, %s10
  %s13 = scalar_select 0, %s12, %s10
  $region1: #{rnn_forward.2} parent=0
    #allocation3 [shape = 'u8[131072]{0}', space=vmem, size = 0x20000, scoped, tag = 'input window, operand 1, single buffered']
    #allocation4 [shape = 's32[1]{0}', space=sflag, size = 0x4, scoped, tag = 'scoped memory for rnn_forward.2']
    #allocation5 [shape = 'u8[131072]{0}', space=vmem, size = 0x20000, scoped, tag = 'input window, operand 2, single buffered']
    #allocation6 [shape = 's32[1]{0}', space=sflag, size = 0x4, scoped, tag = 'scoped memory for rnn_forward.2']
    %14 = vsyncpa [#allocation4], 0
    %15 = vsyncpa [#allocation6], 0
    // Predicated region
    $region2: #{rnn_forward.2} parent=1 // pred_check
      _
    $region3: #{rnn_forward.2} parent=1 // pred_check_branch
      %17 = sbr.rel (0) target = $region5
    $region4: #{rnn_forward.2} parent=1 // pred_region
      _
    $region5: #{rnn_forward.2} parent=1 // pred_fallthru
      _
    // Predicated region
    $region6: #{rnn_forward.2} parent=1 // pred_check
      _
    $region7: #{rnn_forward.2} parent=1 // pred_check_branch
      %19 = sbr.rel (0) target = $region9
    $region8: #{rnn_forward.2} parent=1 // pred_region
      %s21 = ssub.s32 4096, 4096
      %22 = vsyncadd [#allocation4], %s21
      %s23 = sshll.u32 [#allocation3], 4
      %s24 = int_to_ptr.vmem [resolvable:$true] %s23
      %29 = dma.hbm_to_vmem [thread:$0]  %s1, 4096, %s24, [#allocation4], 256, 256, 16
    $region9: #{rnn_forward.2} parent=1 // pred_fallthru
      _
    // Predicated region
    $region10: #{rnn_forward.2} parent=1 // pred_check
      _
    $region11: #{rnn_forward.2} parent=1 // pred_check_branch
      %31 = sbr.rel (0) target = $region13
    $region12: #{rnn_forward.2} parent=1 // pred_region
      %s33 = ssub.s32 4096, 4096
      %34 = vsyncadd [#allocation6], %s33
      %s35 = sshll.u32 [#allocation5], 4
      %s36 = int_to_ptr.vmem [resolvable:$true] %s35
      %41 = dma.hbm_to_vmem [thread:$0]  %s2, 4096, %s36, [#allocation6], 256, 256, 16
    $region13: #{rnn_forward.2} parent=1 // pred_fallthru
      _
    // Predicated region
    $region14: #{rnn_forward.2} parent=1 // pred_check
      _
    $region15: #{rnn_forward.2} parent=1 // pred_check_branch
      %43 = sbr.rel (0) target = $region17
    $region16: #{rnn_forward.2} parent=1 // pred_region
      _
    $region17: #{rnn_forward.2} parent=1 // pred_fallthru
      _
    // Predicated region
    $region18: #{rnn_forward.2} parent=1 // pred_check
      _
    $region19: #{rnn_forward.2} parent=1 // pred_check_branch
      %45 = sbr.rel (0) target = $region21
    $region20: #{rnn_forward.2} parent=1 // pred_region
      _
    $region21: #{rnn_forward.2} parent=1 // pred_fallthru
      _
    // Predicated region
    $region22: #{rnn_forward.2} parent=1 // pred_check
      _
    $region23: #{rnn_forward.2} parent=1 // pred_check_branch
      %47 = sbr.rel (0) target = $region25
    $region24: #{rnn_forward.2} parent=1 // pred_region
      _
    $region25: #{rnn_forward.2} parent=1 // pred_fallthru
      _
    // Predicated region
    $region26: #{rnn_forward.2} parent=1 // pred_check
      _
    $region27: #{rnn_forward.2} parent=1 // pred_check_branch
      %49 = sbr.rel (0) target = $region29
    $region28: #{rnn_forward.2} parent=1 // pred_region
      %50 = dma.done [#allocation4], 4096
    $region29: #{rnn_forward.2} parent=1 // pred_fallthru
      _
    // Predicated region
    $region30: #{rnn_forward.2} parent=1 // pred_check
      _
    $region31: #{rnn_forward.2} parent=1 // pred_check_branch
      %52 = sbr.rel (0) target = $region33
    $region32: #{rnn_forward.2} parent=1 // pred_region
      %53 = dma.done [#allocation6], 4096
    $region33: #{rnn_forward.2} parent=1 // pred_fallthru
      _
    %p55 = scmp.eq.s32.totalorder 0, 0
    // Predicated region
    $region34: #{rnn_forward.2} parent=1 // pred_check
      %p56 = pneg %p55
    $region35: #{rnn_forward.2} parent=1 // pred_check_branch
      %58 = sbr.rel (%p56) target = $region37
    $region36: #{rnn_forward.2} parent=1 // pred_region
      %v59 = vld [vmem:[%s4] sm:$0xff]
      %v60 = vld [vmem:[%s4 + $0x8] sm:$0xff]
      %61 = vst [vmem:[%s7] sm:$0xff] %v59
      %62 = vst [vmem:[%s7 + $0x8] sm:$0xff] %v60
      %v63 = vld [vmem:[%s5] sm:$0xff]
      %v64 = vld [vmem:[%s5 + $0x8] sm:$0xff]
      %65 = vst [vmem:[%s8] sm:$0xff] %v63
      %66 = vst [vmem:[%s8 + $0x8] sm:$0xff] %v64
    $region37: #{rnn_forward.2} parent=1 // pred_fallthru
      _
    %v67 = vld [vmem:[%s0] sm:$0xf]
    %v68 = vld [vmem:[%s0 + $0x4] sm:$0xf]
    %v69 = vld [vmem:[%s0 + $0x8] sm:$0xf]
    %v70 = vld [vmem:[%s0 + $0xc] sm:$0xf]
    %v71 = vld [vmem:[%s0 + $0x10] sm:$0xf]
    %v72 = vld [vmem:[%s0 + $0x14] sm:$0xf]
    %v73 = vld [vmem:[%s0 + $0x18] sm:$0xf]
    %v74 = vld [vmem:[%s0 + $0x1c] sm:$0xf]
    %v75 = vld [vmem:[%s0 + $0x20] sm:$0xf]
    %v76 = vld [vmem:[%s0 + $0x24] sm:$0xf]
    %v77 = vld [vmem:[%s0 + $0x28] sm:$0xf]
    %v78 = vld [vmem:[%s0 + $0x2c] sm:$0xf]
    %v79 = vld [vmem:[%s0 + $0x30] sm:$0xf]
    %v80 = vld [vmem:[%s0 + $0x34] sm:$0xf]
    %v81 = vld [vmem:[%s0 + $0x38] sm:$0xf]
    %v82 = vld [vmem:[%s0 + $0x3c] sm:$0xf]
    %v83 = vld [vmem:[#allocation3] sm:$0xff]
    %v84 = vld [vmem:[#allocation3 + $0x8] sm:$0xff]
    %v85 = vld [vmem:[#allocation3 + $0x10] sm:$0xff]
    %v86 = vld [vmem:[#allocation3 + $0x18] sm:$0xff]
    %v87 = vld [vmem:[#allocation3 + $0x20] sm:$0xff]
    %v88 = vld [vmem:[#allocation3 + $0x28] sm:$0xff]
    %v89 = vld [vmem:[#allocation3 + $0x30] sm:$0xff]
    %v90 = vld [vmem:[#allocation3 + $0x38] sm:$0xff]
    %v91 = vld [vmem:[#allocation3 + $0x40] sm:$0xff]
    %v92 = vld [vmem:[#allocation3 + $0x48] sm:$0xff]
    %v93 = vld [vmem:[#allocation3 + $0x50] sm:$0xff]
    %v94 = vld [vmem:[#allocation3 + $0x58] sm:$0xff]
    %v95 = vld [vmem:[#allocation3 + $0x60] sm:$0xff]
    %v96 = vld [vmem:[#allocation3 + $0x68] sm:$0xff]
    %v97 = vld [vmem:[#allocation3 + $0x70] sm:$0xff]
    %v98 = vld [vmem:[#allocation3 + $0x78] sm:$0xff]
    %v99 = vld [vmem:[#allocation3 + $0x80] sm:$0xff]
    %v100 = vld [vmem:[#allocation3 + $0x88] sm:$0xff]
    %v101 = vld [vmem:[#allocation3 + $0x90] sm:$0xff]
    %v102 = vld [vmem:[#allocation3 + $0x98] sm:$0xff]
    %v103 = vld [vmem:[#allocation3 + $0xa0] sm:$0xff]
    %v104 = vld [vmem:[#allocation3 + $0xa8] sm:$0xff]
    %v105 = vld [vmem:[#allocation3 + $0xb0] sm:$0xff]
    %v106 = vld [vmem:[#allocation3 + $0xb8] sm:$0xff]
    %v107 = vld [vmem:[#allocation3 + $0xc0] sm:$0xff]
    %v108 = vld [vmem:[#allocation3 + $0xc8] sm:$0xff]
    %v109 = vld [vmem:[#allocation3 + $0xd0] sm:$0xff]
    %v110 = vld [vmem:[#allocation3 + $0xd8] sm:$0xff]
    %v111 = vld [vmem:[#allocation3 + $0xe0] sm:$0xff]
    %v112 = vld [vmem:[#allocation3 + $0xe8] sm:$0xff]
    %v113 = vld [vmem:[#allocation3 + $0xf0] sm:$0xff]
    %v114 = vld [vmem:[#allocation3 + $0xf8] sm:$0xff]
    %v115 = vld [vmem:[%s3] sm:$0xf]
    %v117 = vlaneseq
    %v118 = vshrl.u32 %v117, 7
    %v119 = vsub.s32 0, %v118
    %v120 = vrot.slane %v115, %v119
    %v121 = vlaneseq
    %v122 = vshrl.u32 %v121, 7
    %v123 = vsub.s32 1, %v122
    %v124 = vrot.slane %v115, %v123
    %v125 = vlaneseq
    %v126 = vshrl.u32 %v125, 7
    %v127 = vsub.s32 2, %v126
    %v128 = vrot.slane %v115, %v127
    %v129 = vlaneseq
    %v130 = vshrl.u32 %v129, 7
    %v131 = vsub.s32 3, %v130
    %v132 = vrot.slane %v115, %v131
    %v153 = vunpack.c.l.b16 %v67
    %v154 = vunpack.c.l.b16 %v68
    %v155 = vunpack.c.l.b16 %v69
    %v156 = vunpack.c.l.b16 %v70
    %v157 = vunpack.c.l.b16 %v71
    %v158 = vunpack.c.l.b16 %v72
    %v159 = vunpack.c.l.b16 %v73
    %v160 = vunpack.c.l.b16 %v74
    %v161 = vunpack.c.l.b16 %v75
    %v162 = vunpack.c.l.b16 %v76
    %v163 = vunpack.c.l.b16 %v77
    %v164 = vunpack.c.l.b16 %v78
    %v165 = vunpack.c.l.b16 %v79
    %v166 = vunpack.c.l.b16 %v80
    %v167 = vunpack.c.l.b16 %v81
    %v168 = vunpack.c.l.b16 %v82
    %v169 = vpack.c.b16 %v154, %v153
    %v170 = vpack.c.b16 %v156, %v155
    %v171 = vpack.c.b16 %v158, %v157
    %v172 = vpack.c.b16 %v160, %v159
    %v173 = vpack.c.b16 %v162, %v161
    %v174 = vpack.c.b16 %v164, %v163
    %v175 = vpack.c.b16 %v166, %v165
    %v176 = vpack.c.b16 %v168, %v167
    %v217 = vunpack.c.l.b16 %v83
    %v218 = vunpack.c.h.b16 %v83
    %v219 = vunpack.c.l.b16 %v84
    %v220 = vunpack.c.h.b16 %v84
    %v221 = vunpack.c.l.b16 %v85
    %v222 = vunpack.c.h.b16 %v85
    %v223 = vunpack.c.l.b16 %v86
    %v224 = vunpack.c.h.b16 %v86
    %v225 = vunpack.c.l.b16 %v87
    %v226 = vunpack.c.h.b16 %v87
    %v227 = vunpack.c.l.b16 %v88
    %v228 = vunpack.c.h.b16 %v88
    %v229 = vunpack.c.l.b16 %v89
    %v230 = vunpack.c.h.b16 %v89
    %v231 = vunpack.c.l.b16 %v90
    %v232 = vunpack.c.h.b16 %v90
    %v233 = vunpack.c.l.b16 %v91
    %v234 = vunpack.c.h.b16 %v91
    %v235 = vunpack.c.l.b16 %v92
    %v236 = vunpack.c.h.b16 %v92
    %v237 = vunpack.c.l.b16 %v93
    %v238 = vunpack.c.h.b16 %v93
    %v239 = vunpack.c.l.b16 %v94
    %v240 = vunpack.c.h.b16 %v94
    %v241 = vunpack.c.l.b16 %v95
    %v242 = vunpack.c.h.b16 %v95
    %v243 = vunpack.c.l.b16 %v96
    %v244 = vunpack.c.h.b16 %v96
    %v245 = vunpack.c.l.b16 %v97
    %v246 = vunpack.c.h.b16 %v97
    %v247 = vunpack.c.l.b16 %v98
    %v248 = vunpack.c.h.b16 %v98
    %v249 = vunpack.c.l.b16 %v99
    %v250 = vunpack.c.h.b16 %v99
    %v251 = vunpack.c.l.b16 %v100
    %v252 = vunpack.c.h.b16 %v100
    %v253 = vunpack.c.l.b16 %v101
    %v254 = vunpack.c.h.b16 %v101
    %v255 = vunpack.c.l.b16 %v102
    %v256 = vunpack.c.h.b16 %v102
    %v257 = vunpack.c.l.b16 %v103
    %v258 = vunpack.c.h.b16 %v103
    %v259 = vunpack.c.l.b16 %v104
    %v260 = vunpack.c.h.b16 %v104
    %v261 = vunpack.c.l.b16 %v105
    %v262 = vunpack.c.h.b16 %v105
    %v263 = vunpack.c.l.b16 %v106
    %v264 = vunpack.c.h.b16 %v106
    %v265 = vunpack.c.l.b16 %v107
    %v266 = vunpack.c.h.b16 %v107
    %v267 = vunpack.c.l.b16 %v108
    %v268 = vunpack.c.h.b16 %v108
    %v269 = vunpack.c.l.b16 %v109
    %v270 = vunpack.c.h.b16 %v109
    %v271 = vunpack.c.l.b16 %v110
    %v272 = vunpack.c.h.b16 %v110
    %v273 = vunpack.c.l.b16 %v111
    %v274 = vunpack.c.h.b16 %v111
    %v275 = vunpack.c.l.b16 %v112
    %v276 = vunpack.c.h.b16 %v112
    %v277 = vunpack.c.l.b16 %v113
    %v278 = vunpack.c.h.b16 %v113
    %v279 = vunpack.c.l.b16 %v114
    %v280 = vunpack.c.h.b16 %v114
    %v281 = vpack.c.b16 %v221, %v217
    %v282 = vpack.c.b16 %v222, %v218
    %v283 = vpack.c.b16 %v223, %v219
    %v284 = vpack.c.b16 %v224, %v220
    %v285 = vpack.c.b16 %v229, %v225
    %v286 = vpack.c.b16 %v230, %v226
    %v287 = vpack.c.b16 %v231, %v227
    %v288 = vpack.c.b16 %v232, %v228
    %v289 = vpack.c.b16 %v237, %v233
    %v290 = vpack.c.b16 %v238, %v234
    %v291 = vpack.c.b16 %v239, %v235
    %v292 = vpack.c.b16 %v240, %v236
    %v293 = vpack.c.b16 %v245, %v241
    %v294 = vpack.c.b16 %v246, %v242
    %v295 = vpack.c.b16 %v247, %v243
    %v296 = vpack.c.b16 %v248, %v244
    %v297 = vpack.c.b16 %v253, %v249
    %v298 = vpack.c.b16 %v254, %v250
    %v299 = vpack.c.b16 %v255, %v251
    %v300 = vpack.c.b16 %v256, %v252
    %v301 = vpack.c.b16 %v261, %v257
    %v302 = vpack.c.b16 %v262, %v258
    %v303 = vpack.c.b16 %v263, %v259
    %v304 = vpack.c.b16 %v264, %v260
    %v305 = vpack.c.b16 %v269, %v265
    %v306 = vpack.c.b16 %v270, %v266
    %v307 = vpack.c.b16 %v271, %v267
    %v308 = vpack.c.b16 %v272, %v268
    %v309 = vpack.c.b16 %v277, %v273
    %v310 = vpack.c.b16 %v278, %v274
    %v311 = vpack.c.b16 %v279, %v275
    %v312 = vpack.c.b16 %v280, %v276
    %345 = vmatprep.subr.bf16.mxu0 %v310
    %346 = vmatpush1.bf16.msra.mxu0 %v309
    %347 = vmatprep.subr.bf16.mxu0 %v306
    %348 = vmatpush1.bf16.msra.mxu0 %v305
    %349 = vmatprep.subr.bf16.mxu0 %v302
    %350 = vmatpush1.bf16.msra.mxu0 %v301
    %351 = vmatprep.subr.bf16.mxu0 %v298
    %352 = vmatpush1.bf16.msra.mxu0 %v297
    %353 = vmatprep.subr.bf16.mxu0 %v294
    %354 = vmatpush1.bf16.msra.mxu0 %v293
    %355 = vmatprep.subr.bf16.mxu0 %v290
    %356 = vmatpush1.bf16.msra.mxu0 %v289
    %357 = vmatprep.subr.bf16.mxu0 %v286
    %358 = vmatpush1.bf16.msra.mxu0 %v285
    %359 = vmatprep.subr.bf16.mxu0 %v282
    %360 = vmatpush1.bf16.msra.mxu0 %v281
    %361 = vmatprep.subr.bf16.mxu0 0
    %362 = vmatpush2.bf16.msra.mxu0 0
    %363 = vmatprep.subr.bf16.mxu0 0
    %364 = vmatpush2.bf16.msra.mxu0 0
    %365 = vmatprep.subr.bf16.mxu0 0
    %366 = vmatpush2.bf16.msra.mxu0 0
    %367 = vmatprep.subr.bf16.mxu0 0
    %368 = vmatpush2.bf16.msra.mxu0 0
    %369 = vmatprep.subr.bf16.mxu0 0
    %370 = vmatpush2.bf16.msra.mxu0 0
    %371 = vmatprep.subr.bf16.mxu0 0
    %372 = vmatpush2.bf16.msra.mxu0 0
    %373 = vmatprep.subr.bf16.mxu0 0
    %374 = vmatpush2.bf16.msra.mxu0 0
    %375 = vmatprep.subr.bf16.mxu0 0
    %376 = vmatpush2.bf16.msra.mxu0 0
    %377 = vmatprep.mubr.bf16.mxu0 0
    %378 = vmatmul.mubr.bf16.gmra.mxu0 %v169
    %v379 = vpop.f32.mrf.mxu0
    %v380 = vadd.f32 %v120, %v379
    %v381 = vpop.f32.mrf.mxu0
    %v382 = vadd.f32 %v124, %v381
    %v383 = vpop.f32.mrf.mxu0
    %v384 = vadd.f32 %v120, %v383
    %v385 = vpop.f32.mrf.mxu0
    %v386 = vadd.f32 %v124, %v385
    %387 = vmatprep.mubr.bf16.mxu0 0
    %388 = vmatmul.mubr.bf16.gmra.mxu0 %v170
    %v389 = vpop.f32.mrf.mxu0
    %v390 = vadd.f32 %v120, %v389
    %v391 = vpop.f32.mrf.mxu0
    %v392 = vadd.f32 %v124, %v391
    %v393 = vpop.f32.mrf.mxu0
    %v394 = vadd.f32 %v120, %v393
    %v395 = vpop.f32.mrf.mxu0
    %v396 = vadd.f32 %v124, %v395
    %397 = vmatprep.mubr.bf16.mxu0 0
    %398 = vmatmul.mubr.bf16.gmra.mxu0 %v171
    %v399 = vpop.f32.mrf.mxu0
    %v400 = vadd.f32 %v120, %v399
    %v401 = vpop.f32.mrf.mxu0
    %v402 = vadd.f32 %v124, %v401
    %v403 = vpop.f32.mrf.mxu0
    %v404 = vadd.f32 %v120, %v403
    %v405 = vpop.f32.mrf.mxu0
    %v406 = vadd.f32 %v124, %v405
    %407 = vmatprep.mubr.bf16.mxu0 0
    %408 = vmatmul.mubr.bf16.gmra.mxu0 %v172
    %v409 = vpop.f32.mrf.mxu0
    %v410 = vadd.f32 %v120, %v409
    %v411 = vpop.f32.mrf.mxu0
    %v412 = vadd.f32 %v124, %v411
    %v413 = vpop.f32.mrf.mxu0
    %v414 = vadd.f32 %v120, %v413
    %v415 = vpop.f32.mrf.mxu0
    %v416 = vadd.f32 %v124, %v415
    %417 = vmatprep.mubr.bf16.mxu0 0
    %418 = vmatmul.mubr.bf16.gmra.mxu0 %v173
    %v419 = vpop.f32.mrf.mxu0
    %v420 = vadd.f32 %v120, %v419
    %v421 = vpop.f32.mrf.mxu0
    %v422 = vadd.f32 %v124, %v421
    %v423 = vpop.f32.mrf.mxu0
    %v424 = vadd.f32 %v120, %v423
    %v425 = vpop.f32.mrf.mxu0
    %v426 = vadd.f32 %v124, %v425
    %427 = vmatprep.mubr.bf16.mxu0 0
    %428 = vmatmul.mubr.bf16.gmra.mxu0 %v174
    %v429 = vpop.f32.mrf.mxu0
    %v430 = vadd.f32 %v120, %v429
    %v431 = vpop.f32.mrf.mxu0
    %v432 = vadd.f32 %v124, %v431
    %v433 = vpop.f32.mrf.mxu0
    %v434 = vadd.f32 %v120, %v433
    %v435 = vpop.f32.mrf.mxu0
    %v436 = vadd.f32 %v124, %v435
    %437 = vmatprep.mubr.bf16.mxu0 0
    %438 = vmatmul.mubr.bf16.gmra.mxu0 %v175
    %v439 = vpop.f32.mrf.mxu0
    %v440 = vadd.f32 %v120, %v439
    %v441 = vpop.f32.mrf.mxu0
    %v442 = vadd.f32 %v124, %v441
    %v443 = vpop.f32.mrf.mxu0
    %v444 = vadd.f32 %v120, %v443
    %v445 = vpop.f32.mrf.mxu0
    %v446 = vadd.f32 %v124, %v445
    %447 = vmatprep.mubr.bf16.mxu0 0
    %448 = vmatmul.mubr.bf16.gmra.mxu0 %v176
    %v449 = vpop.f32.mrf.mxu0
    %v450 = vadd.f32 %v120, %v449
    %v451 = vpop.f32.mrf.mxu0
    %v452 = vadd.f32 %v124, %v451
    %v453 = vpop.f32.mrf.mxu0
    %v454 = vadd.f32 %v120, %v453
    %v455 = vpop.f32.mrf.mxu0
    %v456 = vadd.f32 %v124, %v455
    %457 = vdwg.mxu0
    %458 = vmatprep.subr.bf16.mxu0 %v312
    %459 = vmatpush1.bf16.msra.mxu0 %v311
    %460 = vmatprep.subr.bf16.mxu0 %v308
    %461 = vmatpush1.bf16.msra.mxu0 %v307
    %462 = vmatprep.subr.bf16.mxu0 %v304
    %463 = vmatpush1.bf16.msra.mxu0 %v303
    %464 = vmatprep.subr.bf16.mxu0 %v300
    %465 = vmatpush1.bf16.msra.mxu0 %v299
    %466 = vmatprep.subr.bf16.mxu0 %v296
    %467 = vmatpush1.bf16.msra.mxu0 %v295
    %468 = vmatprep.subr.bf16.mxu0 %v292
    %469 = vmatpush1.bf16.msra.mxu0 %v291
    %470 = vmatprep.subr.bf16.mxu0 %v288
    %471 = vmatpush1.bf16.msra.mxu0 %v287
    %472 = vmatprep.subr.bf16.mxu0 %v284
    %473 = vmatpush1.bf16.msra.mxu0 %v283
    %474 = vmatprep.subr.bf16.mxu0 0
    %475 = vmatpush2.bf16.msra.mxu0 0
    %476 = vmatprep.subr.bf16.mxu0 0
    %477 = vmatpush2.bf16.msra.mxu0 0
    %478 = vmatprep.subr.bf16.mxu0 0
    %479 = vmatpush2.bf16.msra.mxu0 0
    %480 = vmatprep.subr.bf16.mxu0 0
    %481 = vmatpush2.bf16.msra.mxu0 0
    %482 = vmatprep.subr.bf16.mxu0 0
    %483 = vmatpush2.bf16.msra.mxu0 0
    %484 = vmatprep.subr.bf16.mxu0 0
    %485 = vmatpush2.bf16.msra.mxu0 0
    %486 = vmatprep.subr.bf16.mxu0 0
    %487 = vmatpush2.bf16.msra.mxu0 0
    %488 = vmatprep.subr.bf16.mxu0 0
    %489 = vmatpush2.bf16.msra.mxu0 0
    %490 = vmatprep.mubr.bf16.mxu0 0
    %491 = vmatmul.mubr.bf16.gmra.mxu0 %v169
    %v492 = vpop.f32.mrf.mxu0
    %v493 = vadd.f32 %v128, %v492
    %v494 = vpop.f32.mrf.mxu0
    %v495 = vadd.f32 %v132, %v494
    %v496 = vpop.f32.mrf.mxu0
    %v497 = vadd.f32 %v128, %v496
    %v498 = vpop.f32.mrf.mxu0
    %v499 = vadd.f32 %v132, %v498
    %500 = vmatprep.mubr.bf16.mxu0 0
    %501 = vmatmul.mubr.bf16.gmra.mxu0 %v170
    %v502 = vpop.f32.mrf.mxu0
    %v503 = vadd.f32 %v128, %v502
    %v504 = vpop.f32.mrf.mxu0
    %v505 = vadd.f32 %v132, %v504
    %v506 = vpop.f32.mrf.mxu0
    %v507 = vadd.f32 %v128, %v506
    %v508 = vpop.f32.mrf.mxu0
    %v509 = vadd.f32 %v132, %v508
    %510 = vmatprep.mubr.bf16.mxu0 0
    %511 = vmatmul.mubr.bf16.gmra.mxu0 %v171
    %v512 = vpop.f32.mrf.mxu0
    %v513 = vadd.f32 %v128, %v512
    %v514 = vpop.f32.mrf.mxu0
    %v515 = vadd.f32 %v132, %v514
    %v516 = vpop.f32.mrf.mxu0
    %v517 = vadd.f32 %v128, %v516
    %v518 = vpop.f32.mrf.mxu0
    %v519 = vadd.f32 %v132, %v518
    %520 = vmatprep.mubr.bf16.mxu0 0
    %521 = vmatmul.mubr.bf16.gmra.mxu0 %v172
    %v522 = vpop.f32.mrf.mxu0
    %v523 = vadd.f32 %v128, %v522
    %v524 = vpop.f32.mrf.mxu0
    %v525 = vadd.f32 %v132, %v524
    %v526 = vpop.f32.mrf.mxu0
    %v527 = vadd.f32 %v128, %v526
    %v528 = vpop.f32.mrf.mxu0
    %v529 = vadd.f32 %v132, %v528
    %530 = vmatprep.mubr.bf16.mxu0 0
    %531 = vmatmul.mubr.bf16.gmra.mxu0 %v173
    %v532 = vpop.f32.mrf.mxu0
    %v533 = vadd.f32 %v128, %v532
    %v534 = vpop.f32.mrf.mxu0
    %v535 = vadd.f32 %v132, %v534
    %v536 = vpop.f32.mrf.mxu0
    %v537 = vadd.f32 %v128, %v536
    %v538 = vpop.f32.mrf.mxu0
    %v539 = vadd.f32 %v132, %v538
    %540 = vmatprep.mubr.bf16.mxu0 0
    %541 = vmatmul.mubr.bf16.gmra.mxu0 %v174
    %v542 = vpop.f32.mrf.mxu0
    %v543 = vadd.f32 %v128, %v542
    %v544 = vpop.f32.mrf.mxu0
    %v545 = vadd.f32 %v132, %v544
    %v546 = vpop.f32.mrf.mxu0
    %v547 = vadd.f32 %v128, %v546
    %v548 = vpop.f32.mrf.mxu0
    %v549 = vadd.f32 %v132, %v548
    %550 = vmatprep.mubr.bf16.mxu0 0
    %551 = vmatmul.mubr.bf16.gmra.mxu0 %v175
    %v552 = vpop.f32.mrf.mxu0
    %v553 = vadd.f32 %v128, %v552
    %v554 = vpop.f32.mrf.mxu0
    %v555 = vadd.f32 %v132, %v554
    %v556 = vpop.f32.mrf.mxu0
    %v557 = vadd.f32 %v128, %v556
    %v558 = vpop.f32.mrf.mxu0
    %v559 = vadd.f32 %v132, %v558
    %560 = vmatprep.mubr.bf16.mxu0 0
    %561 = vmatmul.mubr.bf16.gmra.mxu0 %v176
    %v562 = vpop.f32.mrf.mxu0
    %v563 = vadd.f32 %v128, %v562
    %v564 = vpop.f32.mrf.mxu0
    %v565 = vadd.f32 %v132, %v564
    %v566 = vpop.f32.mrf.mxu0
    %v567 = vadd.f32 %v128, %v566
    %v568 = vpop.f32.mrf.mxu0
    %v569 = vadd.f32 %v132, %v568
    %570 = vdwg.mxu0
    %571 = vst [vmem:[#allocation2] sm:$0xff] %v380
    %572 = vst [vmem:[#allocation2 + $0x8] sm:$0xff] %v382
    %573 = vst [vmem:[#allocation2 + $0x10] sm:$0xff] %v493
    %574 = vst [vmem:[#allocation2 + $0x18] sm:$0xff] %v495
    %575 = vst [vmem:[#allocation2 + $0x20] sm:$0xff] %v384
    %576 = vst [vmem:[#allocation2 + $0x28] sm:$0xff] %v386
    %577 = vst [vmem:[#allocation2 + $0x30] sm:$0xff] %v497
    %578 = vst [vmem:[#allocation2 + $0x38] sm:$0xff] %v499
    %579 = vst [vmem:[#allocation2 + $0x40] sm:$0xff] %v390
    %580 = vst [vmem:[#allocation2 + $0x48] sm:$0xff] %v392
    %581 = vst [vmem:[#allocation2 + $0x50] sm:$0xff] %v503
    %582 = vst [vmem:[#allocation2 + $0x58] sm:$0xff] %v505
    %583 = vst [vmem:[#allocation2 + $0x60] sm:$0xff] %v394
    %584 = vst [vmem:[#allocation2 + $0x68] sm:$0xff] %v396
    %585 = vst [vmem:[#allocation2 + $0x70] sm:$0xff] %v507
    %586 = vst [vmem:[#allocation2 + $0x78] sm:$0xff] %v509
    %587 = vst [vmem:[#allocation2 + $0x80] sm:$0xff] %v400
    %588 = vst [vmem:[#allocation2 + $0x88] sm:$0xff] %v402
    %589 = vst [vmem:[#allocation2 + $0x90] sm:$0xff] %v513
    %590 = vst [vmem:[#allocation2 + $0x98] sm:$0xff] %v515
    %591 = vst [vmem:[#allocation2 + $0xa0] sm:$0xff] %v404
    %592 = vst [vmem:[#allocation2 + $0xa8] sm:$0xff] %v406
    %593 = vst [vmem:[#allocation2 + $0xb0] sm:$0xff] %v517
    %594 = vst [vmem:[#allocation2 + $0xb8] sm:$0xff] %v519
    %595 = vst [vmem:[#allocation2 + $0xc0] sm:$0xff] %v410
    %596 = vst [vmem:[#allocation2 + $0xc8] sm:$0xff] %v412
    %597 = vst [vmem:[#allocation2 + $0xd0] sm:$0xff] %v523
    %598 = vst [vmem:[#allocation2 + $0xd8] sm:$0xff] %v525
    %599 = vst [vmem:[#allocation2 + $0xe0] sm:$0xff] %v414
    %600 = vst [vmem:[#allocation2 + $0xe8] sm:$0xff] %v416
    %601 = vst [vmem:[#allocation2 + $0xf0] sm:$0xff] %v527
    %602 = vst [vmem:[#allocation2 + $0xf8] sm:$0xff] %v529
    %603 = vst [vmem:[#allocation2 + $0x100] sm:$0xff] %v420
    %604 = vst [vmem:[#allocation2 + $0x108] sm:$0xff] %v422
    %605 = vst [vmem:[#allocation2 + $0x110] sm:$0xff] %v533
    %606 = vst [vmem:[#allocation2 + $0x118] sm:$0xff] %v535
    %607 = vst [vmem:[#allocation2 + $0x120] sm:$0xff] %v424
    %608 = vst [vmem:[#allocation2 + $0x128] sm:$0xff] %v426
    %609 = vst [vmem:[#allocation2 + $0x130] sm:$0xff] %v537
    %610 = vst [vmem:[#allocation2 + $0x138] sm:$0xff] %v539
    %611 = vst [vmem:[#allocation2 + $0x140] sm:$0xff] %v430
    %612 = vst [vmem:[#allocation2 + $0x148] sm:$0xff] %v432
    %613 = vst [vmem:[#allocation2 + $0x150] sm:$0xff] %v543
    %614 = vst [vmem:[#allocation2 + $0x158] sm:$0xff] %v545
    %615 = vst [vmem:[#allocation2 + $0x160] sm:$0xff] %v434
    %616 = vst [vmem:[#allocation2 + $0x168] sm:$0xff] %v436
    %617 = vst [vmem:[#allocation2 + $0x170] sm:$0xff] %v547
    %618 = vst [vmem:[#allocation2 + $0x178] sm:$0xff] %v549
    %619 = vst [vmem:[#allocation2 + $0x180] sm:$0xff] %v440
    %620 = vst [vmem:[#allocation2 + $0x188] sm:$0xff] %v442
    %621 = vst [vmem:[#allocation2 + $0x190] sm:$0xff] %v553
    %622 = vst [vmem:[#allocation2 + $0x198] sm:$0xff] %v555
    %623 = vst [vmem:[#allocation2 + $0x1a0] sm:$0xff] %v444
    %624 = vst [vmem:[#allocation2 + $0x1a8] sm:$0xff] %v446
    %625 = vst [vmem:[#allocation2 + $0x1b0] sm:$0xff] %v557
    %626 = vst [vmem:[#allocation2 + $0x1b8] sm:$0xff] %v559
    %627 = vst [vmem:[#allocation2 + $0x1c0] sm:$0xff] %v450
    %628 = vst [vmem:[#allocation2 + $0x1c8] sm:$0xff] %v452
    %629 = vst [vmem:[#allocation2 + $0x1d0] sm:$0xff] %v563
    %630 = vst [vmem:[#allocation2 + $0x1d8] sm:$0xff] %v565
    %631 = vst [vmem:[#allocation2 + $0x1e0] sm:$0xff] %v454
    %632 = vst [vmem:[#allocation2 + $0x1e8] sm:$0xff] %v456
    %633 = vst [vmem:[#allocation2 + $0x1f0] sm:$0xff] %v567
    %634 = vst [vmem:[#allocation2 + $0x1f8] sm:$0xff] %v569
    %v635 = vld [vmem:[#allocation5] sm:$0xff]
    %v636 = vld [vmem:[#allocation5 + $0x8] sm:$0xff]
    %v637 = vld [vmem:[#allocation5 + $0x10] sm:$0xff]
    %v638 = vld [vmem:[#allocation5 + $0x18] sm:$0xff]
    %v639 = vld [vmem:[#allocation5 + $0x20] sm:$0xff]
    %v640 = vld [vmem:[#allocation5 + $0x28] sm:$0xff]
    %v641 = vld [vmem:[#allocation5 + $0x30] sm:$0xff]
    %v642 = vld [vmem:[#allocation5 + $0x38] sm:$0xff]
    %v643 = vld [vmem:[#allocation5 + $0x40] sm:$0xff]
    %v644 = vld [vmem:[#allocation5 + $0x48] sm:$0xff]
    %v645 = vld [vmem:[#allocation5 + $0x50] sm:$0xff]
    %v646 = vld [vmem:[#allocation5 + $0x58] sm:$0xff]
    %v647 = vld [vmem:[#allocation5 + $0x60] sm:$0xff]
    %v648 = vld [vmem:[#allocation5 + $0x68] sm:$0xff]
    %v649 = vld [vmem:[#allocation5 + $0x70] sm:$0xff]
    %v650 = vld [vmem:[#allocation5 + $0x78] sm:$0xff]
    %v651 = vld [vmem:[#allocation5 + $0x80] sm:$0xff]
    %v652 = vld [vmem:[#allocation5 + $0x88] sm:$0xff]
    %v653 = vld [vmem:[#allocation5 + $0x90] sm:$0xff]
    %v654 = vld [vmem:[#allocation5 + $0x98] sm:$0xff]
    %v655 = vld [vmem:[#allocation5 + $0xa0] sm:$0xff]
    %v656 = vld [vmem:[#allocation5 + $0xa8] sm:$0xff]
    %v657 = vld [vmem:[#allocation5 + $0xb0] sm:$0xff]
    %v658 = vld [vmem:[#allocation5 + $0xb8] sm:$0xff]
    %v659 = vld [vmem:[#allocation5 + $0xc0] sm:$0xff]
    %v660 = vld [vmem:[#allocation5 + $0xc8] sm:$0xff]
    %v661 = vld [vmem:[#allocation5 + $0xd0] sm:$0xff]
    %v662 = vld [vmem:[#allocation5 + $0xd8] sm:$0xff]
    %v663 = vld [vmem:[#allocation5 + $0xe0] sm:$0xff]
    %v664 = vld [vmem:[#allocation5 + $0xe8] sm:$0xff]
    %v665 = vld [vmem:[#allocation5 + $0xf0] sm:$0xff]
    %v666 = vld [vmem:[#allocation5 + $0xf8] sm:$0xff]
    %v667 = vld [vmem:[%s7] sm:$0xff]
    %v668 = vld [vmem:[%s7 + $0x8] sm:$0xff]
    %v669 = vld [vmem:[%s8] sm:$0xff]
    %v670 = vld [vmem:[%s8 + $0x8] sm:$0xff]
    %s671 = smul.u32 0, 4
    %s672 = smul.addr %s671, 8
    %s673 = scalar_lea.vmem [#allocation2], %s672
    %v674 = vld [vmem:[%s673] sm:$0xff]
    %v675 = vld [vmem:[%s673 + $0x8] sm:$0xff]
    %v676 = vld [vmem:[%s673 + $0x10] sm:$0xff]
    %v677 = vld [vmem:[%s673 + $0x18] sm:$0xff]
    %v678 = vld [vmem:[%s673 + $0x20] sm:$0xff]
    %v679 = vld [vmem:[%s673 + $0x28] sm:$0xff]
    %v680 = vld [vmem:[%s673 + $0x30] sm:$0xff]
    %v681 = vld [vmem:[%s673 + $0x38] sm:$0xff]
    %v682 = vpack.c.bf16 %v668, %v667
    %v715 = vunpack.c.l.b16 %v635
    %v716 = vunpack.c.h.b16 %v635
    %v717 = vunpack.c.l.b16 %v636
    %v718 = vunpack.c.h.b16 %v636
    %v719 = vunpack.c.l.b16 %v637
    %v720 = vunpack.c.h.b16 %v637
    %v721 = vunpack.c.l.b16 %v638
    %v722 = vunpack.c.h.b16 %v638
    %v723 = vunpack.c.l.b16 %v639
    %v724 = vunpack.c.h.b16 %v639
    %v725 = vunpack.c.l.b16 %v640
    %v726 = vunpack.c.h.b16 %v640
    %v727 = vunpack.c.l.b16 %v641
    %v728 = vunpack.c.h.b16 %v641
    %v729 = vunpack.c.l.b16 %v642
    %v730 = vunpack.c.h.b16 %v642
    %v731 = vunpack.c.l.b16 %v643
    %v732 = vunpack.c.h.b16 %v643
    %v733 = vunpack.c.l.b16 %v644
    %v734 = vunpack.c.h.b16 %v644
    %v735 = vunpack.c.l.b16 %v645
    %v736 = vunpack.c.h.b16 %v645
    %v737 = vunpack.c.l.b16 %v646
    %v738 = vunpack.c.h.b16 %v646
    %v739 = vunpack.c.l.b16 %v647
    %v740 = vunpack.c.h.b16 %v647
    %v741 = vunpack.c.l.b16 %v648
    %v742 = vunpack.c.h.b16 %v648
    %v743 = vunpack.c.l.b16 %v649
    %v744 = vunpack.c.h.b16 %v649
    %v745 = vunpack.c.l.b16 %v650
    %v746 = vunpack.c.h.b16 %v650
    %v747 = vunpack.c.l.b16 %v651
    %v748 = vunpack.c.h.b16 %v651
    %v749 = vunpack.c.l.b16 %v652
    %v750 = vunpack.c.h.b16 %v652
    %v751 = vunpack.c.l.b16 %v653
    %v752 = vunpack.c.h.b16 %v653
    %v753 = vunpack.c.l.b16 %v654
    %v754 = vunpack.c.h.b16 %v654
    %v755 = vunpack.c.l.b16 %v655
    %v756 = vunpack.c.h.b16 %v655
    %v757 = vunpack.c.l.b16 %v656
    %v758 = vunpack.c.h.b16 %v656
    %v759 = vunpack.c.l.b16 %v657
    %v760 = vunpack.c.h.b16 %v657
    %v761 = vunpack.c.l.b16 %v658
    %v762 = vunpack.c.h.b16 %v658
    %v763 = vunpack.c.l.b16 %v659
    %v764 = vunpack.c.h.b16 %v659
    %v765 = vunpack.c.l.b16 %v660
    %v766 = vunpack.c.h.b16 %v660
    %v767 = vunpack.c.l.b16 %v661
    %v768 = vunpack.c.h.b16 %v661
    %v769 = vunpack.c.l.b16 %v662
    %v770 = vunpack.c.h.b16 %v662
    %v771 = vunpack.c.l.b16 %v663
    %v772 = vunpack.c.h.b16 %v663
    %v773 = vunpack.c.l.b16 %v664
    %v774 = vunpack.c.h.b16 %v664
    %v775 = vunpack.c.l.b16 %v665
    %v776 = vunpack.c.h.b16 %v665
    %v777 = vunpack.c.l.b16 %v666
    %v778 = vunpack.c.h.b16 %v666
    %v779 = vpack.c.b16 %v719, %v715
    %v780 = vpack.c.b16 %v720, %v716
    %v781 = vpack.c.b16 %v721, %v717
    %v782 = vpack.c.b16 %v722, %v718
    %v783 = vpack.c.b16 %v727, %v723
    %v784 = vpack.c.b16 %v728, %v724
    %v785 = vpack.c.b16 %v729, %v725
    %v786 = vpack.c.b16 %v730, %v726
    %v787 = vpack.c.b16 %v735, %v731
    %v788 = vpack.c.b16 %v736, %v732
    %v789 = vpack.c.b16 %v737, %v733
    %v790 = vpack.c.b16 %v738, %v734
    %v791 = vpack.c.b16 %v743, %v739
    %v792 = vpack.c.b16 %v744, %v740
    %v793 = vpack.c.b16 %v745, %v741
    %v794 = vpack.c.b16 %v746, %v742
    %v795 = vpack.c.b16 %v751, %v747
    %v796 = vpack.c.b16 %v752, %v748
    %v797 = vpack.c.b16 %v753, %v749
    %v798 = vpack.c.b16 %v754, %v750
    %v799 = vpack.c.b16 %v759, %v755
    %v800 = vpack.c.b16 %v760, %v756
    %v801 = vpack.c.b16 %v761, %v757
    %v802 = vpack.c.b16 %v762, %v758
    %v803 = vpack.c.b16 %v767, %v763
    %v804 = vpack.c.b16 %v768, %v764
    %v805 = vpack.c.b16 %v769, %v765
    %v806 = vpack.c.b16 %v770, %v766
    %v807 = vpack.c.b16 %v775, %v771
    %v808 = vpack.c.b16 %v776, %v772
    %v809 = vpack.c.b16 %v777, %v773
    %v810 = vpack.c.b16 %v778, %v774
    %843 = vmatprep.subr.bf16.mxu0 %v808
    %844 = vmatpush1.bf16.msra.mxu0 %v807
    %845 = vmatprep.subr.bf16.mxu0 %v804
    %846 = vmatpush1.bf16.msra.mxu0 %v803
    %847 = vmatprep.subr.bf16.mxu0 %v800
    %848 = vmatpush1.bf16.msra.mxu0 %v799
    %849 = vmatprep.subr.bf16.mxu0 %v796
    %850 = vmatpush1.bf16.msra.mxu0 %v795
    %851 = vmatprep.subr.bf16.mxu0 %v792
    %852 = vmatpush1.bf16.msra.mxu0 %v791
    %853 = vmatprep.subr.bf16.mxu0 %v788
    %854 = vmatpush1.bf16.msra.mxu0 %v787
    %855 = vmatprep.subr.bf16.mxu0 %v784
    %856 = vmatpush1.bf16.msra.mxu0 %v783
    %857 = vmatprep.subr.bf16.mxu0 %v780
    %858 = vmatpush1.bf16.msra.mxu0 %v779
    %859 = vmatprep.subr.bf16.mxu0 0
    %860 = vmatpush2.bf16.msra.mxu0 0
    %861 = vmatprep.subr.bf16.mxu0 0
    %862 = vmatpush2.bf16.msra.mxu0 0
    %863 = vmatprep.subr.bf16.mxu0 0
    %864 = vmatpush2.bf16.msra.mxu0 0
    %865 = vmatprep.subr.bf16.mxu0 0
    %866 = vmatpush2.bf16.msra.mxu0 0
    %867 = vmatprep.subr.bf16.mxu0 0
    %868 = vmatpush2.bf16.msra.mxu0 0
    %869 = vmatprep.subr.bf16.mxu0 0
    %870 = vmatpush2.bf16.msra.mxu0 0
    %871 = vmatprep.subr.bf16.mxu0 0
    %872 = vmatpush2.bf16.msra.mxu0 0
    %873 = vmatprep.subr.bf16.mxu0 0
    %874 = vmatpush2.bf16.msra.mxu0 0
    %875 = vmatprep.mubr.bf16.mxu0 0
    %876 = vmatmul.mubr.bf16.gmra.mxu0 %v682
    %v877 = vpop.f32.mrf.mxu0
    %v878 = vadd.f32 0.0, %v877
    %v879 = vpop.f32.mrf.mxu0
    %v880 = vadd.f32 0.0, %v879
    %v881 = vpop.f32.mrf.mxu0
    %v882 = vadd.f32 0.0, %v881
    %v883 = vpop.f32.mrf.mxu0
    %v884 = vadd.f32 0.0, %v883
    %885 = vdwg.mxu0
    %886 = vmatprep.subr.bf16.mxu0 %v810
    %887 = vmatpush1.bf16.msra.mxu0 %v809
    %888 = vmatprep.subr.bf16.mxu0 %v806
    %889 = vmatpush1.bf16.msra.mxu0 %v805
    %890 = vmatprep.subr.bf16.mxu0 %v802
    %891 = vmatpush1.bf16.msra.mxu0 %v801
    %892 = vmatprep.subr.bf16.mxu0 %v798
    %893 = vmatpush1.bf16.msra.mxu0 %v797
    %894 = vmatprep.subr.bf16.mxu0 %v794
    %895 = vmatpush1.bf16.msra.mxu0 %v793
    %896 = vmatprep.subr.bf16.mxu0 %v790
    %897 = vmatpush1.bf16.msra.mxu0 %v789
    %898 = vmatprep.subr.bf16.mxu0 %v786
    %899 = vmatpush1.bf16.msra.mxu0 %v785
    %900 = vmatprep.subr.bf16.mxu0 %v782
    %901 = vmatpush1.bf16.msra.mxu0 %v781
    %902 = vmatprep.subr.bf16.mxu0 0
    %903 = vmatpush2.bf16.msra.mxu0 0
    %904 = vmatprep.subr.bf16.mxu0 0
    %905 = vmatpush2.bf16.msra.mxu0 0
    %906 = vmatprep.subr.bf16.mxu0 0
    %907 = vmatpush2.bf16.msra.mxu0 0
    %908 = vmatprep.subr.bf16.mxu0 0
    %909 = vmatpush2.bf16.msra.mxu0 0
    %910 = vmatprep.subr.bf16.mxu0 0
    %911 = vmatpush2.bf16.msra.mxu0 0
    %912 = vmatprep.subr.bf16.mxu0 0
    %913 = vmatpush2.bf16.msra.mxu0 0
    %914 = vmatprep.subr.bf16.mxu0 0
    %915 = vmatpush2.bf16.msra.mxu0 0
    %916 = vmatprep.subr.bf16.mxu0 0
    %917 = vmatpush2.bf16.msra.mxu0 0
    %918 = vmatprep.mubr.bf16.mxu0 0
    %919 = vmatmul.mubr.bf16.gmra.mxu0 %v682
    %v920 = vpop.f32.mrf.mxu0
    %v921 = vadd.f32 0.0, %v920
    %v922 = vpop.f32.mrf.mxu0
    %v923 = vadd.f32 0.0, %v922
    %v924 = vpop.f32.mrf.mxu0
    %v925 = vadd.f32 0.0, %v924
    %v926 = vpop.f32.mrf.mxu0
    %v927 = vadd.f32 0.0, %v926
    %928 = vdwg.mxu0
    %v929 = vadd.f32 %v674, %v878
    %v930 = vadd.f32 %v675, %v880
    %v931 = vadd.f32 %v676, %v921
    %v932 = vadd.f32 %v677, %v923
    %v933 = vadd.f32 %v678, %v882
    %v934 = vadd.f32 %v679, %v884
    %v935 = vadd.f32 %v680, %v925
    %v936 = vadd.f32 %v681, %v927
    %v937 = vmul.f32 %v929, 0.5
    %v938 = vmul.f32 %v930, 0.5
    %v939 = vmul.f32 %v931, 0.5
    %v940 = vmul.f32 %v933, 0.5
    %v941 = vmul.f32 %v934, 0.5
    %v942 = vmul.f32 %v935, 0.5
    %v943 = vtanh.pop %v937
    %v944 = vtanh.pop %v938
    %v945 = vtanh.pop %v939
    %v946 = vtanh.pop %v940
    %v947 = vtanh.pop %v941
    %v948 = vtanh.pop %v942
    %v949 = vmul.f32 %v943, 0.5
    %v950 = vmul.f32 %v944, 0.5
    %v951 = vmul.f32 %v945, 0.5
    %v952 = vmul.f32 %v946, 0.5
    %v953 = vmul.f32 %v947, 0.5
    %v954 = vmul.f32 %v948, 0.5
    %v955 = vadd.f32 %v949, 0.5
    %v956 = vadd.f32 %v950, 0.5
    %v957 = vadd.f32 %v951, 0.5
    %v958 = vadd.f32 %v952, 0.5
    %v959 = vadd.f32 %v953, 0.5
    %v960 = vadd.f32 %v954, 0.5
    %v961 = vtanh.pop %v932
    %v962 = vtanh.pop %v936
    %v963 = vmul.f32 %v956, %v669
    %v964 = vmul.f32 %v959, %v670
    %v965 = vmul.f32 %v955, %v961
    %v966 = vmul.f32 %v958, %v962
    %v967 = vadd.f32 %v963, %v965
    %v968 = vadd.f32 %v964, %v966
    %v969 = vtanh.pop %v967
    %v970 = vtanh.pop %v968
    %v971 = vmul.f32 %v957, %v969
    %v972 = vmul.f32 %v960, %v970
    %v973 = vpack.c.bf16 %v972, %v971
    %v975 = vunpack.c.l.b16 %v973
    %v976 = vunpack.c.h.b16 %v973
    %v977 = vpack.c.b16 %v975, %v975
    %v978 = vpack.c.b16 %v976, %v976
    %981 = vst [vmem:[%s6] sm:$0xf] %v977
    %982 = vst [vmem:[%s6 + $0x4] sm:$0xf] %v978
    %s983 = smul.u32 2, 4
    %s984 = smul.addr %s983, 8
    %s985 = scalar_lea.vmem [#allocation2], %s984
    %v986 = vld [vmem:[%s985] sm:$0xff]
    %v987 = vld [vmem:[%s985 + $0x8] sm:$0xff]
    %v988 = vld [vmem:[%s985 + $0x10] sm:$0xff]
    %v989 = vld [vmem:[%s985 + $0x18] sm:$0xff]
    %v990 = vld [vmem:[%s985 + $0x20] sm:$0xff]
    %v991 = vld [vmem:[%s985 + $0x28] sm:$0xff]
    %v992 = vld [vmem:[%s985 + $0x30] sm:$0xff]
    %v993 = vld [vmem:[%s985 + $0x38] sm:$0xff]
    %994 = vmatprep.subr.bf16.mxu0 %v808
    %995 = vmatpush1.bf16.msra.mxu0 %v807
    %996 = vmatprep.subr.bf16.mxu0 %v804
    %997 = vmatpush1.bf16.msra.mxu0 %v803
    %998 = vmatprep.subr.bf16.mxu0 %v800
    %999 = vmatpush1.bf16.msra.mxu0 %v799
    %1000 = vmatprep.subr.bf16.mxu0 %v796
    %1001 = vmatpush1.bf16.msra.mxu0 %v795
    %1002 = vmatprep.subr.bf16.mxu0 %v792
    %1003 = vmatpush1.bf16.msra.mxu0 %v791
    %1004 = vmatprep.subr.bf16.mxu0 %v788
    %1005 = vmatpush1.bf16.msra.mxu0 %v787
    %1006 = vmatprep.subr.bf16.mxu0 %v784
    %1007 = vmatpush1.bf16.msra.mxu0 %v783
    %1008 = vmatprep.subr.bf16.mxu0 %v780
    %1009 = vmatpush1.bf16.msra.mxu0 %v779
    %1010 = vmatprep.subr.bf16.mxu0 0
    %1011 = vmatpush2.bf16.msra.mxu0 0
    %1012 = vmatprep.subr.bf16.mxu0 0
    %1013 = vmatpush2.bf16.msra.mxu0 0
    %1014 = vmatprep.subr.bf16.mxu0 0
    %1015 = vmatpush2.bf16.msra.mxu0 0
    %1016 = vmatprep.subr.bf16.mxu0 0
    %1017 = vmatpush2.bf16.msra.mxu0 0
    %1018 = vmatprep.subr.bf16.mxu0 0
    %1019 = vmatpush2.bf16.msra.mxu0 0
    %1020 = vmatprep.subr.bf16.mxu0 0
    %1021 = vmatpush2.bf16.msra.mxu0 0
    %1022 = vmatprep.subr.bf16.mxu0 0
    %1023 = vmatpush2.bf16.msra.mxu0 0
    %1024 = vmatprep.subr.bf16.mxu0 0
    %1025 = vmatpush2.bf16.msra.mxu0 0
    %1026 = vmatprep.mubr.bf16.mxu0 0
    %1027 = vmatmul.mubr.bf16.gmra.mxu0 %v973
    %v1028 = vpop.f32.mrf.mxu0
    %v1029 = vadd.f32 0.0, %v1028
    %v1030 = vpop.f32.mrf.mxu0
    %v1031 = vadd.f32 0.0, %v1030
    %v1032 = vpop.f32.mrf.mxu0
    %v1033 = vadd.f32 0.0, %v1032
    %v1034 = vpop.f32.mrf.mxu0
    %v1035 = vadd.f32 0.0, %v1034
    %1036 = vdwg.mxu0
    %1037 = vmatprep.subr.bf16.mxu0 %v810
    %1038 = vmatpush1.bf16.msra.mxu0 %v809
    %1039 = vmatprep.subr.bf16.mxu0 %v806
    %1040 = vmatpush1.bf16.msra.mxu0 %v805
    %1041 = vmatprep.subr.bf16.mxu0 %v802
    %1042 = vmatpush1.bf16.msra.mxu0 %v801
    %1043 = vmatprep.subr.bf16.mxu0 %v798
    %1044 = vmatpush1.bf16.msra.mxu0 %v797
    %1045 = vmatprep.subr.bf16.mxu0 %v794
    %1046 = vmatpush1.bf16.msra.mxu0 %v793
    %1047 = vmatprep.subr.bf16.mxu0 %v790
    %1048 = vmatpush1.bf16.msra.mxu0 %v789
    %1049 = vmatprep.subr.bf16.mxu0 %v786
    %1050 = vmatpush1.bf16.msra.mxu0 %v785
    %1051 = vmatprep.subr.bf16.mxu0 %v782
    %1052 = vmatpush1.bf16.msra.mxu0 %v781
    %1053 = vmatprep.subr.bf16.mxu0 0
    %1054 = vmatpush2.bf16.msra.mxu0 0
    %1055 = vmatprep.subr.bf16.mxu0 0
    %1056 = vmatpush2.bf16.msra.mxu0 0
    %1057 = vmatprep.subr.bf16.mxu0 0
    %1058 = vmatpush2.bf16.msra.mxu0 0
    %1059 = vmatprep.subr.bf16.mxu0 0
    %1060 = vmatpush2.bf16.msra.mxu0 0
    %1061 = vmatprep.subr.bf16.mxu0 0
    %1062 = vmatpush2.bf16.msra.mxu0 0
    %1063 = vmatprep.subr.bf16.mxu0 0
    %1064 = vmatpush2.bf16.msra.mxu0 0
    %1065 = vmatprep.subr.bf16.mxu0 0
    %1066 = vmatpush2.bf16.msra.mxu0 0
    %1067 = vmatprep.subr.bf16.mxu0 0
    %1068 = vmatpush2.bf16.msra.mxu0 0
    %1069 = vmatprep.mubr.bf16.mxu0 0
    %1070 = vmatmul.mubr.bf16.gmra.mxu0 %v973
    %v1071 = vpop.f32.mrf.mxu0
    %v1072 = vadd.f32 0.0, %v1071
    %v1073 = vpop.f32.mrf.mxu0
    %v1074 = vadd.f32 0.0, %v1073
    %v1075 = vpop.f32.mrf.mxu0
    %v1076 = vadd.f32 0.0, %v1075
    %v1077 = vpop.f32.mrf.mxu0
    %v1078 = vadd.f32 0.0, %v1077
    %1079 = vdwg.mxu0
    %v1080 = vadd.f32 %v986, %v1029
    %v1081 = vadd.f32 %v987, %v1031
    %v1082 = vadd.f32 %v988, %v1072
    %v1083 = vadd.f32 %v989, %v1074
    %v1084 = vadd.f32 %v990, %v1033
    %v1085 = vadd.f32 %v991, %v1035
    %v1086 = vadd.f32 %v992, %v1076
    %v1087 = vadd.f32 %v993, %v1078
    %v1088 = vmul.f32 %v1080, 0.5
    %v1089 = vmul.f32 %v1081, 0.5
    %v1090 = vmul.f32 %v1082, 0.5
    %v1091 = vmul.f32 %v1084, 0.5
    %v1092 = vmul.f32 %v1085, 0.5
    %v1093 = vmul.f32 %v1086, 0.5
    %v1094 = vtanh.pop %v1088
    %v1095 = vtanh.pop %v1089
    %v1096 = vtanh.pop %v1090
    %v1097 = vtanh.pop %v1091
    %v1098 = vtanh.pop %v1092
    %v1099 = vtanh.pop %v1093
    %v1100 = vmul.f32 %v1094, 0.5
    %v1101 = vmul.f32 %v1095, 0.5
    %v1102 = vmul.f32 %v1096, 0.5
    %v1103 = vmul.f32 %v1097, 0.5
    %v1104 = vmul.f32 %v1098, 0.5
    %v1105 = vmul.f32 %v1099, 0.5
    %v1106 = vadd.f32 %v1100, 0.5
    %v1107 = vadd.f32 %v1101, 0.5
    %v1108 = vadd.f32 %v1102, 0.5
    %v1109 = vadd.f32 %v1103, 0.5
    %v1110 = vadd.f32 %v1104, 0.5
    %v1111 = vadd.f32 %v1105, 0.5
    %v1112 = vtanh.pop %v1083
    %v1113 = vtanh.pop %v1087
    %v1114 = vmul.f32 %v1107, %v967
    %v1115 = vmul.f32 %v1110, %v968
    %v1116 = vmul.f32 %v1106, %v1112
    %v1117 = vmul.f32 %v1109, %v1113
    %v1118 = vadd.f32 %v1114, %v1116
    %v1119 = vadd.f32 %v1115, %v1117
    %v1120 = vtanh.pop %v1118
    %v1121 = vtanh.pop %v1119
    %v1122 = vmul.f32 %v1108, %v1120
    %v1123 = vmul.f32 %v1111, %v1121
    %v1124 = vpack.c.bf16 %v1123, %v1122
    %v1126 = vunpack.c.l.b16 %v1124
    %v1127 = vunpack.c.h.b16 %v1124
    %v1128 = vpack.c.b16 %v1126, %v1126
    %v1129 = vpack.c.b16 %v1127, %v1127
    %s1132 = scalar_lea.vmem %s6, 8
    %1133 = vst [vmem:[%s1132] sm:$0xf] %v1128
    %1134 = vst [vmem:[%s1132 + $0x4] sm:$0xf] %v1129
    %s1135 = smul.u32 4, 4
    %s1136 = smul.addr %s1135, 8
    %s1137 = scalar_lea.vmem [#allocation2], %s1136
    %v1138 = vld [vmem:[%s1137] sm:$0xff]
    %v1139 = vld [vmem:[%s1137 + $0x8] sm:$0xff]
    %v1140 = vld [vmem:[%s1137 + $0x10] sm:$0xff]
    %v1141 = vld [vmem:[%s1137 + $0x18] sm:$0xff]
    %v1142 = vld [vmem:[%s1137 + $0x20] sm:$0xff]
    %v1143 = vld [vmem:[%s1137 + $0x28] sm:$0xff]
    %v1144 = vld [vmem:[%s1137 + $0x30] sm:$0xff]
    %v1145 = vld [vmem:[%s1137 + $0x38] sm:$0xff]
    %1146 = vmatprep.subr.bf16.mxu0 %v808
    %1147 = vmatpush1.bf16.msra.mxu0 %v807
    %1148 = vmatprep.subr.bf16.mxu0 %v804
    %1149 = vmatpush1.bf16.msra.mxu0 %v803
    %1150 = vmatprep.subr.bf16.mxu0 %v800
    %1151 = vmatpush1.bf16.msra.mxu0 %v799
    %1152 = vmatprep.subr.bf16.mxu0 %v796
    %1153 = vmatpush1.bf16.msra.mxu0 %v795
    %1154 = vmatprep.subr.bf16.mxu0 %v792
    %1155 = vmatpush1.bf16.msra.mxu0 %v791
    %1156 = vmatprep.subr.bf16.mxu0 %v788
    %1157 = vmatpush1.bf16.msra.mxu0 %v787
    %1158 = vmatprep.subr.bf16.mxu0 %v784
    %1159 = vmatpush1.bf16.msra.mxu0 %v783
    %1160 = vmatprep.subr.bf16.mxu0 %v780
    %1161 = vmatpush1.bf16.msra.mxu0 %v779
    %1162 = vmatprep.subr.bf16.mxu0 0
    %1163 = vmatpush2.bf16.msra.mxu0 0
    %1164 = vmatprep.subr.bf16.mxu0 0
    %1165 = vmatpush2.bf16.msra.mxu0 0
    %1166 = vmatprep.subr.bf16.mxu0 0
    %1167 = vmatpush2.bf16.msra.mxu0 0
    %1168 = vmatprep.subr.bf16.mxu0 0
    %1169 = vmatpush2.bf16.msra.mxu0 0
    %1170 = vmatprep.subr.bf16.mxu0 0
    %1171 = vmatpush2.bf16.msra.mxu0 0
    %1172 = vmatprep.subr.bf16.mxu0 0
    %1173 = vmatpush2.bf16.msra.mxu0 0
    %1174 = vmatprep.subr.bf16.mxu0 0
    %1175 = vmatpush2.bf16.msra.mxu0 0
    %1176 = vmatprep.subr.bf16.mxu0 0
    %1177 = vmatpush2.bf16.msra.mxu0 0
    %1178 = vmatprep.mubr.bf16.mxu0 0
    %1179 = vmatmul.mubr.bf16.gmra.mxu0 %v1124
    %v1180 = vpop.f32.mrf.mxu0
    %v1181 = vadd.f32 0.0, %v1180
    %v1182 = vpop.f32.mrf.mxu0
    %v1183 = vadd.f32 0.0, %v1182
    %v1184 = vpop.f32.mrf.mxu0
    %v1185 = vadd.f32 0.0, %v1184
    %v1186 = vpop.f32.mrf.mxu0
    %v1187 = vadd.f32 0.0, %v1186
    %1188 = vdwg.mxu0
    %1189 = vmatprep.subr.bf16.mxu0 %v810
    %1190 = vmatpush1.bf16.msra.mxu0 %v809
    %1191 = vmatprep.subr.bf16.mxu0 %v806
    %1192 = vmatpush1.bf16.msra.mxu0 %v805
    %1193 = vmatprep.subr.bf16.mxu0 %v802
    %1194 = vmatpush1.bf16.msra.mxu0 %v801
    %1195 = vmatprep.subr.bf16.mxu0 %v798
    %1196 = vmatpush1.bf16.msra.mxu0 %v797
    %1197 = vmatprep.subr.bf16.mxu0 %v794
    %1198 = vmatpush1.bf16.msra.mxu0 %v793
    %1199 = vmatprep.subr.bf16.mxu0 %v790
    %1200 = vmatpush1.bf16.msra.mxu0 %v789
    %1201 = vmatprep.subr.bf16.mxu0 %v786
    %1202 = vmatpush1.bf16.msra.mxu0 %v785
    %1203 = vmatprep.subr.bf16.mxu0 %v782
    %1204 = vmatpush1.bf16.msra.mxu0 %v781
    %1205 = vmatprep.subr.bf16.mxu0 0
    %1206 = vmatpush2.bf16.msra.mxu0 0
    %1207 = vmatprep.subr.bf16.mxu0 0
    %1208 = vmatpush2.bf16.msra.mxu0 0
    %1209 = vmatprep.subr.bf16.mxu0 0
    %1210 = vmatpush2.bf16.msra.mxu0 0
    %1211 = vmatprep.subr.bf16.mxu0 0
    %1212 = vmatpush2.bf16.msra.mxu0 0
    %1213 = vmatprep.subr.bf16.mxu0 0
    %1214 = vmatpush2.bf16.msra.mxu0 0
    %1215 = vmatprep.subr.bf16.mxu0 0
    %1216 = vmatpush2.bf16.msra.mxu0 0
    %1217 = vmatprep.subr.bf16.mxu0 0
    %1218 = vmatpush2.bf16.msra.mxu0 0
    %1219 = vmatprep.subr.bf16.mxu0 0
    %1220 = vmatpush2.bf16.msra.mxu0 0
    %1221 = vmatprep.mubr.bf16.mxu0 0
    %1222 = vmatmul.mubr.bf16.gmra.mxu0 %v1124
    %v1223 = vpop.f32.mrf.mxu0
    %v1224 = vadd.f32 0.0, %v1223
    %v1225 = vpop.f32.mrf.mxu0
    %v1226 = vadd.f32 0.0, %v1225
    %v1227 = vpop.f32.mrf.mxu0
    %v1228 = vadd.f32 0.0, %v1227
    %v1229 = vpop.f32.mrf.mxu0
    %v1230 = vadd.f32 0.0, %v1229
    %1231 = vdwg.mxu0
    %v1232 = vadd.f32 %v1138, %v1181
    %v1233 = vadd.f32 %v1139, %v1183
    %v1234 = vadd.f32 %v1140, %v1224
    %v1235 = vadd.f32 %v1141, %v1226
    %v1236 = vadd.f32 %v1142, %v1185
    %v1237 = vadd.f32 %v1143, %v1187
    %v1238 = vadd.f32 %v1144, %v1228
    %v1239 = vadd.f32 %v1145, %v1230
    %v1240 = vmul.f32 %v1232, 0.5
    %v1241 = vmul.f32 %v1233, 0.5
    %v1242 = vmul.f32 %v1234, 0.5
    %v1243 = vmul.f32 %v1236, 0.5
    %v1244 = vmul.f32 %v1237, 0.5
    %v1245 = vmul.f32 %v1238, 0.5
    %v1246 = vtanh.pop %v1240
    %v1247 = vtanh.pop %v1241
    %v1248 = vtanh.pop %v1242
    %v1249 = vtanh.pop %v1243
    %v1250 = vtanh.pop %v1244
    %v1251 = vtanh.pop %v1245
    %v1252 = vmul.f32 %v1246, 0.5
    %v1253 = vmul.f32 %v1247, 0.5
    %v1254 = vmul.f32 %v1248, 0.5
    %v1255 = vmul.f32 %v1249, 0.5
    %v1256 = vmul.f32 %v1250, 0.5
    %v1257 = vmul.f32 %v1251, 0.5
    %v1258 = vadd.f32 %v1252, 0.5
    %v1259 = vadd.f32 %v1253, 0.5
    %v1260 = vadd.f32 %v1254, 0.5
    %v1261 = vadd.f32 %v1255, 0.5
    %v1262 = vadd.f32 %v1256, 0.5
    %v1263 = vadd.f32 %v1257, 0.5
    %v1264 = vtanh.pop %v1235
    %v1265 = vtanh.pop %v1239
    %v1266 = vmul.f32 %v1259, %v1118
    %v1267 = vmul.f32 %v1262, %v1119
    %v1268 = vmul.f32 %v1258, %v1264
    %v1269 = vmul.f32 %v1261, %v1265
    %v1270 = vadd.f32 %v1266, %v1268
    %v1271 = vadd.f32 %v1267, %v1269
    %v1272 = vtanh.pop %v1270
    %v1273 = vtanh.pop %v1271
    %v1274 = vmul.f32 %v1260, %v1272
    %v1275 = vmul.f32 %v1263, %v1273
    %v1276 = vpack.c.bf16 %v1275, %v1274
    %v1278 = vunpack.c.l.b16 %v1276
    %v1279 = vunpack.c.h.b16 %v1276
    %v1280 = vpack.c.b16 %v1278, %v1278
    %v1281 = vpack.c.b16 %v1279, %v1279
    %s1284 = scalar_lea.vmem %s6, 16
    %1285 = vst [vmem:[%s1284] sm:$0xf] %v1280
    %1286 = vst [vmem:[%s1284 + $0x4] sm:$0xf] %v1281
    %s1287 = smul.u32 6, 4
    %s1288 = smul.addr %s1287, 8
    %s1289 = scalar_lea.vmem [#allocation2], %s1288
    %v1290 = vld [vmem:[%s1289] sm:$0xff]
    %v1291 = vld [vmem:[%s1289 + $0x8] sm:$0xff]
    %v1292 = vld [vmem:[%s1289 + $0x10] sm:$0xff]
    %v1293 = vld [vmem:[%s1289 + $0x18] sm:$0xff]
    %v1294 = vld [vmem:[%s1289 + $0x20] sm:$0xff]
    %v1295 = vld [vmem:[%s1289 + $0x28] sm:$0xff]
    %v1296 = vld [vmem:[%s1289 + $0x30] sm:$0xff]
    %v1297 = vld [vmem:[%s1289 + $0x38] sm:$0xff]
    %1298 = vmatprep.subr.bf16.mxu0 %v808
    %1299 = vmatpush1.bf16.msra.mxu0 %v807
    %1300 = vmatprep.subr.bf16.mxu0 %v804
    %1301 = vmatpush1.bf16.msra.mxu0 %v803
    %1302 = vmatprep.subr.bf16.mxu0 %v800
    %1303 = vmatpush1.bf16.msra.mxu0 %v799
    %1304 = vmatprep.subr.bf16.mxu0 %v796
    %1305 = vmatpush1.bf16.msra.mxu0 %v795
    %1306 = vmatprep.subr.bf16.mxu0 %v792
    %1307 = vmatpush1.bf16.msra.mxu0 %v791
    %1308 = vmatprep.subr.bf16.mxu0 %v788
    %1309 = vmatpush1.bf16.msra.mxu0 %v787
    %1310 = vmatprep.subr.bf16.mxu0 %v784
    %1311 = vmatpush1.bf16.msra.mxu0 %v783
    %1312 = vmatprep.subr.bf16.mxu0 %v780
    %1313 = vmatpush1.bf16.msra.mxu0 %v779
    %1314 = vmatprep.subr.bf16.mxu0 0
    %1315 = vmatpush2.bf16.msra.mxu0 0
    %1316 = vmatprep.subr.bf16.mxu0 0
    %1317 = vmatpush2.bf16.msra.mxu0 0
    %1318 = vmatprep.subr.bf16.mxu0 0
    %1319 = vmatpush2.bf16.msra.mxu0 0
    %1320 = vmatprep.subr.bf16.mxu0 0
    %1321 = vmatpush2.bf16.msra.mxu0 0
    %1322 = vmatprep.subr.bf16.mxu0 0
    %1323 = vmatpush2.bf16.msra.mxu0 0
    %1324 = vmatprep.subr.bf16.mxu0 0
    %1325 = vmatpush2.bf16.msra.mxu0 0
    %1326 = vmatprep.subr.bf16.mxu0 0
    %1327 = vmatpush2.bf16.msra.mxu0 0
    %1328 = vmatprep.subr.bf16.mxu0 0
    %1329 = vmatpush2.bf16.msra.mxu0 0
    %1330 = vmatprep.mubr.bf16.mxu0 0
    %1331 = vmatmul.mubr.bf16.gmra.mxu0 %v1276
    %v1332 = vpop.f32.mrf.mxu0
    %v1333 = vadd.f32 0.0, %v1332
    %v1334 = vpop.f32.mrf.mxu0
    %v1335 = vadd.f32 0.0, %v1334
    %v1336 = vpop.f32.mrf.mxu0
    %v1337 = vadd.f32 0.0, %v1336
    %v1338 = vpop.f32.mrf.mxu0
    %v1339 = vadd.f32 0.0, %v1338
    %1340 = vdwg.mxu0
    %1341 = vmatprep.subr.bf16.mxu0 %v810
    %1342 = vmatpush1.bf16.msra.mxu0 %v809
    %1343 = vmatprep.subr.bf16.mxu0 %v806
    %1344 = vmatpush1.bf16.msra.mxu0 %v805
    %1345 = vmatprep.subr.bf16.mxu0 %v802
    %1346 = vmatpush1.bf16.msra.mxu0 %v801
    %1347 = vmatprep.subr.bf16.mxu0 %v798
    %1348 = vmatpush1.bf16.msra.mxu0 %v797
    %1349 = vmatprep.subr.bf16.mxu0 %v794
    %1350 = vmatpush1.bf16.msra.mxu0 %v793
    %1351 = vmatprep.subr.bf16.mxu0 %v790
    %1352 = vmatpush1.bf16.msra.mxu0 %v789
    %1353 = vmatprep.subr.bf16.mxu0 %v786
    %1354 = vmatpush1.bf16.msra.mxu0 %v785
    %1355 = vmatprep.subr.bf16.mxu0 %v782
    %1356 = vmatpush1.bf16.msra.mxu0 %v781
    %1357 = vmatprep.subr.bf16.mxu0 0
    %1358 = vmatpush2.bf16.msra.mxu0 0
    %1359 = vmatprep.subr.bf16.mxu0 0
    %1360 = vmatpush2.bf16.msra.mxu0 0
    %1361 = vmatprep.subr.bf16.mxu0 0
    %1362 = vmatpush2.bf16.msra.mxu0 0
    %1363 = vmatprep.subr.bf16.mxu0 0
    %1364 = vmatpush2.bf16.msra.mxu0 0
    %1365 = vmatprep.subr.bf16.mxu0 0
    %1366 = vmatpush2.bf16.msra.mxu0 0
    %1367 = vmatprep.subr.bf16.mxu0 0
    %1368 = vmatpush2.bf16.msra.mxu0 0
    %1369 = vmatprep.subr.bf16.mxu0 0
    %1370 = vmatpush2.bf16.msra.mxu0 0
    %1371 = vmatprep.subr.bf16.mxu0 0
    %1372 = vmatpush2.bf16.msra.mxu0 0
    %1373 = vmatprep.mubr.bf16.mxu0 0
    %1374 = vmatmul.mubr.bf16.gmra.mxu0 %v1276
    %v1375 = vpop.f32.mrf.mxu0
    %v1376 = vadd.f32 0.0, %v1375
    %v1377 = vpop.f32.mrf.mxu0
    %v1378 = vadd.f32 0.0, %v1377
    %v1379 = vpop.f32.mrf.mxu0
    %v1380 = vadd.f32 0.0, %v1379
    %v1381 = vpop.f32.mrf.mxu0
    %v1382 = vadd.f32 0.0, %v1381
    %1383 = vdwg.mxu0
    %v1384 = vadd.f32 %v1290, %v1333
    %v1385 = vadd.f32 %v1291, %v1335
    %v1386 = vadd.f32 %v1292, %v1376
    %v1387 = vadd.f32 %v1293, %v1378
    %v1388 = vadd.f32 %v1294, %v1337
    %v1389 = vadd.f32 %v1295, %v1339
    %v1390 = vadd.f32 %v1296, %v1380
    %v1391 = vadd.f32 %v1297, %v1382
    %v1392 = vmul.f32 %v1384, 0.5
    %v1393 = vmul.f32 %v1385, 0.5
    %v1394 = vmul.f32 %v1386, 0.5
    %v1395 = vmul.f32 %v1388, 0.5
    %v1396 = vmul.f32 %v1389, 0.5
    %v1397 = vmul.f32 %v1390, 0.5
    %v1398 = vtanh.pop %v1392
    %v1399 = vtanh.pop %v1393
    %v1400 = vtanh.pop %v1394
    %v1401 = vtanh.pop %v1395
    %v1402 = vtanh.pop %v1396
    %v1403 = vtanh.pop %v1397
    %v1404 = vmul.f32 %v1398, 0.5
    %v1405 = vmul.f32 %v1399, 0.5
    %v1406 = vmul.f32 %v1400, 0.5
    %v1407 = vmul.f32 %v1401, 0.5
    %v1408 = vmul.f32 %v1402, 0.5
    %v1409 = vmul.f32 %v1403, 0.5
    %v1410 = vadd.f32 %v1404, 0.5
    %v1411 = vadd.f32 %v1405, 0.5
    %v1412 = vadd.f32 %v1406, 0.5
    %v1413 = vadd.f32 %v1407, 0.5
    %v1414 = vadd.f32 %v1408, 0.5
    %v1415 = vadd.f32 %v1409, 0.5
    %v1416 = vtanh.pop %v1387
    %v1417 = vtanh.pop %v1391
    %v1418 = vmul.f32 %v1411, %v1270
    %v1419 = vmul.f32 %v1414, %v1271
    %v1420 = vmul.f32 %v1410, %v1416
    %v1421 = vmul.f32 %v1413, %v1417
    %v1422 = vadd.f32 %v1418, %v1420
    %v1423 = vadd.f32 %v1419, %v1421
    %v1424 = vtanh.pop %v1422
    %v1425 = vtanh.pop %v1423
    %v1426 = vmul.f32 %v1412, %v1424
    %v1427 = vmul.f32 %v1415, %v1425
    %v1428 = vpack.c.bf16 %v1427, %v1426
    %v1430 = vunpack.c.l.b16 %v1428
    %v1431 = vunpack.c.h.b16 %v1428
    %v1432 = vpack.c.b16 %v1430, %v1430
    %v1433 = vpack.c.b16 %v1431, %v1431
    %s1436 = scalar_lea.vmem %s6, 24
    %1437 = vst [vmem:[%s1436] sm:$0xf] %v1432
    %1438 = vst [vmem:[%s1436 + $0x4] sm:$0xf] %v1433
    %s1439 = smul.u32 8, 4
    %s1440 = smul.addr %s1439, 8
    %s1441 = scalar_lea.vmem [#allocation2], %s1440
    %v1442 = vld [vmem:[%s1441] sm:$0xff]
    %v1443 = vld [vmem:[%s1441 + $0x8] sm:$0xff]
    %v1444 = vld [vmem:[%s1441 + $0x10] sm:$0xff]
    %v1445 = vld [vmem:[%s1441 + $0x18] sm:$0xff]
    %v1446 = vld [vmem:[%s1441 + $0x20] sm:$0xff]
    %v1447 = vld [vmem:[%s1441 + $0x28] sm:$0xff]
    %v1448 = vld [vmem:[%s1441 + $0x30] sm:$0xff]
    %v1449 = vld [vmem:[%s1441 + $0x38] sm:$0xff]
    %1450 = vmatprep.subr.bf16.mxu0 %v808
    %1451 = vmatpush1.bf16.msra.mxu0 %v807
    %1452 = vmatprep.subr.bf16.mxu0 %v804
    %1453 = vmatpush1.bf16.msra.mxu0 %v803
    %1454 = vmatprep.subr.bf16.mxu0 %v800
    %1455 = vmatpush1.bf16.msra.mxu0 %v799
    %1456 = vmatprep.subr.bf16.mxu0 %v796
    %1457 = vmatpush1.bf16.msra.mxu0 %v795
    %1458 = vmatprep.subr.bf16.mxu0 %v792
    %1459 = vmatpush1.bf16.msra.mxu0 %v791
    %1460 = vmatprep.subr.bf16.mxu0 %v788
    %1461 = vmatpush1.bf16.msra.mxu0 %v787
    %1462 = vmatprep.subr.bf16.mxu0 %v784
    %1463 = vmatpush1.bf16.msra.mxu0 %v783
    %1464 = vmatprep.subr.bf16.mxu0 %v780
    %1465 = vmatpush1.bf16.msra.mxu0 %v779
    %1466 = vmatprep.subr.bf16.mxu0 0
    %1467 = vmatpush2.bf16.msra.mxu0 0
    %1468 = vmatprep.subr.bf16.mxu0 0
    %1469 = vmatpush2.bf16.msra.mxu0 0
    %1470 = vmatprep.subr.bf16.mxu0 0
    %1471 = vmatpush2.bf16.msra.mxu0 0
    %1472 = vmatprep.subr.bf16.mxu0 0
    %1473 = vmatpush2.bf16.msra.mxu0 0
    %1474 = vmatprep.subr.bf16.mxu0 0
    %1475 = vmatpush2.bf16.msra.mxu0 0
    %1476 = vmatprep.subr.bf16.mxu0 0
    %1477 = vmatpush2.bf16.msra.mxu0 0
    %1478 = vmatprep.subr.bf16.mxu0 0
    %1479 = vmatpush2.bf16.msra.mxu0 0
    %1480 = vmatprep.subr.bf16.mxu0 0
    %1481 = vmatpush2.bf16.msra.mxu0 0
    %1482 = vmatprep.mubr.bf16.mxu0 0
    %1483 = vmatmul.mubr.bf16.gmra.mxu0 %v1428
    %v1484 = vpop.f32.mrf.mxu0
    %v1485 = vadd.f32 0.0, %v1484
    %v1486 = vpop.f32.mrf.mxu0
    %v1487 = vadd.f32 0.0, %v1486
    %v1488 = vpop.f32.mrf.mxu0
    %v1489 = vadd.f32 0.0, %v1488
    %v1490 = vpop.f32.mrf.mxu0
    %v1491 = vadd.f32 0.0, %v1490
    %1492 = vdwg.mxu0
    %1493 = vmatprep.subr.bf16.mxu0 %v810
    %1494 = vmatpush1.bf16.msra.mxu0 %v809
    %1495 = vmatprep.subr.bf16.mxu0 %v806
    %1496 = vmatpush1.bf16.msra.mxu0 %v805
    %1497 = vmatprep.subr.bf16.mxu0 %v802
    %1498 = vmatpush1.bf16.msra.mxu0 %v801
    %1499 = vmatprep.subr.bf16.mxu0 %v798
    %1500 = vmatpush1.bf16.msra.mxu0 %v797
    %1501 = vmatprep.subr.bf16.mxu0 %v794
    %1502 = vmatpush1.bf16.msra.mxu0 %v793
    %1503 = vmatprep.subr.bf16.mxu0 %v790
    %1504 = vmatpush1.bf16.msra.mxu0 %v789
    %1505 = vmatprep.subr.bf16.mxu0 %v786
    %1506 = vmatpush1.bf16.msra.mxu0 %v785
    %1507 = vmatprep.subr.bf16.mxu0 %v782
    %1508 = vmatpush1.bf16.msra.mxu0 %v781
    %1509 = vmatprep.subr.bf16.mxu0 0
    %1510 = vmatpush2.bf16.msra.mxu0 0
    %1511 = vmatprep.subr.bf16.mxu0 0
    %1512 = vmatpush2.bf16.msra.mxu0 0
    %1513 = vmatprep.subr.bf16.mxu0 0
    %1514 = vmatpush2.bf16.msra.mxu0 0
    %1515 = vmatprep.subr.bf16.mxu0 0
    %1516 = vmatpush2.bf16.msra.mxu0 0
    %1517 = vmatprep.subr.bf16.mxu0 0
    %1518 = vmatpush2.bf16.msra.mxu0 0
    %1519 = vmatprep.subr.bf16.mxu0 0
    %1520 = vmatpush2.bf16.msra.mxu0 0
    %1521 = vmatprep.subr.bf16.mxu0 0
    %1522 = vmatpush2.bf16.msra.mxu0 0
    %1523 = vmatprep.subr.bf16.mxu0 0
    %1524 = vmatpush2.bf16.msra.mxu0 0
    %1525 = vmatprep.mubr.bf16.mxu0 0
    %1526 = vmatmul.mubr.bf16.gmra.mxu0 %v1428
    %v1527 = vpop.f32.mrf.mxu0
    %v1528 = vadd.f32 0.0, %v1527
    %v1529 = vpop.f32.mrf.mxu0
    %v1530 = vadd.f32 0.0, %v1529
    %v1531 = vpop.f32.mrf.mxu0
    %v1532 = vadd.f32 0.0, %v1531
    %v1533 = vpop.f32.mrf.mxu0
    %v1534 = vadd.f32 0.0, %v1533
    %1535 = vdwg.mxu0
    %v1536 = vadd.f32 %v1442, %v1485
    %v1537 = vadd.f32 %v1443, %v1487
    %v1538 = vadd.f32 %v1444, %v1528
    %v1539 = vadd.f32 %v1445, %v1530
    %v1540 = vadd.f32 %v1446, %v1489
    %v1541 = vadd.f32 %v1447, %v1491
    %v1542 = vadd.f32 %v1448, %v1532
    %v1543 = vadd.f32 %v1449, %v1534
    %v1544 = vmul.f32 %v1536, 0.5
    %v1545 = vmul.f32 %v1537, 0.5
    %v1546 = vmul.f32 %v1538, 0.5
    %v1547 = vmul.f32 %v1540, 0.5
    %v1548 = vmul.f32 %v1541, 0.5
    %v1549 = vmul.f32 %v1542, 0.5
    %v1550 = vtanh.pop %v1544
    %v1551 = vtanh.pop %v1545
    %v1552 = vtanh.pop %v1546
    %v1553 = vtanh.pop %v1547
    %v1554 = vtanh.pop %v1548
    %v1555 = vtanh.pop %v1549
    %v1556 = vmul.f32 %v1550, 0.5
    %v1557 = vmul.f32 %v1551, 0.5
    %v1558 = vmul.f32 %v1552, 0.5
    %v1559 = vmul.f32 %v1553, 0.5
    %v1560 = vmul.f32 %v1554, 0.5
    %v1561 = vmul.f32 %v1555, 0.5
    %v1562 = vadd.f32 %v1556, 0.5
    %v1563 = vadd.f32 %v1557, 0.5
    %v1564 = vadd.f32 %v1558, 0.5
    %v1565 = vadd.f32 %v1559, 0.5
    %v1566 = vadd.f32 %v1560, 0.5
    %v1567 = vadd.f32 %v1561, 0.5
    %v1568 = vtanh.pop %v1539
    %v1569 = vtanh.pop %v1543
    %v1570 = vmul.f32 %v1563, %v1422
    %v1571 = vmul.f32 %v1566, %v1423
    %v1572 = vmul.f32 %v1562, %v1568
    %v1573 = vmul.f32 %v1565, %v1569
    %v1574 = vadd.f32 %v1570, %v1572
    %v1575 = vadd.f32 %v1571, %v1573
    %v1576 = vtanh.pop %v1574
    %v1577 = vtanh.pop %v1575
    %v1578 = vmul.f32 %v1564, %v1576
    %v1579 = vmul.f32 %v1567, %v1577
    %v1580 = vpack.c.bf16 %v1579, %v1578
    %v1582 = vunpack.c.l.b16 %v1580
    %v1583 = vunpack.c.h.b16 %v1580
    %v1584 = vpack.c.b16 %v1582, %v1582
    %v1585 = vpack.c.b16 %v1583, %v1583
    %s1588 = scalar_lea.vmem %s6, 32
    %1589 = vst [vmem:[%s1588] sm:$0xf] %v1584
    %1590 = vst [vmem:[%s1588 + $0x4] sm:$0xf] %v1585
    %s1591 = smul.u32 10, 4
    %s1592 = smul.addr %s1591, 8
    %s1593 = scalar_lea.vmem [#allocation2], %s1592
    %v1594 = vld [vmem:[%s1593] sm:$0xff]
    %v1595 = vld [vmem:[%s1593 + $0x8] sm:$0xff]
    %v1596 = vld [vmem:[%s1593 + $0x10] sm:$0xff]
    %v1597 = vld [vmem:[%s1593 + $0x18] sm:$0xff]
    %v1598 = vld [vmem:[%s1593 + $0x20] sm:$0xff]
    %v1599 = vld [vmem:[%s1593 + $0x28] sm:$0xff]
    %v1600 = vld [vmem:[%s1593 + $0x30] sm:$0xff]
    %v1601 = vld [vmem:[%s1593 + $0x38] sm:$0xff]
    %1602 = vmatprep.subr.bf16.mxu0 %v808
    %1603 = vmatpush1.bf16.msra.mxu0 %v807
    %1604 = vmatprep.subr.bf16.mxu0 %v804
    %1605 = vmatpush1.bf16.msra.mxu0 %v803
    %1606 = vmatprep.subr.bf16.mxu0 %v800
    %1607 = vmatpush1.bf16.msra.mxu0 %v799
    %1608 = vmatprep.subr.bf16.mxu0 %v796
    %1609 = vmatpush1.bf16.msra.mxu0 %v795
    %1610 = vmatprep.subr.bf16.mxu0 %v792
    %1611 = vmatpush1.bf16.msra.mxu0 %v791
    %1612 = vmatprep.subr.bf16.mxu0 %v788
    %1613 = vmatpush1.bf16.msra.mxu0 %v787
    %1614 = vmatprep.subr.bf16.mxu0 %v784
    %1615 = vmatpush1.bf16.msra.mxu0 %v783
    %1616 = vmatprep.subr.bf16.mxu0 %v780
    %1617 = vmatpush1.bf16.msra.mxu0 %v779
    %1618 = vmatprep.subr.bf16.mxu0 0
    %1619 = vmatpush2.bf16.msra.mxu0 0
    %1620 = vmatprep.subr.bf16.mxu0 0
    %1621 = vmatpush2.bf16.msra.mxu0 0
    %1622 = vmatprep.subr.bf16.mxu0 0
    %1623 = vmatpush2.bf16.msra.mxu0 0
    %1624 = vmatprep.subr.bf16.mxu0 0
    %1625 = vmatpush2.bf16.msra.mxu0 0
    %1626 = vmatprep.subr.bf16.mxu0 0
    %1627 = vmatpush2.bf16.msra.mxu0 0
    %1628 = vmatprep.subr.bf16.mxu0 0
    %1629 = vmatpush2.bf16.msra.mxu0 0
    %1630 = vmatprep.subr.bf16.mxu0 0
    %1631 = vmatpush2.bf16.msra.mxu0 0
    %1632 = vmatprep.subr.bf16.mxu0 0
    %1633 = vmatpush2.bf16.msra.mxu0 0
    %1634 = vmatprep.mubr.bf16.mxu0 0
    %1635 = vmatmul.mubr.bf16.gmra.mxu0 %v1580
    %v1636 = vpop.f32.mrf.mxu0
    %v1637 = vadd.f32 0.0, %v1636
    %v1638 = vpop.f32.mrf.mxu0
    %v1639 = vadd.f32 0.0, %v1638
    %v1640 = vpop.f32.mrf.mxu0
    %v1641 = vadd.f32 0.0, %v1640
    %v1642 = vpop.f32.mrf.mxu0
    %v1643 = vadd.f32 0.0, %v1642
    %1644 = vdwg.mxu0
    %1645 = vmatprep.subr.bf16.mxu0 %v810
    %1646 = vmatpush1.bf16.msra.mxu0 %v809
    %1647 = vmatprep.subr.bf16.mxu0 %v806
    %1648 = vmatpush1.bf16.msra.mxu0 %v805
    %1649 = vmatprep.subr.bf16.mxu0 %v802
    %1650 = vmatpush1.bf16.msra.mxu0 %v801
    %1651 = vmatprep.subr.bf16.mxu0 %v798
    %1652 = vmatpush1.bf16.msra.mxu0 %v797
    %1653 = vmatprep.subr.bf16.mxu0 %v794
    %1654 = vmatpush1.bf16.msra.mxu0 %v793
    %1655 = vmatprep.subr.bf16.mxu0 %v790
    %1656 = vmatpush1.bf16.msra.mxu0 %v789
    %1657 = vmatprep.subr.bf16.mxu0 %v786
    %1658 = vmatpush1.bf16.msra.mxu0 %v785
    %1659 = vmatprep.subr.bf16.mxu0 %v782
    %1660 = vmatpush1.bf16.msra.mxu0 %v781
    %1661 = vmatprep.subr.bf16.mxu0 0
    %1662 = vmatpush2.bf16.msra.mxu0 0
    %1663 = vmatprep.subr.bf16.mxu0 0
    %1664 = vmatpush2.bf16.msra.mxu0 0
    %1665 = vmatprep.subr.bf16.mxu0 0
    %1666 = vmatpush2.bf16.msra.mxu0 0
    %1667 = vmatprep.subr.bf16.mxu0 0
    %1668 = vmatpush2.bf16.msra.mxu0 0
    %1669 = vmatprep.subr.bf16.mxu0 0
    %1670 = vmatpush2.bf16.msra.mxu0 0
    %1671 = vmatprep.subr.bf16.mxu0 0
    %1672 = vmatpush2.bf16.msra.mxu0 0
    %1673 = vmatprep.subr.bf16.mxu0 0
    %1674 = vmatpush2.bf16.msra.mxu0 0
    %1675 = vmatprep.subr.bf16.mxu0 0
    %1676 = vmatpush2.bf16.msra.mxu0 0
    %1677 = vmatprep.mubr.bf16.mxu0 0
    %1678 = vmatmul.mubr.bf16.gmra.mxu0 %v1580
    %v1679 = vpop.f32.mrf.mxu0
    %v1680 = vadd.f32 0.0, %v1679
    %v1681 = vpop.f32.mrf.mxu0
    %v1682 = vadd.f32 0.0, %v1681
    %v1683 = vpop.f32.mrf.mxu0
    %v1684 = vadd.f32 0.0, %v1683
    %v1685 = vpop.f32.mrf.mxu0
    %v1686 = vadd.f32 0.0, %v1685
    %1687 = vdwg.mxu0
    %v1688 = vadd.f32 %v1594, %v1637
    %v1689 = vadd.f32 %v1595, %v1639
    %v1690 = vadd.f32 %v1596, %v1680
    %v1691 = vadd.f32 %v1597, %v1682
    %v1692 = vadd.f32 %v1598, %v1641
    %v1693 = vadd.f32 %v1599, %v1643
    %v1694 = vadd.f32 %v1600, %v1684
    %v1695 = vadd.f32 %v1601, %v1686
    %v1696 = vmul.f32 %v1688, 0.5
    %v1697 = vmul.f32 %v1689, 0.5
    %v1698 = vmul.f32 %v1690, 0.5
    %v1699 = vmul.f32 %v1692, 0.5
    %v1700 = vmul.f32 %v1693, 0.5
    %v1701 = vmul.f32 %v1694, 0.5
    %v1702 = vtanh.pop %v1696
    %v1703 = vtanh.pop %v1697
    %v1704 = vtanh.pop %v1698
    %v1705 = vtanh.pop %v1699
    %v1706 = vtanh.pop %v1700
    %v1707 = vtanh.pop %v1701
    %v1708 = vmul.f32 %v1702, 0.5
    %v1709 = vmul.f32 %v1703, 0.5
    %v1710 = vmul.f32 %v1704, 0.5
    %v1711 = vmul.f32 %v1705, 0.5
    %v1712 = vmul.f32 %v1706, 0.5
    %v1713 = vmul.f32 %v1707, 0.5
    %v1714 = vadd.f32 %v1708, 0.5
    %v1715 = vadd.f32 %v1709, 0.5
    %v1716 = vadd.f32 %v1710, 0.5
    %v1717 = vadd.f32 %v1711, 0.5
    %v1718 = vadd.f32 %v1712, 0.5
    %v1719 = vadd.f32 %v1713, 0.5
    %v1720 = vtanh.pop %v1691
    %v1721 = vtanh.pop %v1695
    %v1722 = vmul.f32 %v1715, %v1574
    %v1723 = vmul.f32 %v1718, %v1575
    %v1724 = vmul.f32 %v1714, %v1720
    %v1725 = vmul.f32 %v1717, %v1721
    %v1726 = vadd.f32 %v1722, %v1724
    %v1727 = vadd.f32 %v1723, %v1725
    %v1728 = vtanh.pop %v1726
    %v1729 = vtanh.pop %v1727
    %v1730 = vmul.f32 %v1716, %v1728
    %v1731 = vmul.f32 %v1719, %v1729
    %v1732 = vpack.c.bf16 %v1731, %v1730
    %v1734 = vunpack.c.l.b16 %v1732
    %v1735 = vunpack.c.h.b16 %v1732
    %v1736 = vpack.c.b16 %v1734, %v1734
    %v1737 = vpack.c.b16 %v1735, %v1735
    %s1740 = scalar_lea.vmem %s6, 40
    %1741 = vst [vmem:[%s1740] sm:$0xf] %v1736
    %1742 = vst [vmem:[%s1740 + $0x4] sm:$0xf] %v1737
    %s1743 = smul.u32 12, 4
    %s1744 = smul.addr %s1743, 8
    %s1745 = scalar_lea.vmem [#allocation2], %s1744
    %v1746 = vld [vmem:[%s1745] sm:$0xff]
    %v1747 = vld [vmem:[%s1745 + $0x8] sm:$0xff]
    %v1748 = vld [vmem:[%s1745 + $0x10] sm:$0xff]
    %v1749 = vld [vmem:[%s1745 + $0x18] sm:$0xff]
    %v1750 = vld [vmem:[%s1745 + $0x20] sm:$0xff]
    %v1751 = vld [vmem:[%s1745 + $0x28] sm:$0xff]
    %v1752 = vld [vmem:[%s1745 + $0x30] sm:$0xff]
    %v1753 = vld [vmem:[%s1745 + $0x38] sm:$0xff]
    %1754 = vmatprep.subr.bf16.mxu0 %v808
    %1755 = vmatpush1.bf16.msra.mxu0 %v807
    %1756 = vmatprep.subr.bf16.mxu0 %v804
    %1757 = vmatpush1.bf16.msra.mxu0 %v803
    %1758 = vmatprep.subr.bf16.mxu0 %v800
    %1759 = vmatpush1.bf16.msra.mxu0 %v799
    %1760 = vmatprep.subr.bf16.mxu0 %v796
    %1761 = vmatpush1.bf16.msra.mxu0 %v795
    %1762 = vmatprep.subr.bf16.mxu0 %v792
    %1763 = vmatpush1.bf16.msra.mxu0 %v791
    %1764 = vmatprep.subr.bf16.mxu0 %v788
    %1765 = vmatpush1.bf16.msra.mxu0 %v787
    %1766 = vmatprep.subr.bf16.mxu0 %v784
    %1767 = vmatpush1.bf16.msra.mxu0 %v783
    %1768 = vmatprep.subr.bf16.mxu0 %v780
    %1769 = vmatpush1.bf16.msra.mxu0 %v779
    %1770 = vmatprep.subr.bf16.mxu0 0
    %1771 = vmatpush2.bf16.msra.mxu0 0
    %1772 = vmatprep.subr.bf16.mxu0 0
    %1773 = vmatpush2.bf16.msra.mxu0 0
    %1774 = vmatprep.subr.bf16.mxu0 0
    %1775 = vmatpush2.bf16.msra.mxu0 0
    %1776 = vmatprep.subr.bf16.mxu0 0
    %1777 = vmatpush2.bf16.msra.mxu0 0
    %1778 = vmatprep.subr.bf16.mxu0 0
    %1779 = vmatpush2.bf16.msra.mxu0 0
    %1780 = vmatprep.subr.bf16.mxu0 0
    %1781 = vmatpush2.bf16.msra.mxu0 0
    %1782 = vmatprep.subr.bf16.mxu0 0
    %1783 = vmatpush2.bf16.msra.mxu0 0
    %1784 = vmatprep.subr.bf16.mxu0 0
    %1785 = vmatpush2.bf16.msra.mxu0 0
    %1786 = vmatprep.mubr.bf16.mxu0 0
    %1787 = vmatmul.mubr.bf16.gmra.mxu0 %v1732
    %v1788 = vpop.f32.mrf.mxu0
    %v1789 = vadd.f32 0.0, %v1788
    %v1790 = vpop.f32.mrf.mxu0
    %v1791 = vadd.f32 0.0, %v1790
    %v1792 = vpop.f32.mrf.mxu0
    %v1793 = vadd.f32 0.0, %v1792
    %v1794 = vpop.f32.mrf.mxu0
    %v1795 = vadd.f32 0.0, %v1794
    %1796 = vdwg.mxu0
    %1797 = vmatprep.subr.bf16.mxu0 %v810
    %1798 = vmatpush1.bf16.msra.mxu0 %v809
    %1799 = vmatprep.subr.bf16.mxu0 %v806
    %1800 = vmatpush1.bf16.msra.mxu0 %v805
    %1801 = vmatprep.subr.bf16.mxu0 %v802
    %1802 = vmatpush1.bf16.msra.mxu0 %v801
    %1803 = vmatprep.subr.bf16.mxu0 %v798
    %1804 = vmatpush1.bf16.msra.mxu0 %v797
    %1805 = vmatprep.subr.bf16.mxu0 %v794
    %1806 = vmatpush1.bf16.msra.mxu0 %v793
    %1807 = vmatprep.subr.bf16.mxu0 %v790
    %1808 = vmatpush1.bf16.msra.mxu0 %v789
    %1809 = vmatprep.subr.bf16.mxu0 %v786
    %1810 = vmatpush1.bf16.msra.mxu0 %v785
    %1811 = vmatprep.subr.bf16.mxu0 %v782
    %1812 = vmatpush1.bf16.msra.mxu0 %v781
    %1813 = vmatprep.subr.bf16.mxu0 0
    %1814 = vmatpush2.bf16.msra.mxu0 0
    %1815 = vmatprep.subr.bf16.mxu0 0
    %1816 = vmatpush2.bf16.msra.mxu0 0
    %1817 = vmatprep.subr.bf16.mxu0 0
    %1818 = vmatpush2.bf16.msra.mxu0 0
    %1819 = vmatprep.subr.bf16.mxu0 0
    %1820 = vmatpush2.bf16.msra.mxu0 0
    %1821 = vmatprep.subr.bf16.mxu0 0
    %1822 = vmatpush2.bf16.msra.mxu0 0
    %1823 = vmatprep.subr.bf16.mxu0 0
    %1824 = vmatpush2.bf16.msra.mxu0 0
    %1825 = vmatprep.subr.bf16.mxu0 0
    %1826 = vmatpush2.bf16.msra.mxu0 0
    %1827 = vmatprep.subr.bf16.mxu0 0
    %1828 = vmatpush2.bf16.msra.mxu0 0
    %1829 = vmatprep.mubr.bf16.mxu0 0
    %1830 = vmatmul.mubr.bf16.gmra.mxu0 %v1732
    %v1831 = vpop.f32.mrf.mxu0
    %v1832 = vadd.f32 0.0, %v1831
    %v1833 = vpop.f32.mrf.mxu0
    %v1834 = vadd.f32 0.0, %v1833
    %v1835 = vpop.f32.mrf.mxu0
    %v1836 = vadd.f32 0.0, %v1835
    %v1837 = vpop.f32.mrf.mxu0
    %v1838 = vadd.f32 0.0, %v1837
    %1839 = vdwg.mxu0
    %v1840 = vadd.f32 %v1746, %v1789
    %v1841 = vadd.f32 %v1747, %v1791
    %v1842 = vadd.f32 %v1748, %v1832
    %v1843 = vadd.f32 %v1749, %v1834
    %v1844 = vadd.f32 %v1750, %v1793
    %v1845 = vadd.f32 %v1751, %v1795
    %v1846 = vadd.f32 %v1752, %v1836
    %v1847 = vadd.f32 %v1753, %v1838
    %v1848 = vmul.f32 %v1840, 0.5
    %v1849 = vmul.f32 %v1841, 0.5
    %v1850 = vmul.f32 %v1842, 0.5
    %v1851 = vmul.f32 %v1844, 0.5
    %v1852 = vmul.f32 %v1845, 0.5
    %v1853 = vmul.f32 %v1846, 0.5
    %v1854 = vtanh.pop %v1848
    %v1855 = vtanh.pop %v1849
    %v1856 = vtanh.pop %v1850
    %v1857 = vtanh.pop %v1851
    %v1858 = vtanh.pop %v1852
    %v1859 = vtanh.pop %v1853
    %v1860 = vmul.f32 %v1854, 0.5
    %v1861 = vmul.f32 %v1855, 0.5
    %v1862 = vmul.f32 %v1856, 0.5
    %v1863 = vmul.f32 %v1857, 0.5
    %v1864 = vmul.f32 %v1858, 0.5
    %v1865 = vmul.f32 %v1859, 0.5
    %v1866 = vadd.f32 %v1860, 0.5
    %v1867 = vadd.f32 %v1861, 0.5
    %v1868 = vadd.f32 %v1862, 0.5
    %v1869 = vadd.f32 %v1863, 0.5
    %v1870 = vadd.f32 %v1864, 0.5
    %v1871 = vadd.f32 %v1865, 0.5
    %v1872 = vtanh.pop %v1843
    %v1873 = vtanh.pop %v1847
    %v1874 = vmul.f32 %v1867, %v1726
    %v1875 = vmul.f32 %v1870, %v1727
    %v1876 = vmul.f32 %v1866, %v1872
    %v1877 = vmul.f32 %v1869, %v1873
    %v1878 = vadd.f32 %v1874, %v1876
    %v1879 = vadd.f32 %v1875, %v1877
    %v1880 = vtanh.pop %v1878
    %v1881 = vtanh.pop %v1879
    %v1882 = vmul.f32 %v1868, %v1880
    %v1883 = vmul.f32 %v1871, %v1881
    %v1884 = vpack.c.bf16 %v1883, %v1882
    %v1886 = vunpack.c.l.b16 %v1884
    %v1887 = vunpack.c.h.b16 %v1884
    %v1888 = vpack.c.b16 %v1886, %v1886
    %v1889 = vpack.c.b16 %v1887, %v1887
    %s1892 = scalar_lea.vmem %s6, 48
    %1893 = vst [vmem:[%s1892] sm:$0xf] %v1888
    %1894 = vst [vmem:[%s1892 + $0x4] sm:$0xf] %v1889
    %s1895 = smul.u32 14, 4
    %s1896 = smul.addr %s1895, 8
    %s1897 = scalar_lea.vmem [#allocation2], %s1896
    %v1898 = vld [vmem:[%s1897] sm:$0xff]
    %v1899 = vld [vmem:[%s1897 + $0x8] sm:$0xff]
    %v1900 = vld [vmem:[%s1897 + $0x10] sm:$0xff]
    %v1901 = vld [vmem:[%s1897 + $0x18] sm:$0xff]
    %v1902 = vld [vmem:[%s1897 + $0x20] sm:$0xff]
    %v1903 = vld [vmem:[%s1897 + $0x28] sm:$0xff]
    %v1904 = vld [vmem:[%s1897 + $0x30] sm:$0xff]
    %v1905 = vld [vmem:[%s1897 + $0x38] sm:$0xff]
    %1906 = vmatprep.subr.bf16.mxu0 %v808
    %1907 = vmatpush1.bf16.msra.mxu0 %v807
    %1908 = vmatprep.subr.bf16.mxu0 %v804
    %1909 = vmatpush1.bf16.msra.mxu0 %v803
    %1910 = vmatprep.subr.bf16.mxu0 %v800
    %1911 = vmatpush1.bf16.msra.mxu0 %v799
    %1912 = vmatprep.subr.bf16.mxu0 %v796
    %1913 = vmatpush1.bf16.msra.mxu0 %v795
    %1914 = vmatprep.subr.bf16.mxu0 %v792
    %1915 = vmatpush1.bf16.msra.mxu0 %v791
    %1916 = vmatprep.subr.bf16.mxu0 %v788
    %1917 = vmatpush1.bf16.msra.mxu0 %v787
    %1918 = vmatprep.subr.bf16.mxu0 %v784
    %1919 = vmatpush1.bf16.msra.mxu0 %v783
    %1920 = vmatprep.subr.bf16.mxu0 %v780
    %1921 = vmatpush1.bf16.msra.mxu0 %v779
    %1922 = vmatprep.subr.bf16.mxu0 0
    %1923 = vmatpush2.bf16.msra.mxu0 0
    %1924 = vmatprep.subr.bf16.mxu0 0
    %1925 = vmatpush2.bf16.msra.mxu0 0
    %1926 = vmatprep.subr.bf16.mxu0 0
    %1927 = vmatpush2.bf16.msra.mxu0 0
    %1928 = vmatprep.subr.bf16.mxu0 0
    %1929 = vmatpush2.bf16.msra.mxu0 0
    %1930 = vmatprep.subr.bf16.mxu0 0
    %1931 = vmatpush2.bf16.msra.mxu0 0
    %1932 = vmatprep.subr.bf16.mxu0 0
    %1933 = vmatpush2.bf16.msra.mxu0 0
    %1934 = vmatprep.subr.bf16.mxu0 0
    %1935 = vmatpush2.bf16.msra.mxu0 0
    %1936 = vmatprep.subr.bf16.mxu0 0
    %1937 = vmatpush2.bf16.msra.mxu0 0
    %1938 = vmatprep.mubr.bf16.mxu0 0
    %1939 = vmatmul.mubr.bf16.gmra.mxu0 %v1884
    %v1940 = vpop.f32.mrf.mxu0
    %v1941 = vadd.f32 0.0, %v1940
    %v1942 = vpop.f32.mrf.mxu0
    %v1943 = vadd.f32 0.0, %v1942
    %v1944 = vpop.f32.mrf.mxu0
    %v1945 = vadd.f32 0.0, %v1944
    %v1946 = vpop.f32.mrf.mxu0
    %v1947 = vadd.f32 0.0, %v1946
    %1948 = vdwg.mxu0
    %1949 = vmatprep.subr.bf16.mxu0 %v810
    %1950 = vmatpush1.bf16.msra.mxu0 %v809
    %1951 = vmatprep.subr.bf16.mxu0 %v806
    %1952 = vmatpush1.bf16.msra.mxu0 %v805
    %1953 = vmatprep.subr.bf16.mxu0 %v802
    %1954 = vmatpush1.bf16.msra.mxu0 %v801
    %1955 = vmatprep.subr.bf16.mxu0 %v798
    %1956 = vmatpush1.bf16.msra.mxu0 %v797
    %1957 = vmatprep.subr.bf16.mxu0 %v794
    %1958 = vmatpush1.bf16.msra.mxu0 %v793
    %1959 = vmatprep.subr.bf16.mxu0 %v790
    %1960 = vmatpush1.bf16.msra.mxu0 %v789
    %1961 = vmatprep.subr.bf16.mxu0 %v786
    %1962 = vmatpush1.bf16.msra.mxu0 %v785
    %1963 = vmatprep.subr.bf16.mxu0 %v782
    %1964 = vmatpush1.bf16.msra.mxu0 %v781
    %1965 = vmatprep.subr.bf16.mxu0 0
    %1966 = vmatpush2.bf16.msra.mxu0 0
    %1967 = vmatprep.subr.bf16.mxu0 0
    %1968 = vmatpush2.bf16.msra.mxu0 0
    %1969 = vmatprep.subr.bf16.mxu0 0
    %1970 = vmatpush2.bf16.msra.mxu0 0
    %1971 = vmatprep.subr.bf16.mxu0 0
    %1972 = vmatpush2.bf16.msra.mxu0 0
    %1973 = vmatprep.subr.bf16.mxu0 0
    %1974 = vmatpush2.bf16.msra.mxu0 0
    %1975 = vmatprep.subr.bf16.mxu0 0
    %1976 = vmatpush2.bf16.msra.mxu0 0
    %1977 = vmatprep.subr.bf16.mxu0 0
    %1978 = vmatpush2.bf16.msra.mxu0 0
    %1979 = vmatprep.subr.bf16.mxu0 0
    %1980 = vmatpush2.bf16.msra.mxu0 0
    %1981 = vmatprep.mubr.bf16.mxu0 0
    %1982 = vmatmul.mubr.bf16.gmra.mxu0 %v1884
    %v1983 = vpop.f32.mrf.mxu0
    %v1984 = vadd.f32 0.0, %v1983
    %v1985 = vpop.f32.mrf.mxu0
    %v1986 = vadd.f32 0.0, %v1985
    %v1987 = vpop.f32.mrf.mxu0
    %v1988 = vadd.f32 0.0, %v1987
    %v1989 = vpop.f32.mrf.mxu0
    %v1990 = vadd.f32 0.0, %v1989
    %1991 = vdwg.mxu0
    %v1992 = vadd.f32 %v1898, %v1941
    %v1993 = vadd.f32 %v1899, %v1943
    %v1994 = vadd.f32 %v1900, %v1984
    %v1995 = vadd.f32 %v1901, %v1986
    %v1996 = vadd.f32 %v1902, %v1945
    %v1997 = vadd.f32 %v1903, %v1947
    %v1998 = vadd.f32 %v1904, %v1988
    %v1999 = vadd.f32 %v1905, %v1990
    %v2000 = vmul.f32 %v1992, 0.5
    %v2001 = vmul.f32 %v1993, 0.5
    %v2002 = vmul.f32 %v1994, 0.5
    %v2003 = vmul.f32 %v1996, 0.5
    %v2004 = vmul.f32 %v1997, 0.5
    %v2005 = vmul.f32 %v1998, 0.5
    %v2006 = vtanh.pop %v2000
    %v2007 = vtanh.pop %v2001
    %v2008 = vtanh.pop %v2002
    %v2009 = vtanh.pop %v2003
    %v2010 = vtanh.pop %v2004
    %v2011 = vtanh.pop %v2005
    %v2012 = vmul.f32 %v2006, 0.5
    %v2013 = vmul.f32 %v2007, 0.5
    %v2014 = vmul.f32 %v2008, 0.5
    %v2015 = vmul.f32 %v2009, 0.5
    %v2016 = vmul.f32 %v2010, 0.5
    %v2017 = vmul.f32 %v2011, 0.5
    %v2018 = vadd.f32 %v2012, 0.5
    %v2019 = vadd.f32 %v2013, 0.5
    %v2020 = vadd.f32 %v2014, 0.5
    %v2021 = vadd.f32 %v2015, 0.5
    %v2022 = vadd.f32 %v2016, 0.5
    %v2023 = vadd.f32 %v2017, 0.5
    %v2024 = vtanh.pop %v1995
    %v2025 = vtanh.pop %v1999
    %v2026 = vmul.f32 %v2019, %v1878
    %v2027 = vmul.f32 %v2022, %v1879
    %v2028 = vmul.f32 %v2018, %v2024
    %v2029 = vmul.f32 %v2021, %v2025
    %v2030 = vadd.f32 %v2026, %v2028
    %v2031 = vadd.f32 %v2027, %v2029
    %v2032 = vtanh.pop %v2030
    %v2033 = vtanh.pop %v2031
    %v2034 = vmul.f32 %v2020, %v2032
    %v2035 = vmul.f32 %v2023, %v2033
    %v2036 = vpack.c.bf16 %v2035, %v2034
    %v2038 = vunpack.c.l.b16 %v2036
    %v2039 = vunpack.c.h.b16 %v2036
    %v2040 = vpack.c.b16 %v2038, %v2038
    %v2041 = vpack.c.b16 %v2039, %v2039
    %s2044 = scalar_lea.vmem %s6, 56
    %2045 = vst [vmem:[%s2044] sm:$0xf] %v2040
    %2046 = vst [vmem:[%s2044 + $0x4] sm:$0xf] %v2041
    %2047 = vst [vmem:[%s7] sm:$0xff] %v2034
    %2048 = vst [vmem:[%s7 + $0x8] sm:$0xff] %v2035
    %2049 = vst [vmem:[%s8] sm:$0xff] %v2030
    %2050 = vst [vmem:[%s8 + $0x8] sm:$0xff] %v2031
    // Predicated region
    $region38: #{rnn_forward.2} parent=1 // pred_check
      _
    $region39: #{rnn_forward.2} parent=1 // pred_check_branch
      %2052 = sbr.rel (0) target = $region41
    $region40: #{rnn_forward.2} parent=1 // pred_region
      _
    $region41: #{rnn_forward.2} parent=1 // pred_fallthru
      _
    // Predicated region
    $region42: #{rnn_forward.2} parent=1 // pred_check
      _
    $region43: #{rnn_forward.2} parent=1 // pred_check_branch
      %2054 = sbr.rel (0) target = $region45
    $region44: #{rnn_forward.2} parent=1 // pred_region
      _
    $region45: #{rnn_forward.2} parent=1 // pred_fallthru
      _
    // Predicated region
    $region46: #{rnn_forward.2} parent=1 // pred_check
      _
    $region47: #{rnn_forward.2} parent=1 // pred_check_branch
      %2056 = sbr.rel (0) target = $region49
    $region48: #{rnn_forward.2} parent=1 // pred_region
      _
    $region49: #{rnn_forward.2} parent=1 // pred_fallthru
      _
    // Predicated region
    $region50: #{rnn_forward.2} parent=1 // pred_check
      _
    $region51: #{rnn_forward.2} parent=1 // pred_check_branch
      %2058 = sbr.rel (0) target = $region53
    $region52: #{rnn_forward.2} parent=1 // pred_region
      _
    $region53: #{rnn_forward.2} parent=1 // pred_fallthru
      _
    // Predicated region
    $region54: #{rnn_forward.2} parent=1 // pred_check
      _
    $region55: #{rnn_forward.2} parent=1 // pred_check_branch
      %2060 = sbr.rel (0) target = $region57
    $region56: #{rnn_forward.2} parent=1 // pred_region
      _
    $region57: #{rnn_forward.2} parent=1 // pred_fallthru
      _
    // Predicated region
    $region58: #{rnn_forward.2} parent=1 // pred_check
      _
    $region59: #{rnn_forward.2} parent=1 // pred_check_branch
      %2062 = sbr.rel (0) target = $region61
    $region60: #{rnn_forward.2} parent=1 // pred_region
      _
    $region61: #{rnn_forward.2} parent=1 // pred_fallthru
      _
    %2063 = vsyncpa [#allocation4], 1
    %2064 = vsyncpa [#allocation6], 1

// kernel: rnn_forward.3
$region0: #{rnn_forward.3}
  #allocation0 [shape = 'u32[]', space=smem, size = 0x4, offset = 0x4, fixed_abs, tag = 'smem constant byte address 0x4 - core index']
  #allocation1 [shape = 'u32[144,128]{1,0:T(1,128)}', space=vmem, size = 0x12000, scoped, tag = 'internal scratch']
  #allocation2 [shape = 'f32[128,512]{1,0:T(8,128)}', space=vmem, size = 0x40000, scoped, tag = 'scratch operand']
  %s0 = inlined_call_operand.vmem [shape: bf16[8,16,128], index: 0, kind: input, shape index: {}]
  %s1 = inlined_call_operand.vmem [shape: bf16[128,512], index: 1, kind: input, shape index: {}]
  %s2 = inlined_call_operand.vmem [shape: bf16[128,512], index: 2, kind: input, shape index: {}]
  %s3 = inlined_call_operand.vmem [shape: f32[1,512], index: 3, kind: input, shape index: {}]
  %s4 = inlined_call_operand.vmem [shape: f32[16,128], index: 4, kind: input, shape index: {}]
  %s5 = inlined_call_operand.vmem [shape: f32[16,128], index: 5, kind: input, shape index: {}]
  %s6 = inlined_call_operand.vmem [shape: bf16[8,16,128], index: 6, kind: output, shape index: {0}]
  %s7 = inlined_call_operand.vmem [shape: f32[16,128], index: 7, kind: output, shape index: {1}]
  %s8 = inlined_call_operand.vmem [shape: f32[16,128], index: 8, kind: output, shape index: {2}]
  %9 = xla_tuple %s6, %s7, %s8
  %s10 = sld [smem:[#allocation0]]
  $region54: #{rnn_forward.3} parent=0
    _
  %s12 = ssub.s32 1, %s10
  %s13 = scalar_select 0, %s12, %s10
  // Predicated region
  $region2: #{rnn_forward.3} parent=0 // pred_check
    _
  $region3: #{rnn_forward.3} parent=0 // pred_check_branch
    %15 = sbr.rel (0) target = $region5
  $region4: #{rnn_forward.3} parent=0 // pred_region
    _
  $region5: #{rnn_forward.3} parent=0 // pred_fallthru
    _
  // Predicated region
  $region6: #{rnn_forward.3} parent=0 // pred_check
    _
  $region7: #{rnn_forward.3} parent=0 // pred_check_branch
    %17 = sbr.rel (0) target = $region9
  $region8: #{rnn_forward.3} parent=0 // pred_region
    _
  $region9: #{rnn_forward.3} parent=0 // pred_fallthru
    _
  // Predicated region
  $region10: #{rnn_forward.3} parent=0 // pred_check
    _
  $region11: #{rnn_forward.3} parent=0 // pred_check_branch
    %19 = sbr.rel (0) target = $region13
  $region12: #{rnn_forward.3} parent=0 // pred_region
    _
  $region13: #{rnn_forward.3} parent=0 // pred_fallthru
    _
  // Predicated region
  $region14: #{rnn_forward.3} parent=0 // pred_check
    _
  $region15: #{rnn_forward.3} parent=0 // pred_check_branch
    %21 = sbr.rel (0) target = $region17
  $region16: #{rnn_forward.3} parent=0 // pred_region
    _
  $region17: #{rnn_forward.3} parent=0 // pred_fallthru
    _
  // Predicated region
  $region18: #{rnn_forward.3} parent=0 // pred_check
    _
  $region19: #{rnn_forward.3} parent=0 // pred_check_branch
    %23 = sbr.rel (0) target = $region21
  $region20: #{rnn_forward.3} parent=0 // pred_region
    _
  $region21: #{rnn_forward.3} parent=0 // pred_fallthru
    _
  // Predicated region
  $region22: #{rnn_forward.3} parent=0 // pred_check
    _
  $region23: #{rnn_forward.3} parent=0 // pred_check_branch
    %25 = sbr.rel (0) target = $region25
  $region24: #{rnn_forward.3} parent=0 // pred_region
    _
  $region25: #{rnn_forward.3} parent=0 // pred_fallthru
    _
  %p27 = scmp.eq.s32.totalorder 0, 0
  // Predicated region
  $region26: #{rnn_forward.3} parent=0 // pred_check
    %p28 = pneg %p27
  $region27: #{rnn_forward.3} parent=0 // pred_check_branch
    %30 = sbr.rel (%p28) target = $region29
  $region28: #{rnn_forward.3} parent=0 // pred_region
    %v31 = vld [vmem:[%s4] sm:$0xff]
    %v32 = vld [vmem:[%s4 + $0x8] sm:$0xff]
    %33 = vst [vmem:[%s7] sm:$0xff] %v31
    %34 = vst [vmem:[%s7 + $0x8] sm:$0xff] %v32
    %v35 = vld [vmem:[%s5] sm:$0xff]
    %v36 = vld [vmem:[%s5 + $0x8] sm:$0xff]
    %37 = vst [vmem:[%s8] sm:$0xff] %v35
    %38 = vst [vmem:[%s8 + $0x8] sm:$0xff] %v36
  $region29: #{rnn_forward.3} parent=0 // pred_fallthru
    _
  %v39 = vld [vmem:[%s0] sm:$0xf]
  %v40 = vld [vmem:[%s0 + $0x4] sm:$0xf]
  %v41 = vld [vmem:[%s0 + $0x8] sm:$0xf]
  %v42 = vld [vmem:[%s0 + $0xc] sm:$0xf]
  %v43 = vld [vmem:[%s0 + $0x10] sm:$0xf]
  %v44 = vld [vmem:[%s0 + $0x14] sm:$0xf]
  %v45 = vld [vmem:[%s0 + $0x18] sm:$0xf]
  %v46 = vld [vmem:[%s0 + $0x1c] sm:$0xf]
  %v47 = vld [vmem:[%s0 + $0x20] sm:$0xf]
  %v48 = vld [vmem:[%s0 + $0x24] sm:$0xf]
  %v49 = vld [vmem:[%s0 + $0x28] sm:$0xf]
  %v50 = vld [vmem:[%s0 + $0x2c] sm:$0xf]
  %v51 = vld [vmem:[%s0 + $0x30] sm:$0xf]
  %v52 = vld [vmem:[%s0 + $0x34] sm:$0xf]
  %v53 = vld [vmem:[%s0 + $0x38] sm:$0xf]
  %v54 = vld [vmem:[%s0 + $0x3c] sm:$0xf]
  %v55 = vld [vmem:[%s1] sm:$0xff]
  %v56 = vld [vmem:[%s1 + $0x8] sm:$0xff]
  %v57 = vld [vmem:[%s1 + $0x10] sm:$0xff]
  %v58 = vld [vmem:[%s1 + $0x18] sm:$0xff]
  %v59 = vld [vmem:[%s1 + $0x20] sm:$0xff]
  %v60 = vld [vmem:[%s1 + $0x28] sm:$0xff]
  %v61 = vld [vmem:[%s1 + $0x30] sm:$0xff]
  %v62 = vld [vmem:[%s1 + $0x38] sm:$0xff]
  %v63 = vld [vmem:[%s1 + $0x40] sm:$0xff]
  %v64 = vld [vmem:[%s1 + $0x48] sm:$0xff]
  %v65 = vld [vmem:[%s1 + $0x50] sm:$0xff]
  %v66 = vld [vmem:[%s1 + $0x58] sm:$0xff]
  %v67 = vld [vmem:[%s1 + $0x60] sm:$0xff]
  %v68 = vld [vmem:[%s1 + $0x68] sm:$0xff]
  %v69 = vld [vmem:[%s1 + $0x70] sm:$0xff]
  %v70 = vld [vmem:[%s1 + $0x78] sm:$0xff]
  %v71 = vld [vmem:[%s1 + $0x80] sm:$0xff]
  %v72 = vld [vmem:[%s1 + $0x88] sm:$0xff]
  %v73 = vld [vmem:[%s1 + $0x90] sm:$0xff]
  %v74 = vld [vmem:[%s1 + $0x98] sm:$0xff]
  %v75 = vld [vmem:[%s1 + $0xa0] sm:$0xff]
  %v76 = vld [vmem:[%s1 + $0xa8] sm:$0xff]
  %v77 = vld [vmem:[%s1 + $0xb0] sm:$0xff]
  %v78 = vld [vmem:[%s1 + $0xb8] sm:$0xff]
  %v79 = vld [vmem:[%s1 + $0xc0] sm:$0xff]
  %v80 = vld [vmem:[%s1 + $0xc8] sm:$0xff]
  %v81 = vld [vmem:[%s1 + $0xd0] sm:$0xff]
  %v82 = vld [vmem:[%s1 + $0xd8] sm:$0xff]
  %v83 = vld [vmem:[%s1 + $0xe0] sm:$0xff]
  %v84 = vld [vmem:[%s1 + $0xe8] sm:$0xff]
  %v85 = vld [vmem:[%s1 + $0xf0] sm:$0xff]
  %v86 = vld [vmem:[%s1 + $0xf8] sm:$0xff]
  %v87 = vld [vmem:[%s3] sm:$0xf]
  %v89 = vlaneseq
  %v90 = vshrl.u32 %v89, 7
  %v91 = vsub.s32 0, %v90
  %v92 = vrot.slane %v87, %v91
  %v93 = vlaneseq
  %v94 = vshrl.u32 %v93, 7
  %v95 = vsub.s32 1, %v94
  %v96 = vrot.slane %v87, %v95
  %v97 = vlaneseq
  %v98 = vshrl.u32 %v97, 7
  %v99 = vsub.s32 2, %v98
  %v100 = vrot.slane %v87, %v99
  %v101 = vlaneseq
  %v102 = vshrl.u32 %v101, 7
  %v103 = vsub.s32 3, %v102
  %v104 = vrot.slane %v87, %v103
  %v125 = vunpack.c.l.b16 %v39
  %v126 = vunpack.c.l.b16 %v40
  %v127 = vunpack.c.l.b16 %v41
  %v128 = vunpack.c.l.b16 %v42
  %v129 = vunpack.c.l.b16 %v43
  %v130 = vunpack.c.l.b16 %v44
  %v131 = vunpack.c.l.b16 %v45
  %v132 = vunpack.c.l.b16 %v46
  %v133 = vunpack.c.l.b16 %v47
  %v134 = vunpack.c.l.b16 %v48
  %v135 = vunpack.c.l.b16 %v49
  %v136 = vunpack.c.l.b16 %v50
  %v137 = vunpack.c.l.b16 %v51
  %v138 = vunpack.c.l.b16 %v52
  %v139 = vunpack.c.l.b16 %v53
  %v140 = vunpack.c.l.b16 %v54
  %v141 = vpack.c.b16 %v126, %v125
  %v142 = vpack.c.b16 %v128, %v127
  %v143 = vpack.c.b16 %v130, %v129
  %v144 = vpack.c.b16 %v132, %v131
  %v145 = vpack.c.b16 %v134, %v133
  %v146 = vpack.c.b16 %v136, %v135
  %v147 = vpack.c.b16 %v138, %v137
  %v148 = vpack.c.b16 %v140, %v139
  %v189 = vunpack.c.l.b16 %v55
  %v190 = vunpack.c.h.b16 %v55
  %v191 = vunpack.c.l.b16 %v56
  %v192 = vunpack.c.h.b16 %v56
  %v193 = vunpack.c.l.b16 %v57
  %v194 = vunpack.c.h.b16 %v57
  %v195 = vunpack.c.l.b16 %v58
  %v196 = vunpack.c.h.b16 %v58
  %v197 = vunpack.c.l.b16 %v59
  %v198 = vunpack.c.h.b16 %v59
  %v199 = vunpack.c.l.b16 %v60
  %v200 = vunpack.c.h.b16 %v60
  %v201 = vunpack.c.l.b16 %v61
  %v202 = vunpack.c.h.b16 %v61
  %v203 = vunpack.c.l.b16 %v62
  %v204 = vunpack.c.h.b16 %v62
  %v205 = vunpack.c.l.b16 %v63
  %v206 = vunpack.c.h.b16 %v63
  %v207 = vunpack.c.l.b16 %v64
  %v208 = vunpack.c.h.b16 %v64
  %v209 = vunpack.c.l.b16 %v65
  %v210 = vunpack.c.h.b16 %v65
  %v211 = vunpack.c.l.b16 %v66
  %v212 = vunpack.c.h.b16 %v66
  %v213 = vunpack.c.l.b16 %v67
  %v214 = vunpack.c.h.b16 %v67
  %v215 = vunpack.c.l.b16 %v68
  %v216 = vunpack.c.h.b16 %v68
  %v217 = vunpack.c.l.b16 %v69
  %v218 = vunpack.c.h.b16 %v69
  %v219 = vunpack.c.l.b16 %v70
  %v220 = vunpack.c.h.b16 %v70
  %v221 = vunpack.c.l.b16 %v71
  %v222 = vunpack.c.h.b16 %v71
  %v223 = vunpack.c.l.b16 %v72
  %v224 = vunpack.c.h.b16 %v72
  %v225 = vunpack.c.l.b16 %v73
  %v226 = vunpack.c.h.b16 %v73
  %v227 = vunpack.c.l.b16 %v74
  %v228 = vunpack.c.h.b16 %v74
  %v229 = vunpack.c.l.b16 %v75
  %v230 = vunpack.c.h.b16 %v75
  %v231 = vunpack.c.l.b16 %v76
  %v232 = vunpack.c.h.b16 %v76
  %v233 = vunpack.c.l.b16 %v77
  %v234 = vunpack.c.h.b16 %v77
  %v235 = vunpack.c.l.b16 %v78
  %v236 = vunpack.c.h.b16 %v78
  %v237 = vunpack.c.l.b16 %v79
  %v238 = vunpack.c.h.b16 %v79
  %v239 = vunpack.c.l.b16 %v80
  %v240 = vunpack.c.h.b16 %v80
  %v241 = vunpack.c.l.b16 %v81
  %v242 = vunpack.c.h.b16 %v81
  %v243 = vunpack.c.l.b16 %v82
  %v244 = vunpack.c.h.b16 %v82
  %v245 = vunpack.c.l.b16 %v83
  %v246 = vunpack.c.h.b16 %v83
  %v247 = vunpack.c.l.b16 %v84
  %v248 = vunpack.c.h.b16 %v84
  %v249 = vunpack.c.l.b16 %v85
  %v250 = vunpack.c.h.b16 %v85
  %v251 = vunpack.c.l.b16 %v86
  %v252 = vunpack.c.h.b16 %v86
  %v253 = vpack.c.b16 %v193, %v189
  %v254 = vpack.c.b16 %v194, %v190
  %v255 = vpack.c.b16 %v195, %v191
  %v256 = vpack.c.b16 %v196, %v192
  %v257 = vpack.c.b16 %v201, %v197
  %v258 = vpack.c.b16 %v202, %v198
  %v259 = vpack.c.b16 %v203, %v199
  %v260 = vpack.c.b16 %v204, %v200
  %v261 = vpack.c.b16 %v209, %v205
  %v262 = vpack.c.b16 %v210, %v206
  %v263 = vpack.c.b16 %v211, %v207
  %v264 = vpack.c.b16 %v212, %v208
  %v265 = vpack.c.b16 %v217, %v213
  %v266 = vpack.c.b16 %v218, %v214
  %v267 = vpack.c.b16 %v219, %v215
  %v268 = vpack.c.b16 %v220, %v216
  %v269 = vpack.c.b16 %v225, %v221
  %v270 = vpack.c.b16 %v226, %v222
  %v271 = vpack.c.b16 %v227, %v223
  %v272 = vpack.c.b16 %v228, %v224
  %v273 = vpack.c.b16 %v233, %v229
  %v274 = vpack.c.b16 %v234, %v230
  %v275 = vpack.c.b16 %v235, %v231
  %v276 = vpack.c.b16 %v236, %v232
  %v277 = vpack.c.b16 %v241, %v237
  %v278 = vpack.c.b16 %v242, %v238
  %v279 = vpack.c.b16 %v243, %v239
  %v280 = vpack.c.b16 %v244, %v240
  %v281 = vpack.c.b16 %v249, %v245
  %v282 = vpack.c.b16 %v250, %v246
  %v283 = vpack.c.b16 %v251, %v247
  %v284 = vpack.c.b16 %v252, %v248
  %317 = vmatprep.subr.bf16.mxu0 %v282
  %318 = vmatpush1.bf16.msra.mxu0 %v281
  %319 = vmatprep.subr.bf16.mxu0 %v278
  %320 = vmatpush1.bf16.msra.mxu0 %v277
  %321 = vmatprep.subr.bf16.mxu0 %v274
  %322 = vmatpush1.bf16.msra.mxu0 %v273
  %323 = vmatprep.subr.bf16.mxu0 %v270
  %324 = vmatpush1.bf16.msra.mxu0 %v269
  %325 = vmatprep.subr.bf16.mxu0 %v266
  %326 = vmatpush1.bf16.msra.mxu0 %v265
  %327 = vmatprep.subr.bf16.mxu0 %v262
  %328 = vmatpush1.bf16.msra.mxu0 %v261
  %329 = vmatprep.subr.bf16.mxu0 %v258
  %330 = vmatpush1.bf16.msra.mxu0 %v257
  %331 = vmatprep.subr.bf16.mxu0 %v254
  %332 = vmatpush1.bf16.msra.mxu0 %v253
  %333 = vmatprep.subr.bf16.mxu0 0
  %334 = vmatpush2.bf16.msra.mxu0 0
  %335 = vmatprep.subr.bf16.mxu0 0
  %336 = vmatpush2.bf16.msra.mxu0 0
  %337 = vmatprep.subr.bf16.mxu0 0
  %338 = vmatpush2.bf16.msra.mxu0 0
  %339 = vmatprep.subr.bf16.mxu0 0
  %340 = vmatpush2.bf16.msra.mxu0 0
  %341 = vmatprep.subr.bf16.mxu0 0
  %342 = vmatpush2.bf16.msra.mxu0 0
  %343 = vmatprep.subr.bf16.mxu0 0
  %344 = vmatpush2.bf16.msra.mxu0 0
  %345 = vmatprep.subr.bf16.mxu0 0
  %346 = vmatpush2.bf16.msra.mxu0 0
  %347 = vmatprep.subr.bf16.mxu0 0
  %348 = vmatpush2.bf16.msra.mxu0 0
  %349 = vmatprep.mubr.bf16.mxu0 0
  %350 = vmatmul.mubr.bf16.gmra.mxu0 %v141
  %v351 = vpop.f32.mrf.mxu0
  %v352 = vadd.f32 %v92, %v351
  %v353 = vpop.f32.mrf.mxu0
  %v354 = vadd.f32 %v96, %v353
  %v355 = vpop.f32.mrf.mxu0
  %v356 = vadd.f32 %v92, %v355
  %v357 = vpop.f32.mrf.mxu0
  %v358 = vadd.f32 %v96, %v357
  %359 = vmatprep.mubr.bf16.mxu0 0
  %360 = vmatmul.mubr.bf16.gmra.mxu0 %v142
  %v361 = vpop.f32.mrf.mxu0
  %v362 = vadd.f32 %v92, %v361
  %v363 = vpop.f32.mrf.mxu0
  %v364 = vadd.f32 %v96, %v363
  %v365 = vpop.f32.mrf.mxu0
  %v366 = vadd.f32 %v92, %v365
  %v367 = vpop.f32.mrf.mxu0
  %v368 = vadd.f32 %v96, %v367
  %369 = vmatprep.mubr.bf16.mxu0 0
  %370 = vmatmul.mubr.bf16.gmra.mxu0 %v143
  %v371 = vpop.f32.mrf.mxu0
  %v372 = vadd.f32 %v92, %v371
  %v373 = vpop.f32.mrf.mxu0
  %v374 = vadd.f32 %v96, %v373
  %v375 = vpop.f32.mrf.mxu0
  %v376 = vadd.f32 %v92, %v375
  %v377 = vpop.f32.mrf.mxu0
  %v378 = vadd.f32 %v96, %v377
  %379 = vmatprep.mubr.bf16.mxu0 0
  %380 = vmatmul.mubr.bf16.gmra.mxu0 %v144
  %v381 = vpop.f32.mrf.mxu0
  %v382 = vadd.f32 %v92, %v381
  %v383 = vpop.f32.mrf.mxu0
  %v384 = vadd.f32 %v96, %v383
  %v385 = vpop.f32.mrf.mxu0
  %v386 = vadd.f32 %v92, %v385
  %v387 = vpop.f32.mrf.mxu0
  %v388 = vadd.f32 %v96, %v387
  %389 = vmatprep.mubr.bf16.mxu0 0
  %390 = vmatmul.mubr.bf16.gmra.mxu0 %v145
  %v391 = vpop.f32.mrf.mxu0
  %v392 = vadd.f32 %v92, %v391
  %v393 = vpop.f32.mrf.mxu0
  %v394 = vadd.f32 %v96, %v393
  %v395 = vpop.f32.mrf.mxu0
  %v396 = vadd.f32 %v92, %v395
  %v397 = vpop.f32.mrf.mxu0
  %v398 = vadd.f32 %v96, %v397
  %399 = vmatprep.mubr.bf16.mxu0 0
  %400 = vmatmul.mubr.bf16.gmra.mxu0 %v146
  %v401 = vpop.f32.mrf.mxu0
  %v402 = vadd.f32 %v92, %v401
  %v403 = vpop.f32.mrf.mxu0
  %v404 = vadd.f32 %v96, %v403
  %v405 = vpop.f32.mrf.mxu0
  %v406 = vadd.f32 %v92, %v405
  %v407 = vpop.f32.mrf.mxu0
  %v408 = vadd.f32 %v96, %v407
  %409 = vmatprep.mubr.bf16.mxu0 0
  %410 = vmatmul.mubr.bf16.gmra.mxu0 %v147
  %v411 = vpop.f32.mrf.mxu0
  %v412 = vadd.f32 %v92, %v411
  %v413 = vpop.f32.mrf.mxu0
  %v414 = vadd.f32 %v96, %v413
  %v415 = vpop.f32.mrf.mxu0
  %v416 = vadd.f32 %v92, %v415
  %v417 = vpop.f32.mrf.mxu0
  %v418 = vadd.f32 %v96, %v417
  %419 = vmatprep.mubr.bf16.mxu0 0
  %420 = vmatmul.mubr.bf16.gmra.mxu0 %v148
  %v421 = vpop.f32.mrf.mxu0
  %v422 = vadd.f32 %v92, %v421
  %v423 = vpop.f32.mrf.mxu0
  %v424 = vadd.f32 %v96, %v423
  %v425 = vpop.f32.mrf.mxu0
  %v426 = vadd.f32 %v92, %v425
  %v427 = vpop.f32.mrf.mxu0
  %v428 = vadd.f32 %v96, %v427
  %429 = vdwg.mxu0
  %430 = vmatprep.subr.bf16.mxu0 %v284
  %431 = vmatpush1.bf16.msra.mxu0 %v283
  %432 = vmatprep.subr.bf16.mxu0 %v280
  %433 = vmatpush1.bf16.msra.mxu0 %v279
  %434 = vmatprep.subr.bf16.mxu0 %v276
  %435 = vmatpush1.bf16.msra.mxu0 %v275
  %436 = vmatprep.subr.bf16.mxu0 %v272
  %437 = vmatpush1.bf16.msra.mxu0 %v271
  %438 = vmatprep.subr.bf16.mxu0 %v268
  %439 = vmatpush1.bf16.msra.mxu0 %v267
  %440 = vmatprep.subr.bf16.mxu0 %v264
  %441 = vmatpush1.bf16.msra.mxu0 %v263
  %442 = vmatprep.subr.bf16.mxu0 %v260
  %443 = vmatpush1.bf16.msra.mxu0 %v259
  %444 = vmatprep.subr.bf16.mxu0 %v256
  %445 = vmatpush1.bf16.msra.mxu0 %v255
  %446 = vmatprep.subr.bf16.mxu0 0
  %447 = vmatpush2.bf16.msra.mxu0 0
  %448 = vmatprep.subr.bf16.mxu0 0
  %449 = vmatpush2.bf16.msra.mxu0 0
  %450 = vmatprep.subr.bf16.mxu0 0
  %451 = vmatpush2.bf16.msra.mxu0 0
  %452 = vmatprep.subr.bf16.mxu0 0
  %453 = vmatpush2.bf16.msra.mxu0 0
  %454 = vmatprep.subr.bf16.mxu0 0
  %455 = vmatpush2.bf16.msra.mxu0 0
  %456 = vmatprep.subr.bf16.mxu0 0
  %457 = vmatpush2.bf16.msra.mxu0 0
  %458 = vmatprep.subr.bf16.mxu0 0
  %459 = vmatpush2.bf16.msra.mxu0 0
  %460 = vmatprep.subr.bf16.mxu0 0
  %461 = vmatpush2.bf16.msra.mxu0 0
  %462 = vmatprep.mubr.bf16.mxu0 0
  %463 = vmatmul.mubr.bf16.gmra.mxu0 %v141
  %v464 = vpop.f32.mrf.mxu0
  %v465 = vadd.f32 %v100, %v464
  %v466 = vpop.f32.mrf.mxu0
  %v467 = vadd.f32 %v104, %v466
  %v468 = vpop.f32.mrf.mxu0
  %v469 = vadd.f32 %v100, %v468
  %v470 = vpop.f32.mrf.mxu0
  %v471 = vadd.f32 %v104, %v470
  %472 = vmatprep.mubr.bf16.mxu0 0
  %473 = vmatmul.mubr.bf16.gmra.mxu0 %v142
  %v474 = vpop.f32.mrf.mxu0
  %v475 = vadd.f32 %v100, %v474
  %v476 = vpop.f32.mrf.mxu0
  %v477 = vadd.f32 %v104, %v476
  %v478 = vpop.f32.mrf.mxu0
  %v479 = vadd.f32 %v100, %v478
  %v480 = vpop.f32.mrf.mxu0
  %v481 = vadd.f32 %v104, %v480
  %482 = vmatprep.mubr.bf16.mxu0 0
  %483 = vmatmul.mubr.bf16.gmra.mxu0 %v143
  %v484 = vpop.f32.mrf.mxu0
  %v485 = vadd.f32 %v100, %v484
  %v486 = vpop.f32.mrf.mxu0
  %v487 = vadd.f32 %v104, %v486
  %v488 = vpop.f32.mrf.mxu0
  %v489 = vadd.f32 %v100, %v488
  %v490 = vpop.f32.mrf.mxu0
  %v491 = vadd.f32 %v104, %v490
  %492 = vmatprep.mubr.bf16.mxu0 0
  %493 = vmatmul.mubr.bf16.gmra.mxu0 %v144
  %v494 = vpop.f32.mrf.mxu0
  %v495 = vadd.f32 %v100, %v494
  %v496 = vpop.f32.mrf.mxu0
  %v497 = vadd.f32 %v104, %v496
  %v498 = vpop.f32.mrf.mxu0
  %v499 = vadd.f32 %v100, %v498
  %v500 = vpop.f32.mrf.mxu0
  %v501 = vadd.f32 %v104, %v500
  %502 = vmatprep.mubr.bf16.mxu0 0
  %503 = vmatmul.mubr.bf16.gmra.mxu0 %v145
  %v504 = vpop.f32.mrf.mxu0
  %v505 = vadd.f32 %v100, %v504
  %v506 = vpop.f32.mrf.mxu0
  %v507 = vadd.f32 %v104, %v506
  %v508 = vpop.f32.mrf.mxu0
  %v509 = vadd.f32 %v100, %v508
  %v510 = vpop.f32.mrf.mxu0
  %v511 = vadd.f32 %v104, %v510
  %512 = vmatprep.mubr.bf16.mxu0 0
  %513 = vmatmul.mubr.bf16.gmra.mxu0 %v146
  %v514 = vpop.f32.mrf.mxu0
  %v515 = vadd.f32 %v100, %v514
  %v516 = vpop.f32.mrf.mxu0
  %v517 = vadd.f32 %v104, %v516
  %v518 = vpop.f32.mrf.mxu0
  %v519 = vadd.f32 %v100, %v518
  %v520 = vpop.f32.mrf.mxu0
  %v521 = vadd.f32 %v104, %v520
  %522 = vmatprep.mubr.bf16.mxu0 0
  %523 = vmatmul.mubr.bf16.gmra.mxu0 %v147
  %v524 = vpop.f32.mrf.mxu0
  %v525 = vadd.f32 %v100, %v524
  %v526 = vpop.f32.mrf.mxu0
  %v527 = vadd.f32 %v104, %v526
  %v528 = vpop.f32.mrf.mxu0
  %v529 = vadd.f32 %v100, %v528
  %v530 = vpop.f32.mrf.mxu0
  %v531 = vadd.f32 %v104, %v530
  %532 = vmatprep.mubr.bf16.mxu0 0
  %533 = vmatmul.mubr.bf16.gmra.mxu0 %v148
  %v534 = vpop.f32.mrf.mxu0
  %v535 = vadd.f32 %v100, %v534
  %v536 = vpop.f32.mrf.mxu0
  %v537 = vadd.f32 %v104, %v536
  %v538 = vpop.f32.mrf.mxu0
  %v539 = vadd.f32 %v100, %v538
  %v540 = vpop.f32.mrf.mxu0
  %v541 = vadd.f32 %v104, %v540
  %542 = vdwg.mxu0
  %543 = vst [vmem:[#allocation2] sm:$0xff] %v352
  %544 = vst [vmem:[#allocation2 + $0x8] sm:$0xff] %v354
  %545 = vst [vmem:[#allocation2 + $0x10] sm:$0xff] %v465
  %546 = vst [vmem:[#allocation2 + $0x18] sm:$0xff] %v467
  %547 = vst [vmem:[#allocation2 + $0x20] sm:$0xff] %v356
  %548 = vst [vmem:[#allocation2 + $0x28] sm:$0xff] %v358
  %549 = vst [vmem:[#allocation2 + $0x30] sm:$0xff] %v469
  %550 = vst [vmem:[#allocation2 + $0x38] sm:$0xff] %v471
  %551 = vst [vmem:[#allocation2 + $0x40] sm:$0xff] %v362
  %552 = vst [vmem:[#allocation2 + $0x48] sm:$0xff] %v364
  %553 = vst [vmem:[#allocation2 + $0x50] sm:$0xff] %v475
  %554 = vst [vmem:[#allocation2 + $0x58] sm:$0xff] %v477
  %555 = vst [vmem:[#allocation2 + $0x60] sm:$0xff] %v366
  %556 = vst [vmem:[#allocation2 + $0x68] sm:$0xff] %v368
  %557 = vst [vmem:[#allocation2 + $0x70] sm:$0xff] %v479
  %558 = vst [vmem:[#allocation2 + $0x78] sm:$0xff] %v481
  %559 = vst [vmem:[#allocation2 + $0x80] sm:$0xff] %v372
  %560 = vst [vmem:[#allocation2 + $0x88] sm:$0xff] %v374
  %561 = vst [vmem:[#allocation2 + $0x90] sm:$0xff] %v485
  %562 = vst [vmem:[#allocation2 + $0x98] sm:$0xff] %v487
  %563 = vst [vmem:[#allocation2 + $0xa0] sm:$0xff] %v376
  %564 = vst [vmem:[#allocation2 + $0xa8] sm:$0xff] %v378
  %565 = vst [vmem:[#allocation2 + $0xb0] sm:$0xff] %v489
  %566 = vst [vmem:[#allocation2 + $0xb8] sm:$0xff] %v491
  %567 = vst [vmem:[#allocation2 + $0xc0] sm:$0xff] %v382
  %568 = vst [vmem:[#allocation2 + $0xc8] sm:$0xff] %v384
  %569 = vst [vmem:[#allocation2 + $0xd0] sm:$0xff] %v495
  %570 = vst [vmem:[#allocation2 + $0xd8] sm:$0xff] %v497
  %571 = vst [vmem:[#allocation2 + $0xe0] sm:$0xff] %v386
  %572 = vst [vmem:[#allocation2 + $0xe8] sm:$0xff] %v388
  %573 = vst [vmem:[#allocation2 + $0xf0] sm:$0xff] %v499
  %574 = vst [vmem:[#allocation2 + $0xf8] sm:$0xff] %v501
  %575 = vst [vmem:[#allocation2 + $0x100] sm:$0xff] %v392
  %576 = vst [vmem:[#allocation2 + $0x108] sm:$0xff] %v394
  %577 = vst [vmem:[#allocation2 + $0x110] sm:$0xff] %v505
  %578 = vst [vmem:[#allocation2 + $0x118] sm:$0xff] %v507
  %579 = vst [vmem:[#allocation2 + $0x120] sm:$0xff] %v396
  %580 = vst [vmem:[#allocation2 + $0x128] sm:$0xff] %v398
  %581 = vst [vmem:[#allocation2 + $0x130] sm:$0xff] %v509
  %582 = vst [vmem:[#allocation2 + $0x138] sm:$0xff] %v511
  %583 = vst [vmem:[#allocation2 + $0x140] sm:$0xff] %v402
  %584 = vst [vmem:[#allocation2 + $0x148] sm:$0xff] %v404
  %585 = vst [vmem:[#allocation2 + $0x150] sm:$0xff] %v515
  %586 = vst [vmem:[#allocation2 + $0x158] sm:$0xff] %v517
  %587 = vst [vmem:[#allocation2 + $0x160] sm:$0xff] %v406
  %588 = vst [vmem:[#allocation2 + $0x168] sm:$0xff] %v408
  %589 = vst [vmem:[#allocation2 + $0x170] sm:$0xff] %v519
  %590 = vst [vmem:[#allocation2 + $0x178] sm:$0xff] %v521
  %591 = vst [vmem:[#allocation2 + $0x180] sm:$0xff] %v412
  %592 = vst [vmem:[#allocation2 + $0x188] sm:$0xff] %v414
  %593 = vst [vmem:[#allocation2 + $0x190] sm:$0xff] %v525
  %594 = vst [vmem:[#allocation2 + $0x198] sm:$0xff] %v527
  %595 = vst [vmem:[#allocation2 + $0x1a0] sm:$0xff] %v416
  %596 = vst [vmem:[#allocation2 + $0x1a8] sm:$0xff] %v418
  %597 = vst [vmem:[#allocation2 + $0x1b0] sm:$0xff] %v529
  %598 = vst [vmem:[#allocation2 + $0x1b8] sm:$0xff] %v531
  %599 = vst [vmem:[#allocation2 + $0x1c0] sm:$0xff] %v422
  %600 = vst [vmem:[#allocation2 + $0x1c8] sm:$0xff] %v424
  %601 = vst [vmem:[#allocation2 + $0x1d0] sm:$0xff] %v535
  %602 = vst [vmem:[#allocation2 + $0x1d8] sm:$0xff] %v537
  %603 = vst [vmem:[#allocation2 + $0x1e0] sm:$0xff] %v426
  %604 = vst [vmem:[#allocation2 + $0x1e8] sm:$0xff] %v428
  %605 = vst [vmem:[#allocation2 + $0x1f0] sm:$0xff] %v539
  %606 = vst [vmem:[#allocation2 + $0x1f8] sm:$0xff] %v541
  %v607 = vld [vmem:[%s2] sm:$0xff]
  %v608 = vld [vmem:[%s2 + $0x8] sm:$0xff]
  %v609 = vld [vmem:[%s2 + $0x10] sm:$0xff]
  %v610 = vld [vmem:[%s2 + $0x18] sm:$0xff]
  %v611 = vld [vmem:[%s2 + $0x20] sm:$0xff]
  %v612 = vld [vmem:[%s2 + $0x28] sm:$0xff]
  %v613 = vld [vmem:[%s2 + $0x30] sm:$0xff]
  %v614 = vld [vmem:[%s2 + $0x38] sm:$0xff]
  %v615 = vld [vmem:[%s2 + $0x40] sm:$0xff]
  %v616 = vld [vmem:[%s2 + $0x48] sm:$0xff]
  %v617 = vld [vmem:[%s2 + $0x50] sm:$0xff]
  %v618 = vld [vmem:[%s2 + $0x58] sm:$0xff]
  %v619 = vld [vmem:[%s2 + $0x60] sm:$0xff]
  %v620 = vld [vmem:[%s2 + $0x68] sm:$0xff]
  %v621 = vld [vmem:[%s2 + $0x70] sm:$0xff]
  %v622 = vld [vmem:[%s2 + $0x78] sm:$0xff]
  %v623 = vld [vmem:[%s2 + $0x80] sm:$0xff]
  %v624 = vld [vmem:[%s2 + $0x88] sm:$0xff]
  %v625 = vld [vmem:[%s2 + $0x90] sm:$0xff]
  %v626 = vld [vmem:[%s2 + $0x98] sm:$0xff]
  %v627 = vld [vmem:[%s2 + $0xa0] sm:$0xff]
  %v628 = vld [vmem:[%s2 + $0xa8] sm:$0xff]
  %v629 = vld [vmem:[%s2 + $0xb0] sm:$0xff]
  %v630 = vld [vmem:[%s2 + $0xb8] sm:$0xff]
  %v631 = vld [vmem:[%s2 + $0xc0] sm:$0xff]
  %v632 = vld [vmem:[%s2 + $0xc8] sm:$0xff]
  %v633 = vld [vmem:[%s2 + $0xd0] sm:$0xff]
  %v634 = vld [vmem:[%s2 + $0xd8] sm:$0xff]
  %v635 = vld [vmem:[%s2 + $0xe0] sm:$0xff]
  %v636 = vld [vmem:[%s2 + $0xe8] sm:$0xff]
  %v637 = vld [vmem:[%s2 + $0xf0] sm:$0xff]
  %v638 = vld [vmem:[%s2 + $0xf8] sm:$0xff]
  %v639 = vld [vmem:[%s7] sm:$0xff]
  %v640 = vld [vmem:[%s7 + $0x8] sm:$0xff]
  %v641 = vld [vmem:[%s8] sm:$0xff]
  %v642 = vld [vmem:[%s8 + $0x8] sm:$0xff]
  %s643 = smul.u32 0, 4
  %s644 = smul.addr %s643, 8
  %s645 = scalar_lea.vmem [#allocation2], %s644
  %v646 = vld [vmem:[%s645] sm:$0xff]
  %v647 = vld [vmem:[%s645 + $0x8] sm:$0xff]
  %v648 = vld [vmem:[%s645 + $0x10] sm:$0xff]
  %v649 = vld [vmem:[%s645 + $0x18] sm:$0xff]
  %v650 = vld [vmem:[%s645 + $0x20] sm:$0xff]
  %v651 = vld [vmem:[%s645 + $0x28] sm:$0xff]
  %v652 = vld [vmem:[%s645 + $0x30] sm:$0xff]
  %v653 = vld [vmem:[%s645 + $0x38] sm:$0xff]
  %v654 = vpack.c.bf16 %v640, %v639
  %v687 = vunpack.c.l.b16 %v607
  %v688 = vunpack.c.h.b16 %v607
  %v689 = vunpack.c.l.b16 %v608
  %v690 = vunpack.c.h.b16 %v608
  %v691 = vunpack.c.l.b16 %v609
  %v692 = vunpack.c.h.b16 %v609
  %v693 = vunpack.c.l.b16 %v610
  %v694 = vunpack.c.h.b16 %v610
  %v695 = vunpack.c.l.b16 %v611
  %v696 = vunpack.c.h.b16 %v611
  %v697 = vunpack.c.l.b16 %v612
  %v698 = vunpack.c.h.b16 %v612
  %v699 = vunpack.c.l.b16 %v613
  %v700 = vunpack.c.h.b16 %v613
  %v701 = vunpack.c.l.b16 %v614
  %v702 = vunpack.c.h.b16 %v614
  %v703 = vunpack.c.l.b16 %v615
  %v704 = vunpack.c.h.b16 %v615
  %v705 = vunpack.c.l.b16 %v616
  %v706 = vunpack.c.h.b16 %v616
  %v707 = vunpack.c.l.b16 %v617
  %v708 = vunpack.c.h.b16 %v617
  %v709 = vunpack.c.l.b16 %v618
  %v710 = vunpack.c.h.b16 %v618
  %v711 = vunpack.c.l.b16 %v619
  %v712 = vunpack.c.h.b16 %v619
  %v713 = vunpack.c.l.b16 %v620
  %v714 = vunpack.c.h.b16 %v620
  %v715 = vunpack.c.l.b16 %v621
  %v716 = vunpack.c.h.b16 %v621
  %v717 = vunpack.c.l.b16 %v622
  %v718 = vunpack.c.h.b16 %v622
  %v719 = vunpack.c.l.b16 %v623
  %v720 = vunpack.c.h.b16 %v623
  %v721 = vunpack.c.l.b16 %v624
  %v722 = vunpack.c.h.b16 %v624
  %v723 = vunpack.c.l.b16 %v625
  %v724 = vunpack.c.h.b16 %v625
  %v725 = vunpack.c.l.b16 %v626
  %v726 = vunpack.c.h.b16 %v626
  %v727 = vunpack.c.l.b16 %v627
  %v728 = vunpack.c.h.b16 %v627
  %v729 = vunpack.c.l.b16 %v628
  %v730 = vunpack.c.h.b16 %v628
  %v731 = vunpack.c.l.b16 %v629
  %v732 = vunpack.c.h.b16 %v629
  %v733 = vunpack.c.l.b16 %v630
  %v734 = vunpack.c.h.b16 %v630
  %v735 = vunpack.c.l.b16 %v631
  %v736 = vunpack.c.h.b16 %v631
  %v737 = vunpack.c.l.b16 %v632
  %v738 = vunpack.c.h.b16 %v632
  %v739 = vunpack.c.l.b16 %v633
  %v740 = vunpack.c.h.b16 %v633
  %v741 = vunpack.c.l.b16 %v634
  %v742 = vunpack.c.h.b16 %v634
  %v743 = vunpack.c.l.b16 %v635
  %v744 = vunpack.c.h.b16 %v635
  %v745 = vunpack.c.l.b16 %v636
  %v746 = vunpack.c.h.b16 %v636
  %v747 = vunpack.c.l.b16 %v637
  %v748 = vunpack.c.h.b16 %v637
  %v749 = vunpack.c.l.b16 %v638
  %v750 = vunpack.c.h.b16 %v638
  %v751 = vpack.c.b16 %v691, %v687
  %v752 = vpack.c.b16 %v692, %v688
  %v753 = vpack.c.b16 %v693, %v689
  %v754 = vpack.c.b16 %v694, %v690
  %v755 = vpack.c.b16 %v699, %v695
  %v756 = vpack.c.b16 %v700, %v696
  %v757 = vpack.c.b16 %v701, %v697
  %v758 = vpack.c.b16 %v702, %v698
  %v759 = vpack.c.b16 %v707, %v703
  %v760 = vpack.c.b16 %v708, %v704
  %v761 = vpack.c.b16 %v709, %v705
  %v762 = vpack.c.b16 %v710, %v706
  %v763 = vpack.c.b16 %v715, %v711
  %v764 = vpack.c.b16 %v716, %v712
  %v765 = vpack.c.b16 %v717, %v713
  %v766 = vpack.c.b16 %v718, %v714
  %v767 = vpack.c.b16 %v723, %v719
  %v768 = vpack.c.b16 %v724, %v720
  %v769 = vpack.c.b16 %v725, %v721
  %v770 = vpack.c.b16 %v726, %v722
  %v771 = vpack.c.b16 %v731, %v727
  %v772 = vpack.c.b16 %v732, %v728
  %v773 = vpack.c.b16 %v733, %v729
  %v774 = vpack.c.b16 %v734, %v730
  %v775 = vpack.c.b16 %v739, %v735
  %v776 = vpack.c.b16 %v740, %v736
  %v777 = vpack.c.b16 %v741, %v737
  %v778 = vpack.c.b16 %v742, %v738
  %v779 = vpack.c.b16 %v747, %v743
  %v780 = vpack.c.b16 %v748, %v744
  %v781 = vpack.c.b16 %v749, %v745
  %v782 = vpack.c.b16 %v750, %v746
  %815 = vmatprep.subr.bf16.mxu0 %v780
  %816 = vmatpush1.bf16.msra.mxu0 %v779
  %817 = vmatprep.subr.bf16.mxu0 %v776
  %818 = vmatpush1.bf16.msra.mxu0 %v775
  %819 = vmatprep.subr.bf16.mxu0 %v772
  %820 = vmatpush1.bf16.msra.mxu0 %v771
  %821 = vmatprep.subr.bf16.mxu0 %v768
  %822 = vmatpush1.bf16.msra.mxu0 %v767
  %823 = vmatprep.subr.bf16.mxu0 %v764
  %824 = vmatpush1.bf16.msra.mxu0 %v763
  %825 = vmatprep.subr.bf16.mxu0 %v760
  %826 = vmatpush1.bf16.msra.mxu0 %v759
  %827 = vmatprep.subr.bf16.mxu0 %v756
  %828 = vmatpush1.bf16.msra.mxu0 %v755
  %829 = vmatprep.subr.bf16.mxu0 %v752
  %830 = vmatpush1.bf16.msra.mxu0 %v751
  %831 = vmatprep.subr.bf16.mxu0 0
  %832 = vmatpush2.bf16.msra.mxu0 0
  %833 = vmatprep.subr.bf16.mxu0 0
  %834 = vmatpush2.bf16.msra.mxu0 0
  %835 = vmatprep.subr.bf16.mxu0 0
  %836 = vmatpush2.bf16.msra.mxu0 0
  %837 = vmatprep.subr.bf16.mxu0 0
  %838 = vmatpush2.bf16.msra.mxu0 0
  %839 = vmatprep.subr.bf16.mxu0 0
  %840 = vmatpush2.bf16.msra.mxu0 0
  %841 = vmatprep.subr.bf16.mxu0 0
  %842 = vmatpush2.bf16.msra.mxu0 0
  %843 = vmatprep.subr.bf16.mxu0 0
  %844 = vmatpush2.bf16.msra.mxu0 0
  %845 = vmatprep.subr.bf16.mxu0 0
  %846 = vmatpush2.bf16.msra.mxu0 0
  %847 = vmatprep.mubr.bf16.mxu0 0
  %848 = vmatmul.mubr.bf16.gmra.mxu0 %v654
  %v849 = vpop.f32.mrf.mxu0
  %v850 = vadd.f32 0.0, %v849
  %v851 = vpop.f32.mrf.mxu0
  %v852 = vadd.f32 0.0, %v851
  %v853 = vpop.f32.mrf.mxu0
  %v854 = vadd.f32 0.0, %v853
  %v855 = vpop.f32.mrf.mxu0
  %v856 = vadd.f32 0.0, %v855
  %857 = vdwg.mxu0
  %858 = vmatprep.subr.bf16.mxu0 %v782
  %859 = vmatpush1.bf16.msra.mxu0 %v781
  %860 = vmatprep.subr.bf16.mxu0 %v778
  %861 = vmatpush1.bf16.msra.mxu0 %v777
  %862 = vmatprep.subr.bf16.mxu0 %v774
  %863 = vmatpush1.bf16.msra.mxu0 %v773
  %864 = vmatprep.subr.bf16.mxu0 %v770
  %865 = vmatpush1.bf16.msra.mxu0 %v769
  %866 = vmatprep.subr.bf16.mxu0 %v766
  %867 = vmatpush1.bf16.msra.mxu0 %v765
  %868 = vmatprep.subr.bf16.mxu0 %v762
  %869 = vmatpush1.bf16.msra.mxu0 %v761
  %870 = vmatprep.subr.bf16.mxu0 %v758
  %871 = vmatpush1.bf16.msra.mxu0 %v757
  %872 = vmatprep.subr.bf16.mxu0 %v754
  %873 = vmatpush1.bf16.msra.mxu0 %v753
  %874 = vmatprep.subr.bf16.mxu0 0
  %875 = vmatpush2.bf16.msra.mxu0 0
  %876 = vmatprep.subr.bf16.mxu0 0
  %877 = vmatpush2.bf16.msra.mxu0 0
  %878 = vmatprep.subr.bf16.mxu0 0
  %879 = vmatpush2.bf16.msra.mxu0 0
  %880 = vmatprep.subr.bf16.mxu0 0
  %881 = vmatpush2.bf16.msra.mxu0 0
  %882 = vmatprep.subr.bf16.mxu0 0
  %883 = vmatpush2.bf16.msra.mxu0 0
  %884 = vmatprep.subr.bf16.mxu0 0
  %885 = vmatpush2.bf16.msra.mxu0 0
  %886 = vmatprep.subr.bf16.mxu0 0
  %887 = vmatpush2.bf16.msra.mxu0 0
  %888 = vmatprep.subr.bf16.mxu0 0
  %889 = vmatpush2.bf16.msra.mxu0 0
  %890 = vmatprep.mubr.bf16.mxu0 0
  %891 = vmatmul.mubr.bf16.gmra.mxu0 %v654
  %v892 = vpop.f32.mrf.mxu0
  %v893 = vadd.f32 0.0, %v892
  %v894 = vpop.f32.mrf.mxu0
  %v895 = vadd.f32 0.0, %v894
  %v896 = vpop.f32.mrf.mxu0
  %v897 = vadd.f32 0.0, %v896
  %v898 = vpop.f32.mrf.mxu0
  %v899 = vadd.f32 0.0, %v898
  %900 = vdwg.mxu0
  %v901 = vadd.f32 %v646, %v850
  %v902 = vadd.f32 %v647, %v852
  %v903 = vadd.f32 %v648, %v893
  %v904 = vadd.f32 %v649, %v895
  %v905 = vadd.f32 %v650, %v854
  %v906 = vadd.f32 %v651, %v856
  %v907 = vadd.f32 %v652, %v897
  %v908 = vadd.f32 %v653, %v899
  %v909 = vmul.f32 %v901, 0.5
  %v910 = vmul.f32 %v902, 0.5
  %v911 = vmul.f32 %v903, 0.5
  %v912 = vmul.f32 %v905, 0.5
  %v913 = vmul.f32 %v906, 0.5
  %v914 = vmul.f32 %v907, 0.5
  %v915 = vtanh.pop %v909
  %v916 = vtanh.pop %v910
  %v917 = vtanh.pop %v911
  %v918 = vtanh.pop %v912
  %v919 = vtanh.pop %v913
  %v920 = vtanh.pop %v914
  %v921 = vmul.f32 %v915, 0.5
  %v922 = vmul.f32 %v916, 0.5
  %v923 = vmul.f32 %v917, 0.5
  %v924 = vmul.f32 %v918, 0.5
  %v925 = vmul.f32 %v919, 0.5
  %v926 = vmul.f32 %v920, 0.5
  %v927 = vadd.f32 %v921, 0.5
  %v928 = vadd.f32 %v922, 0.5
  %v929 = vadd.f32 %v923, 0.5
  %v930 = vadd.f32 %v924, 0.5
  %v931 = vadd.f32 %v925, 0.5
  %v932 = vadd.f32 %v926, 0.5
  %v933 = vtanh.pop %v904
  %v934 = vtanh.pop %v908
  %v935 = vmul.f32 %v928, %v641
  %v936 = vmul.f32 %v931, %v642
  %v937 = vmul.f32 %v927, %v933
  %v938 = vmul.f32 %v930, %v934
  %v939 = vadd.f32 %v935, %v937
  %v940 = vadd.f32 %v936, %v938
  %v941 = vtanh.pop %v939
  %v942 = vtanh.pop %v940
  %v943 = vmul.f32 %v929, %v941
  %v944 = vmul.f32 %v932, %v942
  %v945 = vpack.c.bf16 %v944, %v943
  %v947 = vunpack.c.l.b16 %v945
  %v948 = vunpack.c.h.b16 %v945
  %v949 = vpack.c.b16 %v947, %v947
  %v950 = vpack.c.b16 %v948, %v948
  %953 = vst [vmem:[%s6] sm:$0xf] %v949
  %954 = vst [vmem:[%s6 + $0x4] sm:$0xf] %v950
  %s955 = smul.u32 2, 4
  %s956 = smul.addr %s955, 8
  %s957 = scalar_lea.vmem [#allocation2], %s956
  %v958 = vld [vmem:[%s957] sm:$0xff]
  %v959 = vld [vmem:[%s957 + $0x8] sm:$0xff]
  %v960 = vld [vmem:[%s957 + $0x10] sm:$0xff]
  %v961 = vld [vmem:[%s957 + $0x18] sm:$0xff]
  %v962 = vld [vmem:[%s957 + $0x20] sm:$0xff]
  %v963 = vld [vmem:[%s957 + $0x28] sm:$0xff]
  %v964 = vld [vmem:[%s957 + $0x30] sm:$0xff]
  %v965 = vld [vmem:[%s957 + $0x38] sm:$0xff]
  %966 = vmatprep.subr.bf16.mxu0 %v780
  %967 = vmatpush1.bf16.msra.mxu0 %v779
  %968 = vmatprep.subr.bf16.mxu0 %v776
  %969 = vmatpush1.bf16.msra.mxu0 %v775
  %970 = vmatprep.subr.bf16.mxu0 %v772
  %971 = vmatpush1.bf16.msra.mxu0 %v771
  %972 = vmatprep.subr.bf16.mxu0 %v768
  %973 = vmatpush1.bf16.msra.mxu0 %v767
  %974 = vmatprep.subr.bf16.mxu0 %v764
  %975 = vmatpush1.bf16.msra.mxu0 %v763
  %976 = vmatprep.subr.bf16.mxu0 %v760
  %977 = vmatpush1.bf16.msra.mxu0 %v759
  %978 = vmatprep.subr.bf16.mxu0 %v756
  %979 = vmatpush1.bf16.msra.mxu0 %v755
  %980 = vmatprep.subr.bf16.mxu0 %v752
  %981 = vmatpush1.bf16.msra.mxu0 %v751
  %982 = vmatprep.subr.bf16.mxu0 0
  %983 = vmatpush2.bf16.msra.mxu0 0
  %984 = vmatprep.subr.bf16.mxu0 0
  %985 = vmatpush2.bf16.msra.mxu0 0
  %986 = vmatprep.subr.bf16.mxu0 0
  %987 = vmatpush2.bf16.msra.mxu0 0
  %988 = vmatprep.subr.bf16.mxu0 0
  %989 = vmatpush2.bf16.msra.mxu0 0
  %990 = vmatprep.subr.bf16.mxu0 0
  %991 = vmatpush2.bf16.msra.mxu0 0
  %992 = vmatprep.subr.bf16.mxu0 0
  %993 = vmatpush2.bf16.msra.mxu0 0
  %994 = vmatprep.subr.bf16.mxu0 0
  %995 = vmatpush2.bf16.msra.mxu0 0
  %996 = vmatprep.subr.bf16.mxu0 0
  %997 = vmatpush2.bf16.msra.mxu0 0
  %998 = vmatprep.mubr.bf16.mxu0 0
  %999 = vmatmul.mubr.bf16.gmra.mxu0 %v945
  %v1000 = vpop.f32.mrf.mxu0
  %v1001 = vadd.f32 0.0, %v1000
  %v1002 = vpop.f32.mrf.mxu0
  %v1003 = vadd.f32 0.0, %v1002
  %v1004 = vpop.f32.mrf.mxu0
  %v1005 = vadd.f32 0.0, %v1004
  %v1006 = vpop.f32.mrf.mxu0
  %v1007 = vadd.f32 0.0, %v1006
  %1008 = vdwg.mxu0
  %1009 = vmatprep.subr.bf16.mxu0 %v782
  %1010 = vmatpush1.bf16.msra.mxu0 %v781
  %1011 = vmatprep.subr.bf16.mxu0 %v778
  %1012 = vmatpush1.bf16.msra.mxu0 %v777
  %1013 = vmatprep.subr.bf16.mxu0 %v774
  %1014 = vmatpush1.bf16.msra.mxu0 %v773
  %1015 = vmatprep.subr.bf16.mxu0 %v770
  %1016 = vmatpush1.bf16.msra.mxu0 %v769
  %1017 = vmatprep.subr.bf16.mxu0 %v766
  %1018 = vmatpush1.bf16.msra.mxu0 %v765
  %1019 = vmatprep.subr.bf16.mxu0 %v762
  %1020 = vmatpush1.bf16.msra.mxu0 %v761
  %1021 = vmatprep.subr.bf16.mxu0 %v758
  %1022 = vmatpush1.bf16.msra.mxu0 %v757
  %1023 = vmatprep.subr.bf16.mxu0 %v754
  %1024 = vmatpush1.bf16.msra.mxu0 %v753
  %1025 = vmatprep.subr.bf16.mxu0 0
  %1026 = vmatpush2.bf16.msra.mxu0 0
  %1027 = vmatprep.subr.bf16.mxu0 0
  %1028 = vmatpush2.bf16.msra.mxu0 0
  %1029 = vmatprep.subr.bf16.mxu0 0
  %1030 = vmatpush2.bf16.msra.mxu0 0
  %1031 = vmatprep.subr.bf16.mxu0 0
  %1032 = vmatpush2.bf16.msra.mxu0 0
  %1033 = vmatprep.subr.bf16.mxu0 0
  %1034 = vmatpush2.bf16.msra.mxu0 0
  %1035 = vmatprep.subr.bf16.mxu0 0
  %1036 = vmatpush2.bf16.msra.mxu0 0
  %1037 = vmatprep.subr.bf16.mxu0 0
  %1038 = vmatpush2.bf16.msra.mxu0 0
  %1039 = vmatprep.subr.bf16.mxu0 0
  %1040 = vmatpush2.bf16.msra.mxu0 0
  %1041 = vmatprep.mubr.bf16.mxu0 0
  %1042 = vmatmul.mubr.bf16.gmra.mxu0 %v945
  %v1043 = vpop.f32.mrf.mxu0
  %v1044 = vadd.f32 0.0, %v1043
  %v1045 = vpop.f32.mrf.mxu0
  %v1046 = vadd.f32 0.0, %v1045
  %v1047 = vpop.f32.mrf.mxu0
  %v1048 = vadd.f32 0.0, %v1047
  %v1049 = vpop.f32.mrf.mxu0
  %v1050 = vadd.f32 0.0, %v1049
  %1051 = vdwg.mxu0
  %v1052 = vadd.f32 %v958, %v1001
  %v1053 = vadd.f32 %v959, %v1003
  %v1054 = vadd.f32 %v960, %v1044
  %v1055 = vadd.f32 %v961, %v1046
  %v1056 = vadd.f32 %v962, %v1005
  %v1057 = vadd.f32 %v963, %v1007
  %v1058 = vadd.f32 %v964, %v1048
  %v1059 = vadd.f32 %v965, %v1050
  %v1060 = vmul.f32 %v1052, 0.5
  %v1061 = vmul.f32 %v1053, 0.5
  %v1062 = vmul.f32 %v1054, 0.5
  %v1063 = vmul.f32 %v1056, 0.5
  %v1064 = vmul.f32 %v1057, 0.5
  %v1065 = vmul.f32 %v1058, 0.5
  %v1066 = vtanh.pop %v1060
  %v1067 = vtanh.pop %v1061
  %v1068 = vtanh.pop %v1062
  %v1069 = vtanh.pop %v1063
  %v1070 = vtanh.pop %v1064
  %v1071 = vtanh.pop %v1065
  %v1072 = vmul.f32 %v1066, 0.5
  %v1073 = vmul.f32 %v1067, 0.5
  %v1074 = vmul.f32 %v1068, 0.5
  %v1075 = vmul.f32 %v1069, 0.5
  %v1076 = vmul.f32 %v1070, 0.5
  %v1077 = vmul.f32 %v1071, 0.5
  %v1078 = vadd.f32 %v1072, 0.5
  %v1079 = vadd.f32 %v1073, 0.5
  %v1080 = vadd.f32 %v1074, 0.5
  %v1081 = vadd.f32 %v1075, 0.5
  %v1082 = vadd.f32 %v1076, 0.5
  %v1083 = vadd.f32 %v1077, 0.5
  %v1084 = vtanh.pop %v1055
  %v1085 = vtanh.pop %v1059
  %v1086 = vmul.f32 %v1079, %v939
  %v1087 = vmul.f32 %v1082, %v940
  %v1088 = vmul.f32 %v1078, %v1084
  %v1089 = vmul.f32 %v1081, %v1085
  %v1090 = vadd.f32 %v1086, %v1088
  %v1091 = vadd.f32 %v1087, %v1089
  %v1092 = vtanh.pop %v1090
  %v1093 = vtanh.pop %v1091
  %v1094 = vmul.f32 %v1080, %v1092
  %v1095 = vmul.f32 %v1083, %v1093
  %v1096 = vpack.c.bf16 %v1095, %v1094
  %v1098 = vunpack.c.l.b16 %v1096
  %v1099 = vunpack.c.h.b16 %v1096
  %v1100 = vpack.c.b16 %v1098, %v1098
  %v1101 = vpack.c.b16 %v1099, %v1099
  %s1104 = scalar_lea.vmem %s6, 8
  %1105 = vst [vmem:[%s1104] sm:$0xf] %v1100
  %1106 = vst [vmem:[%s1104 + $0x4] sm:$0xf] %v1101
  %s1107 = smul.u32 4, 4
  %s1108 = smul.addr %s1107, 8
  %s1109 = scalar_lea.vmem [#allocation2], %s1108
  %v1110 = vld [vmem:[%s1109] sm:$0xff]
  %v1111 = vld [vmem:[%s1109 + $0x8] sm:$0xff]
  %v1112 = vld [vmem:[%s1109 + $0x10] sm:$0xff]
  %v1113 = vld [vmem:[%s1109 + $0x18] sm:$0xff]
  %v1114 = vld [vmem:[%s1109 + $0x20] sm:$0xff]
  %v1115 = vld [vmem:[%s1109 + $0x28] sm:$0xff]
  %v1116 = vld [vmem:[%s1109 + $0x30] sm:$0xff]
  %v1117 = vld [vmem:[%s1109 + $0x38] sm:$0xff]
  %1118 = vmatprep.subr.bf16.mxu0 %v780
  %1119 = vmatpush1.bf16.msra.mxu0 %v779
  %1120 = vmatprep.subr.bf16.mxu0 %v776
  %1121 = vmatpush1.bf16.msra.mxu0 %v775
  %1122 = vmatprep.subr.bf16.mxu0 %v772
  %1123 = vmatpush1.bf16.msra.mxu0 %v771
  %1124 = vmatprep.subr.bf16.mxu0 %v768
  %1125 = vmatpush1.bf16.msra.mxu0 %v767
  %1126 = vmatprep.subr.bf16.mxu0 %v764
  %1127 = vmatpush1.bf16.msra.mxu0 %v763
  %1128 = vmatprep.subr.bf16.mxu0 %v760
  %1129 = vmatpush1.bf16.msra.mxu0 %v759
  %1130 = vmatprep.subr.bf16.mxu0 %v756
  %1131 = vmatpush1.bf16.msra.mxu0 %v755
  %1132 = vmatprep.subr.bf16.mxu0 %v752
  %1133 = vmatpush1.bf16.msra.mxu0 %v751
  %1134 = vmatprep.subr.bf16.mxu0 0
  %1135 = vmatpush2.bf16.msra.mxu0 0
  %1136 = vmatprep.subr.bf16.mxu0 0
  %1137 = vmatpush2.bf16.msra.mxu0 0
  %1138 = vmatprep.subr.bf16.mxu0 0
  %1139 = vmatpush2.bf16.msra.mxu0 0
  %1140 = vmatprep.subr.bf16.mxu0 0
  %1141 = vmatpush2.bf16.msra.mxu0 0
  %1142 = vmatprep.subr.bf16.mxu0 0
  %1143 = vmatpush2.bf16.msra.mxu0 0
  %1144 = vmatprep.subr.bf16.mxu0 0
  %1145 = vmatpush2.bf16.msra.mxu0 0
  %1146 = vmatprep.subr.bf16.mxu0 0
  %1147 = vmatpush2.bf16.msra.mxu0 0
  %1148 = vmatprep.subr.bf16.mxu0 0
  %1149 = vmatpush2.bf16.msra.mxu0 0
  %1150 = vmatprep.mubr.bf16.mxu0 0
  %1151 = vmatmul.mubr.bf16.gmra.mxu0 %v1096
  %v1152 = vpop.f32.mrf.mxu0
  %v1153 = vadd.f32 0.0, %v1152
  %v1154 = vpop.f32.mrf.mxu0
  %v1155 = vadd.f32 0.0, %v1154
  %v1156 = vpop.f32.mrf.mxu0
  %v1157 = vadd.f32 0.0, %v1156
  %v1158 = vpop.f32.mrf.mxu0
  %v1159 = vadd.f32 0.0, %v1158
  %1160 = vdwg.mxu0
  %1161 = vmatprep.subr.bf16.mxu0 %v782
  %1162 = vmatpush1.bf16.msra.mxu0 %v781
  %1163 = vmatprep.subr.bf16.mxu0 %v778
  %1164 = vmatpush1.bf16.msra.mxu0 %v777
  %1165 = vmatprep.subr.bf16.mxu0 %v774
  %1166 = vmatpush1.bf16.msra.mxu0 %v773
  %1167 = vmatprep.subr.bf16.mxu0 %v770
  %1168 = vmatpush1.bf16.msra.mxu0 %v769
  %1169 = vmatprep.subr.bf16.mxu0 %v766
  %1170 = vmatpush1.bf16.msra.mxu0 %v765
  %1171 = vmatprep.subr.bf16.mxu0 %v762
  %1172 = vmatpush1.bf16.msra.mxu0 %v761
  %1173 = vmatprep.subr.bf16.mxu0 %v758
  %1174 = vmatpush1.bf16.msra.mxu0 %v757
  %1175 = vmatprep.subr.bf16.mxu0 %v754
  %1176 = vmatpush1.bf16.msra.mxu0 %v753
  %1177 = vmatprep.subr.bf16.mxu0 0
  %1178 = vmatpush2.bf16.msra.mxu0 0
  %1179 = vmatprep.subr.bf16.mxu0 0
  %1180 = vmatpush2.bf16.msra.mxu0 0
  %1181 = vmatprep.subr.bf16.mxu0 0
  %1182 = vmatpush2.bf16.msra.mxu0 0
  %1183 = vmatprep.subr.bf16.mxu0 0
  %1184 = vmatpush2.bf16.msra.mxu0 0
  %1185 = vmatprep.subr.bf16.mxu0 0
  %1186 = vmatpush2.bf16.msra.mxu0 0
  %1187 = vmatprep.subr.bf16.mxu0 0
  %1188 = vmatpush2.bf16.msra.mxu0 0
  %1189 = vmatprep.subr.bf16.mxu0 0
  %1190 = vmatpush2.bf16.msra.mxu0 0
  %1191 = vmatprep.subr.bf16.mxu0 0
  %1192 = vmatpush2.bf16.msra.mxu0 0
  %1193 = vmatprep.mubr.bf16.mxu0 0
  %1194 = vmatmul.mubr.bf16.gmra.mxu0 %v1096
  %v1195 = vpop.f32.mrf.mxu0
  %v1196 = vadd.f32 0.0, %v1195
  %v1197 = vpop.f32.mrf.mxu0
  %v1198 = vadd.f32 0.0, %v1197
  %v1199 = vpop.f32.mrf.mxu0
  %v1200 = vadd.f32 0.0, %v1199
  %v1201 = vpop.f32.mrf.mxu0
  %v1202 = vadd.f32 0.0, %v1201
  %1203 = vdwg.mxu0
  %v1204 = vadd.f32 %v1110, %v1153
  %v1205 = vadd.f32 %v1111, %v1155
  %v1206 = vadd.f32 %v1112, %v1196
  %v1207 = vadd.f32 %v1113, %v1198
  %v1208 = vadd.f32 %v1114, %v1157
  %v1209 = vadd.f32 %v1115, %v1159
  %v1210 = vadd.f32 %v1116, %v1200
  %v1211 = vadd.f32 %v1117, %v1202
  %v1212 = vmul.f32 %v1204, 0.5
  %v1213 = vmul.f32 %v1205, 0.5
  %v1214 = vmul.f32 %v1206, 0.5
  %v1215 = vmul.f32 %v1208, 0.5
  %v1216 = vmul.f32 %v1209, 0.5
  %v1217 = vmul.f32 %v1210, 0.5
  %v1218 = vtanh.pop %v1212
  %v1219 = vtanh.pop %v1213
  %v1220 = vtanh.pop %v1214
  %v1221 = vtanh.pop %v1215
  %v1222 = vtanh.pop %v1216
  %v1223 = vtanh.pop %v1217
  %v1224 = vmul.f32 %v1218, 0.5
  %v1225 = vmul.f32 %v1219, 0.5
  %v1226 = vmul.f32 %v1220, 0.5
  %v1227 = vmul.f32 %v1221, 0.5
  %v1228 = vmul.f32 %v1222, 0.5
  %v1229 = vmul.f32 %v1223, 0.5
  %v1230 = vadd.f32 %v1224, 0.5
  %v1231 = vadd.f32 %v1225, 0.5
  %v1232 = vadd.f32 %v1226, 0.5
  %v1233 = vadd.f32 %v1227, 0.5
  %v1234 = vadd.f32 %v1228, 0.5
  %v1235 = vadd.f32 %v1229, 0.5
  %v1236 = vtanh.pop %v1207
  %v1237 = vtanh.pop %v1211
  %v1238 = vmul.f32 %v1231, %v1090
  %v1239 = vmul.f32 %v1234, %v1091
  %v1240 = vmul.f32 %v1230, %v1236
  %v1241 = vmul.f32 %v1233, %v1237
  %v1242 = vadd.f32 %v1238, %v1240
  %v1243 = vadd.f32 %v1239, %v1241
  %v1244 = vtanh.pop %v1242
  %v1245 = vtanh.pop %v1243
  %v1246 = vmul.f32 %v1232, %v1244
  %v1247 = vmul.f32 %v1235, %v1245
  %v1248 = vpack.c.bf16 %v1247, %v1246
  %v1250 = vunpack.c.l.b16 %v1248
  %v1251 = vunpack.c.h.b16 %v1248
  %v1252 = vpack.c.b16 %v1250, %v1250
  %v1253 = vpack.c.b16 %v1251, %v1251
  %s1256 = scalar_lea.vmem %s6, 16
  %1257 = vst [vmem:[%s1256] sm:$0xf] %v1252
  %1258 = vst [vmem:[%s1256 + $0x4] sm:$0xf] %v1253
  %s1259 = smul.u32 6, 4
  %s1260 = smul.addr %s1259, 8
  %s1261 = scalar_lea.vmem [#allocation2], %s1260
  %v1262 = vld [vmem:[%s1261] sm:$0xff]
  %v1263 = vld [vmem:[%s1261 + $0x8] sm:$0xff]
  %v1264 = vld [vmem:[%s1261 + $0x10] sm:$0xff]
  %v1265 = vld [vmem:[%s1261 + $0x18] sm:$0xff]
  %v1266 = vld [vmem:[%s1261 + $0x20] sm:$0xff]
  %v1267 = vld [vmem:[%s1261 + $0x28] sm:$0xff]
  %v1268 = vld [vmem:[%s1261 + $0x30] sm:$0xff]
  %v1269 = vld [vmem:[%s1261 + $0x38] sm:$0xff]
  %1270 = vmatprep.subr.bf16.mxu0 %v780
  %1271 = vmatpush1.bf16.msra.mxu0 %v779
  %1272 = vmatprep.subr.bf16.mxu0 %v776
  %1273 = vmatpush1.bf16.msra.mxu0 %v775
  %1274 = vmatprep.subr.bf16.mxu0 %v772
  %1275 = vmatpush1.bf16.msra.mxu0 %v771
  %1276 = vmatprep.subr.bf16.mxu0 %v768
  %1277 = vmatpush1.bf16.msra.mxu0 %v767
  %1278 = vmatprep.subr.bf16.mxu0 %v764
  %1279 = vmatpush1.bf16.msra.mxu0 %v763
  %1280 = vmatprep.subr.bf16.mxu0 %v760
  %1281 = vmatpush1.bf16.msra.mxu0 %v759
  %1282 = vmatprep.subr.bf16.mxu0 %v756
  %1283 = vmatpush1.bf16.msra.mxu0 %v755
  %1284 = vmatprep.subr.bf16.mxu0 %v752
  %1285 = vmatpush1.bf16.msra.mxu0 %v751
  %1286 = vmatprep.subr.bf16.mxu0 0
  %1287 = vmatpush2.bf16.msra.mxu0 0
  %1288 = vmatprep.subr.bf16.mxu0 0
  %1289 = vmatpush2.bf16.msra.mxu0 0
  %1290 = vmatprep.subr.bf16.mxu0 0
  %1291 = vmatpush2.bf16.msra.mxu0 0
  %1292 = vmatprep.subr.bf16.mxu0 0
  %1293 = vmatpush2.bf16.msra.mxu0 0
  %1294 = vmatprep.subr.bf16.mxu0 0
  %1295 = vmatpush2.bf16.msra.mxu0 0
  %1296 = vmatprep.subr.bf16.mxu0 0
  %1297 = vmatpush2.bf16.msra.mxu0 0
  %1298 = vmatprep.subr.bf16.mxu0 0
  %1299 = vmatpush2.bf16.msra.mxu0 0
  %1300 = vmatprep.subr.bf16.mxu0 0
  %1301 = vmatpush2.bf16.msra.mxu0 0
  %1302 = vmatprep.mubr.bf16.mxu0 0
  %1303 = vmatmul.mubr.bf16.gmra.mxu0 %v1248
  %v1304 = vpop.f32.mrf.mxu0
  %v1305 = vadd.f32 0.0, %v1304
  %v1306 = vpop.f32.mrf.mxu0
  %v1307 = vadd.f32 0.0, %v1306
  %v1308 = vpop.f32.mrf.mxu0
  %v1309 = vadd.f32 0.0, %v1308
  %v1310 = vpop.f32.mrf.mxu0
  %v1311 = vadd.f32 0.0, %v1310
  %1312 = vdwg.mxu0
  %1313 = vmatprep.subr.bf16.mxu0 %v782
  %1314 = vmatpush1.bf16.msra.mxu0 %v781
  %1315 = vmatprep.subr.bf16.mxu0 %v778
  %1316 = vmatpush1.bf16.msra.mxu0 %v777
  %1317 = vmatprep.subr.bf16.mxu0 %v774
  %1318 = vmatpush1.bf16.msra.mxu0 %v773
  %1319 = vmatprep.subr.bf16.mxu0 %v770
  %1320 = vmatpush1.bf16.msra.mxu0 %v769
  %1321 = vmatprep.subr.bf16.mxu0 %v766
  %1322 = vmatpush1.bf16.msra.mxu0 %v765
  %1323 = vmatprep.subr.bf16.mxu0 %v762
  %1324 = vmatpush1.bf16.msra.mxu0 %v761
  %1325 = vmatprep.subr.bf16.mxu0 %v758
  %1326 = vmatpush1.bf16.msra.mxu0 %v757
  %1327 = vmatprep.subr.bf16.mxu0 %v754
  %1328 = vmatpush1.bf16.msra.mxu0 %v753
  %1329 = vmatprep.subr.bf16.mxu0 0
  %1330 = vmatpush2.bf16.msra.mxu0 0
  %1331 = vmatprep.subr.bf16.mxu0 0
  %1332 = vmatpush2.bf16.msra.mxu0 0
  %1333 = vmatprep.subr.bf16.mxu0 0
  %1334 = vmatpush2.bf16.msra.mxu0 0
  %1335 = vmatprep.subr.bf16.mxu0 0
  %1336 = vmatpush2.bf16.msra.mxu0 0
  %1337 = vmatprep.subr.bf16.mxu0 0
  %1338 = vmatpush2.bf16.msra.mxu0 0
  %1339 = vmatprep.subr.bf16.mxu0 0
  %1340 = vmatpush2.bf16.msra.mxu0 0
  %1341 = vmatprep.subr.bf16.mxu0 0
  %1342 = vmatpush2.bf16.msra.mxu0 0
  %1343 = vmatprep.subr.bf16.mxu0 0
  %1344 = vmatpush2.bf16.msra.mxu0 0
  %1345 = vmatprep.mubr.bf16.mxu0 0
  %1346 = vmatmul.mubr.bf16.gmra.mxu0 %v1248
  %v1347 = vpop.f32.mrf.mxu0
  %v1348 = vadd.f32 0.0, %v1347
  %v1349 = vpop.f32.mrf.mxu0
  %v1350 = vadd.f32 0.0, %v1349
  %v1351 = vpop.f32.mrf.mxu0
  %v1352 = vadd.f32 0.0, %v1351
  %v1353 = vpop.f32.mrf.mxu0
  %v1354 = vadd.f32 0.0, %v1353
  %1355 = vdwg.mxu0
  %v1356 = vadd.f32 %v1262, %v1305
  %v1357 = vadd.f32 %v1263, %v1307
  %v1358 = vadd.f32 %v1264, %v1348
  %v1359 = vadd.f32 %v1265, %v1350
  %v1360 = vadd.f32 %v1266, %v1309
  %v1361 = vadd.f32 %v1267, %v1311
  %v1362 = vadd.f32 %v1268, %v1352
  %v1363 = vadd.f32 %v1269, %v1354
  %v1364 = vmul.f32 %v1356, 0.5
  %v1365 = vmul.f32 %v1357, 0.5
  %v1366 = vmul.f32 %v1358, 0.5
  %v1367 = vmul.f32 %v1360, 0.5
  %v1368 = vmul.f32 %v1361, 0.5
  %v1369 = vmul.f32 %v1362, 0.5
  %v1370 = vtanh.pop %v1364
  %v1371 = vtanh.pop %v1365
  %v1372 = vtanh.pop %v1366
  %v1373 = vtanh.pop %v1367
  %v1374 = vtanh.pop %v1368
  %v1375 = vtanh.pop %v1369
  %v1376 = vmul.f32 %v1370, 0.5
  %v1377 = vmul.f32 %v1371, 0.5
  %v1378 = vmul.f32 %v1372, 0.5
  %v1379 = vmul.f32 %v1373, 0.5
  %v1380 = vmul.f32 %v1374, 0.5
  %v1381 = vmul.f32 %v1375, 0.5
  %v1382 = vadd.f32 %v1376, 0.5
  %v1383 = vadd.f32 %v1377, 0.5
  %v1384 = vadd.f32 %v1378, 0.5
  %v1385 = vadd.f32 %v1379, 0.5
  %v1386 = vadd.f32 %v1380, 0.5
  %v1387 = vadd.f32 %v1381, 0.5
  %v1388 = vtanh.pop %v1359
  %v1389 = vtanh.pop %v1363
  %v1390 = vmul.f32 %v1383, %v1242
  %v1391 = vmul.f32 %v1386, %v1243
  %v1392 = vmul.f32 %v1382, %v1388
  %v1393 = vmul.f32 %v1385, %v1389
  %v1394 = vadd.f32 %v1390, %v1392
  %v1395 = vadd.f32 %v1391, %v1393
  %v1396 = vtanh.pop %v1394
  %v1397 = vtanh.pop %v1395
  %v1398 = vmul.f32 %v1384, %v1396
  %v1399 = vmul.f32 %v1387, %v1397
  %v1400 = vpack.c.bf16 %v1399, %v1398
  %v1402 = vunpack.c.l.b16 %v1400
  %v1403 = vunpack.c.h.b16 %v1400
  %v1404 = vpack.c.b16 %v1402, %v1402
  %v1405 = vpack.c.b16 %v1403, %v1403
  %s1408 = scalar_lea.vmem %s6, 24
  %1409 = vst [vmem:[%s1408] sm:$0xf] %v1404
  %1410 = vst [vmem:[%s1408 + $0x4] sm:$0xf] %v1405
  %s1411 = smul.u32 8, 4
  %s1412 = smul.addr %s1411, 8
  %s1413 = scalar_lea.vmem [#allocation2], %s1412
  %v1414 = vld [vmem:[%s1413] sm:$0xff]
  %v1415 = vld [vmem:[%s1413 + $0x8] sm:$0xff]
  %v1416 = vld [vmem:[%s1413 + $0x10] sm:$0xff]
  %v1417 = vld [vmem:[%s1413 + $0x18] sm:$0xff]
  %v1418 = vld [vmem:[%s1413 + $0x20] sm:$0xff]
  %v1419 = vld [vmem:[%s1413 + $0x28] sm:$0xff]
  %v1420 = vld [vmem:[%s1413 + $0x30] sm:$0xff]
  %v1421 = vld [vmem:[%s1413 + $0x38] sm:$0xff]
  %1422 = vmatprep.subr.bf16.mxu0 %v780
  %1423 = vmatpush1.bf16.msra.mxu0 %v779
  %1424 = vmatprep.subr.bf16.mxu0 %v776
  %1425 = vmatpush1.bf16.msra.mxu0 %v775
  %1426 = vmatprep.subr.bf16.mxu0 %v772
  %1427 = vmatpush1.bf16.msra.mxu0 %v771
  %1428 = vmatprep.subr.bf16.mxu0 %v768
  %1429 = vmatpush1.bf16.msra.mxu0 %v767
  %1430 = vmatprep.subr.bf16.mxu0 %v764
  %1431 = vmatpush1.bf16.msra.mxu0 %v763
  %1432 = vmatprep.subr.bf16.mxu0 %v760
  %1433 = vmatpush1.bf16.msra.mxu0 %v759
  %1434 = vmatprep.subr.bf16.mxu0 %v756
  %1435 = vmatpush1.bf16.msra.mxu0 %v755
  %1436 = vmatprep.subr.bf16.mxu0 %v752
  %1437 = vmatpush1.bf16.msra.mxu0 %v751
  %1438 = vmatprep.subr.bf16.mxu0 0
  %1439 = vmatpush2.bf16.msra.mxu0 0
  %1440 = vmatprep.subr.bf16.mxu0 0
  %1441 = vmatpush2.bf16.msra.mxu0 0
  %1442 = vmatprep.subr.bf16.mxu0 0
  %1443 = vmatpush2.bf16.msra.mxu0 0
  %1444 = vmatprep.subr.bf16.mxu0 0
  %1445 = vmatpush2.bf16.msra.mxu0 0
  %1446 = vmatprep.subr.bf16.mxu0 0
  %1447 = vmatpush2.bf16.msra.mxu0 0
  %1448 = vmatprep.subr.bf16.mxu0 0
  %1449 = vmatpush2.bf16.msra.mxu0 0
  %1450 = vmatprep.subr.bf16.mxu0 0
  %1451 = vmatpush2.bf16.msra.mxu0 0
  %1452 = vmatprep.subr.bf16.mxu0 0
  %1453 = vmatpush2.bf16.msra.mxu0 0
  %1454 = vmatprep.mubr.bf16.mxu0 0
  %1455 = vmatmul.mubr.bf16.gmra.mxu0 %v1400
  %v1456 = vpop.f32.mrf.mxu0
  %v1457 = vadd.f32 0.0, %v1456
  %v1458 = vpop.f32.mrf.mxu0
  %v1459 = vadd.f32 0.0, %v1458
  %v1460 = vpop.f32.mrf.mxu0
  %v1461 = vadd.f32 0.0, %v1460
  %v1462 = vpop.f32.mrf.mxu0
  %v1463 = vadd.f32 0.0, %v1462
  %1464 = vdwg.mxu0
  %1465 = vmatprep.subr.bf16.mxu0 %v782
  %1466 = vmatpush1.bf16.msra.mxu0 %v781
  %1467 = vmatprep.subr.bf16.mxu0 %v778
  %1468 = vmatpush1.bf16.msra.mxu0 %v777
  %1469 = vmatprep.subr.bf16.mxu0 %v774
  %1470 = vmatpush1.bf16.msra.mxu0 %v773
  %1471 = vmatprep.subr.bf16.mxu0 %v770
  %1472 = vmatpush1.bf16.msra.mxu0 %v769
  %1473 = vmatprep.subr.bf16.mxu0 %v766
  %1474 = vmatpush1.bf16.msra.mxu0 %v765
  %1475 = vmatprep.subr.bf16.mxu0 %v762
  %1476 = vmatpush1.bf16.msra.mxu0 %v761
  %1477 = vmatprep.subr.bf16.mxu0 %v758
  %1478 = vmatpush1.bf16.msra.mxu0 %v757
  %1479 = vmatprep.subr.bf16.mxu0 %v754
  %1480 = vmatpush1.bf16.msra.mxu0 %v753
  %1481 = vmatprep.subr.bf16.mxu0 0
  %1482 = vmatpush2.bf16.msra.mxu0 0
  %1483 = vmatprep.subr.bf16.mxu0 0
  %1484 = vmatpush2.bf16.msra.mxu0 0
  %1485 = vmatprep.subr.bf16.mxu0 0
  %1486 = vmatpush2.bf16.msra.mxu0 0
  %1487 = vmatprep.subr.bf16.mxu0 0
  %1488 = vmatpush2.bf16.msra.mxu0 0
  %1489 = vmatprep.subr.bf16.mxu0 0
  %1490 = vmatpush2.bf16.msra.mxu0 0
  %1491 = vmatprep.subr.bf16.mxu0 0
  %1492 = vmatpush2.bf16.msra.mxu0 0
  %1493 = vmatprep.subr.bf16.mxu0 0
  %1494 = vmatpush2.bf16.msra.mxu0 0
  %1495 = vmatprep.subr.bf16.mxu0 0
  %1496 = vmatpush2.bf16.msra.mxu0 0
  %1497 = vmatprep.mubr.bf16.mxu0 0
  %1498 = vmatmul.mubr.bf16.gmra.mxu0 %v1400
  %v1499 = vpop.f32.mrf.mxu0
  %v1500 = vadd.f32 0.0, %v1499
  %v1501 = vpop.f32.mrf.mxu0
  %v1502 = vadd.f32 0.0, %v1501
  %v1503 = vpop.f32.mrf.mxu0
  %v1504 = vadd.f32 0.0, %v1503
  %v1505 = vpop.f32.mrf.mxu0
  %v1506 = vadd.f32 0.0, %v1505
  %1507 = vdwg.mxu0
  %v1508 = vadd.f32 %v1414, %v1457
  %v1509 = vadd.f32 %v1415, %v1459
  %v1510 = vadd.f32 %v1416, %v1500
  %v1511 = vadd.f32 %v1417, %v1502
  %v1512 = vadd.f32 %v1418, %v1461
  %v1513 = vadd.f32 %v1419, %v1463
  %v1514 = vadd.f32 %v1420, %v1504
  %v1515 = vadd.f32 %v1421, %v1506
  %v1516 = vmul.f32 %v1508, 0.5
  %v1517 = vmul.f32 %v1509, 0.5
  %v1518 = vmul.f32 %v1510, 0.5
  %v1519 = vmul.f32 %v1512, 0.5
  %v1520 = vmul.f32 %v1513, 0.5
  %v1521 = vmul.f32 %v1514, 0.5
  %v1522 = vtanh.pop %v1516
  %v1523 = vtanh.pop %v1517
  %v1524 = vtanh.pop %v1518
  %v1525 = vtanh.pop %v1519
  %v1526 = vtanh.pop %v1520
  %v1527 = vtanh.pop %v1521
  %v1528 = vmul.f32 %v1522, 0.5
  %v1529 = vmul.f32 %v1523, 0.5
  %v1530 = vmul.f32 %v1524, 0.5
  %v1531 = vmul.f32 %v1525, 0.5
  %v1532 = vmul.f32 %v1526, 0.5
  %v1533 = vmul.f32 %v1527, 0.5
  %v1534 = vadd.f32 %v1528, 0.5
  %v1535 = vadd.f32 %v1529, 0.5
  %v1536 = vadd.f32 %v1530, 0.5
  %v1537 = vadd.f32 %v1531, 0.5
  %v1538 = vadd.f32 %v1532, 0.5
  %v1539 = vadd.f32 %v1533, 0.5
  %v1540 = vtanh.pop %v1511
  %v1541 = vtanh.pop %v1515
  %v1542 = vmul.f32 %v1535, %v1394
  %v1543 = vmul.f32 %v1538, %v1395
  %v1544 = vmul.f32 %v1534, %v1540
  %v1545 = vmul.f32 %v1537, %v1541
  %v1546 = vadd.f32 %v1542, %v1544
  %v1547 = vadd.f32 %v1543, %v1545
  %v1548 = vtanh.pop %v1546
  %v1549 = vtanh.pop %v1547
  %v1550 = vmul.f32 %v1536, %v1548
  %v1551 = vmul.f32 %v1539, %v1549
  %v1552 = vpack.c.bf16 %v1551, %v1550
  %v1554 = vunpack.c.l.b16 %v1552
  %v1555 = vunpack.c.h.b16 %v1552
  %v1556 = vpack.c.b16 %v1554, %v1554
  %v1557 = vpack.c.b16 %v1555, %v1555
  %s1560 = scalar_lea.vmem %s6, 32
  %1561 = vst [vmem:[%s1560] sm:$0xf] %v1556
  %1562 = vst [vmem:[%s1560 + $0x4] sm:$0xf] %v1557
  %s1563 = smul.u32 10, 4
  %s1564 = smul.addr %s1563, 8
  %s1565 = scalar_lea.vmem [#allocation2], %s1564
  %v1566 = vld [vmem:[%s1565] sm:$0xff]
  %v1567 = vld [vmem:[%s1565 + $0x8] sm:$0xff]
  %v1568 = vld [vmem:[%s1565 + $0x10] sm:$0xff]
  %v1569 = vld [vmem:[%s1565 + $0x18] sm:$0xff]
  %v1570 = vld [vmem:[%s1565 + $0x20] sm:$0xff]
  %v1571 = vld [vmem:[%s1565 + $0x28] sm:$0xff]
  %v1572 = vld [vmem:[%s1565 + $0x30] sm:$0xff]
  %v1573 = vld [vmem:[%s1565 + $0x38] sm:$0xff]
  %1574 = vmatprep.subr.bf16.mxu0 %v780
  %1575 = vmatpush1.bf16.msra.mxu0 %v779
  %1576 = vmatprep.subr.bf16.mxu0 %v776
  %1577 = vmatpush1.bf16.msra.mxu0 %v775
  %1578 = vmatprep.subr.bf16.mxu0 %v772
  %1579 = vmatpush1.bf16.msra.mxu0 %v771
  %1580 = vmatprep.subr.bf16.mxu0 %v768
  %1581 = vmatpush1.bf16.msra.mxu0 %v767
  %1582 = vmatprep.subr.bf16.mxu0 %v764
  %1583 = vmatpush1.bf16.msra.mxu0 %v763
  %1584 = vmatprep.subr.bf16.mxu0 %v760
  %1585 = vmatpush1.bf16.msra.mxu0 %v759
  %1586 = vmatprep.subr.bf16.mxu0 %v756
  %1587 = vmatpush1.bf16.msra.mxu0 %v755
  %1588 = vmatprep.subr.bf16.mxu0 %v752
  %1589 = vmatpush1.bf16.msra.mxu0 %v751
  %1590 = vmatprep.subr.bf16.mxu0 0
  %1591 = vmatpush2.bf16.msra.mxu0 0
  %1592 = vmatprep.subr.bf16.mxu0 0
  %1593 = vmatpush2.bf16.msra.mxu0 0
  %1594 = vmatprep.subr.bf16.mxu0 0
  %1595 = vmatpush2.bf16.msra.mxu0 0
  %1596 = vmatprep.subr.bf16.mxu0 0
  %1597 = vmatpush2.bf16.msra.mxu0 0
  %1598 = vmatprep.subr.bf16.mxu0 0
  %1599 = vmatpush2.bf16.msra.mxu0 0
  %1600 = vmatprep.subr.bf16.mxu0 0
  %1601 = vmatpush2.bf16.msra.mxu0 0
  %1602 = vmatprep.subr.bf16.mxu0 0
  %1603 = vmatpush2.bf16.msra.mxu0 0
  %1604 = vmatprep.subr.bf16.mxu0 0
  %1605 = vmatpush2.bf16.msra.mxu0 0
  %1606 = vmatprep.mubr.bf16.mxu0 0
  %1607 = vmatmul.mubr.bf16.gmra.mxu0 %v1552
  %v1608 = vpop.f32.mrf.mxu0
  %v1609 = vadd.f32 0.0, %v1608
  %v1610 = vpop.f32.mrf.mxu0
  %v1611 = vadd.f32 0.0, %v1610
  %v1612 = vpop.f32.mrf.mxu0
  %v1613 = vadd.f32 0.0, %v1612
  %v1614 = vpop.f32.mrf.mxu0
  %v1615 = vadd.f32 0.0, %v1614
  %1616 = vdwg.mxu0
  %1617 = vmatprep.subr.bf16.mxu0 %v782
  %1618 = vmatpush1.bf16.msra.mxu0 %v781
  %1619 = vmatprep.subr.bf16.mxu0 %v778
  %1620 = vmatpush1.bf16.msra.mxu0 %v777
  %1621 = vmatprep.subr.bf16.mxu0 %v774
  %1622 = vmatpush1.bf16.msra.mxu0 %v773
  %1623 = vmatprep.subr.bf16.mxu0 %v770
  %1624 = vmatpush1.bf16.msra.mxu0 %v769
  %1625 = vmatprep.subr.bf16.mxu0 %v766
  %1626 = vmatpush1.bf16.msra.mxu0 %v765
  %1627 = vmatprep.subr.bf16.mxu0 %v762
  %1628 = vmatpush1.bf16.msra.mxu0 %v761
  %1629 = vmatprep.subr.bf16.mxu0 %v758
  %1630 = vmatpush1.bf16.msra.mxu0 %v757
  %1631 = vmatprep.subr.bf16.mxu0 %v754
  %1632 = vmatpush1.bf16.msra.mxu0 %v753
  %1633 = vmatprep.subr.bf16.mxu0 0
  %1634 = vmatpush2.bf16.msra.mxu0 0
  %1635 = vmatprep.subr.bf16.mxu0 0
  %1636 = vmatpush2.bf16.msra.mxu0 0
  %1637 = vmatprep.subr.bf16.mxu0 0
  %1638 = vmatpush2.bf16.msra.mxu0 0
  %1639 = vmatprep.subr.bf16.mxu0 0
  %1640 = vmatpush2.bf16.msra.mxu0 0
  %1641 = vmatprep.subr.bf16.mxu0 0
  %1642 = vmatpush2.bf16.msra.mxu0 0
  %1643 = vmatprep.subr.bf16.mxu0 0
  %1644 = vmatpush2.bf16.msra.mxu0 0
  %1645 = vmatprep.subr.bf16.mxu0 0
  %1646 = vmatpush2.bf16.msra.mxu0 0
  %1647 = vmatprep.subr.bf16.mxu0 0
  %1648 = vmatpush2.bf16.msra.mxu0 0
  %1649 = vmatprep.mubr.bf16.mxu0 0
  %1650 = vmatmul.mubr.bf16.gmra.mxu0 %v1552
  %v1651 = vpop.f32.mrf.mxu0
  %v1652 = vadd.f32 0.0, %v1651
  %v1653 = vpop.f32.mrf.mxu0
  %v1654 = vadd.f32 0.0, %v1653
  %v1655 = vpop.f32.mrf.mxu0
  %v1656 = vadd.f32 0.0, %v1655
  %v1657 = vpop.f32.mrf.mxu0
  %v1658 = vadd.f32 0.0, %v1657
  %1659 = vdwg.mxu0
  %v1660 = vadd.f32 %v1566, %v1609
  %v1661 = vadd.f32 %v1567, %v1611
  %v1662 = vadd.f32 %v1568, %v1652
  %v1663 = vadd.f32 %v1569, %v1654
  %v1664 = vadd.f32 %v1570, %v1613
  %v1665 = vadd.f32 %v1571, %v1615
  %v1666 = vadd.f32 %v1572, %v1656
  %v1667 = vadd.f32 %v1573, %v1658
  %v1668 = vmul.f32 %v1660, 0.5
  %v1669 = vmul.f32 %v1661, 0.5
  %v1670 = vmul.f32 %v1662, 0.5
  %v1671 = vmul.f32 %v1664, 0.5
  %v1672 = vmul.f32 %v1665, 0.5
  %v1673 = vmul.f32 %v1666, 0.5
  %v1674 = vtanh.pop %v1668
  %v1675 = vtanh.pop %v1669
  %v1676 = vtanh.pop %v1670
  %v1677 = vtanh.pop %v1671
  %v1678 = vtanh.pop %v1672
  %v1679 = vtanh.pop %v1673
  %v1680 = vmul.f32 %v1674, 0.5
  %v1681 = vmul.f32 %v1675, 0.5
  %v1682 = vmul.f32 %v1676, 0.5
  %v1683 = vmul.f32 %v1677, 0.5
  %v1684 = vmul.f32 %v1678, 0.5
  %v1685 = vmul.f32 %v1679, 0.5
  %v1686 = vadd.f32 %v1680, 0.5
  %v1687 = vadd.f32 %v1681, 0.5
  %v1688 = vadd.f32 %v1682, 0.5
  %v1689 = vadd.f32 %v1683, 0.5
  %v1690 = vadd.f32 %v1684, 0.5
  %v1691 = vadd.f32 %v1685, 0.5
  %v1692 = vtanh.pop %v1663
  %v1693 = vtanh.pop %v1667
  %v1694 = vmul.f32 %v1687, %v1546
  %v1695 = vmul.f32 %v1690, %v1547
  %v1696 = vmul.f32 %v1686, %v1692
  %v1697 = vmul.f32 %v1689, %v1693
  %v1698 = vadd.f32 %v1694, %v1696
  %v1699 = vadd.f32 %v1695, %v1697
  %v1700 = vtanh.pop %v1698
  %v1701 = vtanh.pop %v1699
  %v1702 = vmul.f32 %v1688, %v1700
  %v1703 = vmul.f32 %v1691, %v1701
  %v1704 = vpack.c.bf16 %v1703, %v1702
  %v1706 = vunpack.c.l.b16 %v1704
  %v1707 = vunpack.c.h.b16 %v1704
  %v1708 = vpack.c.b16 %v1706, %v1706
  %v1709 = vpack.c.b16 %v1707, %v1707
  %s1712 = scalar_lea.vmem %s6, 40
  %1713 = vst [vmem:[%s1712] sm:$0xf] %v1708
  %1714 = vst [vmem:[%s1712 + $0x4] sm:$0xf] %v1709
  %s1715 = smul.u32 12, 4
  %s1716 = smul.addr %s1715, 8
  %s1717 = scalar_lea.vmem [#allocation2], %s1716
  %v1718 = vld [vmem:[%s1717] sm:$0xff]
  %v1719 = vld [vmem:[%s1717 + $0x8] sm:$0xff]
  %v1720 = vld [vmem:[%s1717 + $0x10] sm:$0xff]
  %v1721 = vld [vmem:[%s1717 + $0x18] sm:$0xff]
  %v1722 = vld [vmem:[%s1717 + $0x20] sm:$0xff]
  %v1723 = vld [vmem:[%s1717 + $0x28] sm:$0xff]
  %v1724 = vld [vmem:[%s1717 + $0x30] sm:$0xff]
  %v1725 = vld [vmem:[%s1717 + $0x38] sm:$0xff]
  %1726 = vmatprep.subr.bf16.mxu0 %v780
  %1727 = vmatpush1.bf16.msra.mxu0 %v779
  %1728 = vmatprep.subr.bf16.mxu0 %v776
  %1729 = vmatpush1.bf16.msra.mxu0 %v775
  %1730 = vmatprep.subr.bf16.mxu0 %v772
  %1731 = vmatpush1.bf16.msra.mxu0 %v771
  %1732 = vmatprep.subr.bf16.mxu0 %v768
  %1733 = vmatpush1.bf16.msra.mxu0 %v767
  %1734 = vmatprep.subr.bf16.mxu0 %v764
  %1735 = vmatpush1.bf16.msra.mxu0 %v763
  %1736 = vmatprep.subr.bf16.mxu0 %v760
  %1737 = vmatpush1.bf16.msra.mxu0 %v759
  %1738 = vmatprep.subr.bf16.mxu0 %v756
  %1739 = vmatpush1.bf16.msra.mxu0 %v755
  %1740 = vmatprep.subr.bf16.mxu0 %v752
  %1741 = vmatpush1.bf16.msra.mxu0 %v751
  %1742 = vmatprep.subr.bf16.mxu0 0
  %1743 = vmatpush2.bf16.msra.mxu0 0
  %1744 = vmatprep.subr.bf16.mxu0 0
  %1745 = vmatpush2.bf16.msra.mxu0 0
  %1746 = vmatprep.subr.bf16.mxu0 0
  %1747 = vmatpush2.bf16.msra.mxu0 0
  %1748 = vmatprep.subr.bf16.mxu0 0
  %1749 = vmatpush2.bf16.msra.mxu0 0
  %1750 = vmatprep.subr.bf16.mxu0 0
  %1751 = vmatpush2.bf16.msra.mxu0 0
  %1752 = vmatprep.subr.bf16.mxu0 0
  %1753 = vmatpush2.bf16.msra.mxu0 0
  %1754 = vmatprep.subr.bf16.mxu0 0
  %1755 = vmatpush2.bf16.msra.mxu0 0
  %1756 = vmatprep.subr.bf16.mxu0 0
  %1757 = vmatpush2.bf16.msra.mxu0 0
  %1758 = vmatprep.mubr.bf16.mxu0 0
  %1759 = vmatmul.mubr.bf16.gmra.mxu0 %v1704
  %v1760 = vpop.f32.mrf.mxu0
  %v1761 = vadd.f32 0.0, %v1760
  %v1762 = vpop.f32.mrf.mxu0
  %v1763 = vadd.f32 0.0, %v1762
  %v1764 = vpop.f32.mrf.mxu0
  %v1765 = vadd.f32 0.0, %v1764
  %v1766 = vpop.f32.mrf.mxu0
  %v1767 = vadd.f32 0.0, %v1766
  %1768 = vdwg.mxu0
  %1769 = vmatprep.subr.bf16.mxu0 %v782
  %1770 = vmatpush1.bf16.msra.mxu0 %v781
  %1771 = vmatprep.subr.bf16.mxu0 %v778
  %1772 = vmatpush1.bf16.msra.mxu0 %v777
  %1773 = vmatprep.subr.bf16.mxu0 %v774
  %1774 = vmatpush1.bf16.msra.mxu0 %v773
  %1775 = vmatprep.subr.bf16.mxu0 %v770
  %1776 = vmatpush1.bf16.msra.mxu0 %v769
  %1777 = vmatprep.subr.bf16.mxu0 %v766
  %1778 = vmatpush1.bf16.msra.mxu0 %v765
  %1779 = vmatprep.subr.bf16.mxu0 %v762
  %1780 = vmatpush1.bf16.msra.mxu0 %v761
  %1781 = vmatprep.subr.bf16.mxu0 %v758
  %1782 = vmatpush1.bf16.msra.mxu0 %v757
  %1783 = vmatprep.subr.bf16.mxu0 %v754
  %1784 = vmatpush1.bf16.msra.mxu0 %v753
  %1785 = vmatprep.subr.bf16.mxu0 0
  %1786 = vmatpush2.bf16.msra.mxu0 0
  %1787 = vmatprep.subr.bf16.mxu0 0
  %1788 = vmatpush2.bf16.msra.mxu0 0
  %1789 = vmatprep.subr.bf16.mxu0 0
  %1790 = vmatpush2.bf16.msra.mxu0 0
  %1791 = vmatprep.subr.bf16.mxu0 0
  %1792 = vmatpush2.bf16.msra.mxu0 0
  %1793 = vmatprep.subr.bf16.mxu0 0
  %1794 = vmatpush2.bf16.msra.mxu0 0
  %1795 = vmatprep.subr.bf16.mxu0 0
  %1796 = vmatpush2.bf16.msra.mxu0 0
  %1797 = vmatprep.subr.bf16.mxu0 0
  %1798 = vmatpush2.bf16.msra.mxu0 0
  %1799 = vmatprep.subr.bf16.mxu0 0
  %1800 = vmatpush2.bf16.msra.mxu0 0
  %1801 = vmatprep.mubr.bf16.mxu0 0
  %1802 = vmatmul.mubr.bf16.gmra.mxu0 %v1704
  %v1803 = vpop.f32.mrf.mxu0
  %v1804 = vadd.f32 0.0, %v1803
  %v1805 = vpop.f32.mrf.mxu0
  %v1806 = vadd.f32 0.0, %v1805
  %v1807 = vpop.f32.mrf.mxu0
  %v1808 = vadd.f32 0.0, %v1807
  %v1809 = vpop.f32.mrf.mxu0
  %v1810 = vadd.f32 0.0, %v1809
  %1811 = vdwg.mxu0
  %v1812 = vadd.f32 %v1718, %v1761
  %v1813 = vadd.f32 %v1719, %v1763
  %v1814 = vadd.f32 %v1720, %v1804
  %v1815 = vadd.f32 %v1721, %v1806
  %v1816 = vadd.f32 %v1722, %v1765
  %v1817 = vadd.f32 %v1723, %v1767
  %v1818 = vadd.f32 %v1724, %v1808
  %v1819 = vadd.f32 %v1725, %v1810
  %v1820 = vmul.f32 %v1812, 0.5
  %v1821 = vmul.f32 %v1813, 0.5
  %v1822 = vmul.f32 %v1814, 0.5
  %v1823 = vmul.f32 %v1816, 0.5
  %v1824 = vmul.f32 %v1817, 0.5
  %v1825 = vmul.f32 %v1818, 0.5
  %v1826 = vtanh.pop %v1820
  %v1827 = vtanh.pop %v1821
  %v1828 = vtanh.pop %v1822
  %v1829 = vtanh.pop %v1823
  %v1830 = vtanh.pop %v1824
  %v1831 = vtanh.pop %v1825
  %v1832 = vmul.f32 %v1826, 0.5
  %v1833 = vmul.f32 %v1827, 0.5
  %v1834 = vmul.f32 %v1828, 0.5
  %v1835 = vmul.f32 %v1829, 0.5
  %v1836 = vmul.f32 %v1830, 0.5
  %v1837 = vmul.f32 %v1831, 0.5
  %v1838 = vadd.f32 %v1832, 0.5
  %v1839 = vadd.f32 %v1833, 0.5
  %v1840 = vadd.f32 %v1834, 0.5
  %v1841 = vadd.f32 %v1835, 0.5
  %v1842 = vadd.f32 %v1836, 0.5
  %v1843 = vadd.f32 %v1837, 0.5
  %v1844 = vtanh.pop %v1815
  %v1845 = vtanh.pop %v1819
  %v1846 = vmul.f32 %v1839, %v1698
  %v1847 = vmul.f32 %v1842, %v1699
  %v1848 = vmul.f32 %v1838, %v1844
  %v1849 = vmul.f32 %v1841, %v1845
  %v1850 = vadd.f32 %v1846, %v1848
  %v1851 = vadd.f32 %v1847, %v1849
  %v1852 = vtanh.pop %v1850
  %v1853 = vtanh.pop %v1851
  %v1854 = vmul.f32 %v1840, %v1852
  %v1855 = vmul.f32 %v1843, %v1853
  %v1856 = vpack.c.bf16 %v1855, %v1854
  %v1858 = vunpack.c.l.b16 %v1856
  %v1859 = vunpack.c.h.b16 %v1856
  %v1860 = vpack.c.b16 %v1858, %v1858
  %v1861 = vpack.c.b16 %v1859, %v1859
  %s1864 = scalar_lea.vmem %s6, 48
  %1865 = vst [vmem:[%s1864] sm:$0xf] %v1860
  %1866 = vst [vmem:[%s1864 + $0x4] sm:$0xf] %v1861
  %s1867 = smul.u32 14, 4
  %s1868 = smul.addr %s1867, 8
  %s1869 = scalar_lea.vmem [#allocation2], %s1868
  %v1870 = vld [vmem:[%s1869] sm:$0xff]
  %v1871 = vld [vmem:[%s1869 + $0x8] sm:$0xff]
  %v1872 = vld [vmem:[%s1869 + $0x10] sm:$0xff]
  %v1873 = vld [vmem:[%s1869 + $0x18] sm:$0xff]
  %v1874 = vld [vmem:[%s1869 + $0x20] sm:$0xff]
  %v1875 = vld [vmem:[%s1869 + $0x28] sm:$0xff]
  %v1876 = vld [vmem:[%s1869 + $0x30] sm:$0xff]
  %v1877 = vld [vmem:[%s1869 + $0x38] sm:$0xff]
  %1878 = vmatprep.subr.bf16.mxu0 %v780
  %1879 = vmatpush1.bf16.msra.mxu0 %v779
  %1880 = vmatprep.subr.bf16.mxu0 %v776
  %1881 = vmatpush1.bf16.msra.mxu0 %v775
  %1882 = vmatprep.subr.bf16.mxu0 %v772
  %1883 = vmatpush1.bf16.msra.mxu0 %v771
  %1884 = vmatprep.subr.bf16.mxu0 %v768
  %1885 = vmatpush1.bf16.msra.mxu0 %v767
  %1886 = vmatprep.subr.bf16.mxu0 %v764
  %1887 = vmatpush1.bf16.msra.mxu0 %v763
  %1888 = vmatprep.subr.bf16.mxu0 %v760
  %1889 = vmatpush1.bf16.msra.mxu0 %v759
  %1890 = vmatprep.subr.bf16.mxu0 %v756
  %1891 = vmatpush1.bf16.msra.mxu0 %v755
  %1892 = vmatprep.subr.bf16.mxu0 %v752
  %1893 = vmatpush1.bf16.msra.mxu0 %v751
  %1894 = vmatprep.subr.bf16.mxu0 0
  %1895 = vmatpush2.bf16.msra.mxu0 0
  %1896 = vmatprep.subr.bf16.mxu0 0
  %1897 = vmatpush2.bf16.msra.mxu0 0
  %1898 = vmatprep.subr.bf16.mxu0 0
  %1899 = vmatpush2.bf16.msra.mxu0 0
  %1900 = vmatprep.subr.bf16.mxu0 0
  %1901 = vmatpush2.bf16.msra.mxu0 0
  %1902 = vmatprep.subr.bf16.mxu0 0
  %1903 = vmatpush2.bf16.msra.mxu0 0
  %1904 = vmatprep.subr.bf16.mxu0 0
  %1905 = vmatpush2.bf16.msra.mxu0 0
  %1906 = vmatprep.subr.bf16.mxu0 0
  %1907 = vmatpush2.bf16.msra.mxu0 0
  %1908 = vmatprep.subr.bf16.mxu0 0
  %1909 = vmatpush2.bf16.msra.mxu0 0
  %1910 = vmatprep.mubr.bf16.mxu0 0
  %1911 = vmatmul.mubr.bf16.gmra.mxu0 %v1856
  %v1912 = vpop.f32.mrf.mxu0
  %v1913 = vadd.f32 0.0, %v1912
  %v1914 = vpop.f32.mrf.mxu0
  %v1915 = vadd.f32 0.0, %v1914
  %v1916 = vpop.f32.mrf.mxu0
  %v1917 = vadd.f32 0.0, %v1916
  %v1918 = vpop.f32.mrf.mxu0
  %v1919 = vadd.f32 0.0, %v1918
  %1920 = vdwg.mxu0
  %1921 = vmatprep.subr.bf16.mxu0 %v782
  %1922 = vmatpush1.bf16.msra.mxu0 %v781
  %1923 = vmatprep.subr.bf16.mxu0 %v778
  %1924 = vmatpush1.bf16.msra.mxu0 %v777
  %1925 = vmatprep.subr.bf16.mxu0 %v774
  %1926 = vmatpush1.bf16.msra.mxu0 %v773
  %1927 = vmatprep.subr.bf16.mxu0 %v770
  %1928 = vmatpush1.bf16.msra.mxu0 %v769
  %1929 = vmatprep.subr.bf16.mxu0 %v766
  %1930 = vmatpush1.bf16.msra.mxu0 %v765
  %1931 = vmatprep.subr.bf16.mxu0 %v762
  %1932 = vmatpush1.bf16.msra.mxu0 %v761
  %1933 = vmatprep.subr.bf16.mxu0 %v758
  %1934 = vmatpush1.bf16.msra.mxu0 %v757
  %1935 = vmatprep.subr.bf16.mxu0 %v754
  %1936 = vmatpush1.bf16.msra.mxu0 %v753
  %1937 = vmatprep.subr.bf16.mxu0 0
  %1938 = vmatpush2.bf16.msra.mxu0 0
  %1939 = vmatprep.subr.bf16.mxu0 0
  %1940 = vmatpush2.bf16.msra.mxu0 0
  %1941 = vmatprep.subr.bf16.mxu0 0
  %1942 = vmatpush2.bf16.msra.mxu0 0
  %1943 = vmatprep.subr.bf16.mxu0 0
  %1944 = vmatpush2.bf16.msra.mxu0 0
  %1945 = vmatprep.subr.bf16.mxu0 0
  %1946 = vmatpush2.bf16.msra.mxu0 0
  %1947 = vmatprep.subr.bf16.mxu0 0
  %1948 = vmatpush2.bf16.msra.mxu0 0
  %1949 = vmatprep.subr.bf16.mxu0 0
  %1950 = vmatpush2.bf16.msra.mxu0 0
  %1951 = vmatprep.subr.bf16.mxu0 0
  %1952 = vmatpush2.bf16.msra.mxu0 0
  %1953 = vmatprep.mubr.bf16.mxu0 0
  %1954 = vmatmul.mubr.bf16.gmra.mxu0 %v1856
  %v1955 = vpop.f32.mrf.mxu0
  %v1956 = vadd.f32 0.0, %v1955
  %v1957 = vpop.f32.mrf.mxu0
  %v1958 = vadd.f32 0.0, %v1957
  %v1959 = vpop.f32.mrf.mxu0
  %v1960 = vadd.f32 0.0, %v1959
  %v1961 = vpop.f32.mrf.mxu0
  %v1962 = vadd.f32 0.0, %v1961
  %1963 = vdwg.mxu0
  %v1964 = vadd.f32 %v1870, %v1913
  %v1965 = vadd.f32 %v1871, %v1915
  %v1966 = vadd.f32 %v1872, %v1956
  %v1967 = vadd.f32 %v1873, %v1958
  %v1968 = vadd.f32 %v1874, %v1917
  %v1969 = vadd.f32 %v1875, %v1919
  %v1970 = vadd.f32 %v1876, %v1960
  %v1971 = vadd.f32 %v1877, %v1962
  %v1972 = vmul.f32 %v1964, 0.5
  %v1973 = vmul.f32 %v1965, 0.5
  %v1974 = vmul.f32 %v1966, 0.5
  %v1975 = vmul.f32 %v1968, 0.5
  %v1976 = vmul.f32 %v1969, 0.5
  %v1977 = vmul.f32 %v1970, 0.5
  %v1978 = vtanh.pop %v1972
  %v1979 = vtanh.pop %v1973
  %v1980 = vtanh.pop %v1974
  %v1981 = vtanh.pop %v1975
  %v1982 = vtanh.pop %v1976
  %v1983 = vtanh.pop %v1977
  %v1984 = vmul.f32 %v1978, 0.5
  %v1985 = vmul.f32 %v1979, 0.5
  %v1986 = vmul.f32 %v1980, 0.5
  %v1987 = vmul.f32 %v1981, 0.5
  %v1988 = vmul.f32 %v1982, 0.5
  %v1989 = vmul.f32 %v1983, 0.5
  %v1990 = vadd.f32 %v1984, 0.5
  %v1991 = vadd.f32 %v1985, 0.5
  %v1992 = vadd.f32 %v1986, 0.5
  %v1993 = vadd.f32 %v1987, 0.5
  %v1994 = vadd.f32 %v1988, 0.5
  %v1995 = vadd.f32 %v1989, 0.5
  %v1996 = vtanh.pop %v1967
  %v1997 = vtanh.pop %v1971
  %v1998 = vmul.f32 %v1991, %v1850
  %v1999 = vmul.f32 %v1994, %v1851
  %v2000 = vmul.f32 %v1990, %v1996
  %v2001 = vmul.f32 %v1993, %v1997
  %v2002 = vadd.f32 %v1998, %v2000
  %v2003 = vadd.f32 %v1999, %v2001
  %v2004 = vtanh.pop %v2002
  %v2005 = vtanh.pop %v2003
  %v2006 = vmul.f32 %v1992, %v2004
  %v2007 = vmul.f32 %v1995, %v2005
  %v2008 = vpack.c.bf16 %v2007, %v2006
  %v2010 = vunpack.c.l.b16 %v2008
  %v2011 = vunpack.c.h.b16 %v2008
  %v2012 = vpack.c.b16 %v2010, %v2010
  %v2013 = vpack.c.b16 %v2011, %v2011
  %s2016 = scalar_lea.vmem %s6, 56
  %2017 = vst [vmem:[%s2016] sm:$0xf] %v2012
  %2018 = vst [vmem:[%s2016 + $0x4] sm:$0xf] %v2013
  %2019 = vst [vmem:[%s7] sm:$0xff] %v2006
  %2020 = vst [vmem:[%s7 + $0x8] sm:$0xff] %v2007
  %2021 = vst [vmem:[%s8] sm:$0xff] %v2002
  %2022 = vst [vmem:[%s8 + $0x8] sm:$0xff] %v2003
  // Predicated region
  $region30: #{rnn_forward.3} parent=0 // pred_check
    _
  $region31: #{rnn_forward.3} parent=0 // pred_check_branch
    %2024 = sbr.rel (0) target = $region33
  $region32: #{rnn_forward.3} parent=0 // pred_region
    _
  $region33: #{rnn_forward.3} parent=0 // pred_fallthru
    _
  // Predicated region
  $region34: #{rnn_forward.3} parent=0 // pred_check
    _
  $region35: #{rnn_forward.3} parent=0 // pred_check_branch
    %2026 = sbr.rel (0) target = $region37
  $region36: #{rnn_forward.3} parent=0 // pred_region
    _
  $region37: #{rnn_forward.3} parent=0 // pred_fallthru
    _
  // Predicated region
  $region38: #{rnn_forward.3} parent=0 // pred_check
    _
  $region39: #{rnn_forward.3} parent=0 // pred_check_branch
    %2028 = sbr.rel (0) target = $region41
  $region40: #{rnn_forward.3} parent=0 // pred_region
    _
  $region41: #{rnn_forward.3} parent=0 // pred_fallthru
    _
  // Predicated region
  $region42: #{rnn_forward.3} parent=0 // pred_check
    _
  $region43: #{rnn_forward.3} parent=0 // pred_check_branch
    %2030 = sbr.rel (0) target = $region45
  $region44: #{rnn_forward.3} parent=0 // pred_region
    _
  $region45: #{rnn_forward.3} parent=0 // pred_fallthru
    _
  // Predicated region
  $region46: #{rnn_forward.3} parent=0 // pred_check
    _
  $region47: #{rnn_forward.3} parent=0 // pred_check_branch
    %2032 = sbr.rel (0) target = $region49
  $region48: #{rnn_forward.3} parent=0 // pred_region
    _
  $region49: #{rnn_forward.3} parent=0 // pred_fallthru
    _
  // Predicated region
  $region50: #{rnn_forward.3} parent=0 // pred_check
    _
  $region51: #{rnn_forward.3} parent=0 // pred_check_branch
    %2034 = sbr.rel (0) target = $region53
  $region52: #{rnn_forward.3} parent=0 // pred_region
    _
  $region53: #{rnn_forward.3} parent=0 // pred_fallthru
    _

</llo_original>
